<compile_context>
chip_gen: v7x
topology: tpu7x:2x2x1
jax: 0.10.0
libtpu: 0.0.40
codegen_flags: <defaults>
</compile_context>

<pallas_src>
import functools

import jax
import jax.numpy as jnp
from jax.experimental import pallas as pl
from jax.experimental.pallas import tpu as pltpu


# Whole-array VMEM block (no grid, no pipeline) for the latency-bound path.
_VMEM = pl.BlockSpec(memory_space=pltpu.MemorySpace.VMEM)

# Kernel argument order for the packed weights (single source of truth).
_WEIGHTS = ("w1", "b1", "w2", "b2", "w3", "b3", "wf", "bf",
            "w1h", "b1h", "w2h", "b2h", "wha", "whb", "bh")

# Small-batch (latency) path: whole-array VMEM blocks, no grid.
_SMALL_BATCH_MAX = 32
# Large-batch path: batch elements per grid step.  Multiple of 8 so every
# in-kernel row slice is sublane-aligned; 2x-buffered p1d tile (~4.7 MB) plus
# ~1 MB of weights stays far under v7x's 32 MiB scoped-VMEM default.
_TILE_B = 32


def _tree_sum(xs):
    """Balanced pairwise sum (depth ceil(log2 n)) of a list of arrays."""
    xs = list(xs)
    while len(xs) > 1:
        nxt = [xs[i] + xs[i + 1] for i in range(0, len(xs) - 1, 2)]
        if len(xs) % 2:
            nxt.append(xs[-1])
        xs = nxt
    return xs[0]


# ------------------------------ Pallas kernel ------------------------------ #
def _fused_forward_kernel(p1_ref,
                          w1_ref, b1_ref, w2_ref, b2_ref, w3_ref, b3_ref,
                          wf_ref, bf_ref, w1h_ref, b1h_ref, w2h_ref, b2h_ref,
                          wha_ref, whb_ref, bh_ref, out_ref):
    """Whole CNN_with_RL forward for one batch tile, entirely in VMEM/vregs.

    p1_ref : (16*Gp, C*64) conv1 im2col patches, duplicated per conv2 tap.
             Row layout: tap t occupies rows [t*Gp, t*Gp + 9*Bk) ordered
             (conv2-output-position r, batch b); rows up to Gp are zero pad.
    out_ref: (Bk, action_dim + predict_dim) merged head output.
    """
    f32 = jnp.float32
    bk = out_ref.shape[0]           # batch elements in this tile
    gp = p1_ref.shape[0] // 16      # padded rows per conv2-tap group
    hid = w2h_ref.shape[0]          # MLP hidden width (lane-aligned split)

    # conv1 (k=8, s=4) as a fused im2col-matmul + bias + ReLU.
    y1 = jnp.dot(p1_ref[...], w1_ref[...], preferred_element_type=f32)
    y1 = jnp.maximum(y1 + b1_ref[...], 0.0)                  # (16*Gp, 32)

    # conv2 (k=4, s=2): one MXU matmul per spatial tap on a sublane-ALIGNED
    # row slab (Gp % 8 == 0), combined with a balanced add tree — no im2col,
    # no reshape, no serial accumulation chain.
    taps = [
        jnp.dot(y1[t * gp:(t + 1) * gp, :], w2_ref[t],
                preferred_element_type=f32)
        for t in range(16)
    ]
    y2 = jnp.maximum(_tree_sum(taps) + b2_ref[...], 0.0)      # (Gp, 64)

    # conv3 (3x3, stride 1, 3x3 -> 1x1): rows r*Bk:(r+1)*Bk of y2 are exactly
    # conv2 output position r for all batches, so conv3 is 9 per-position
    # matmuls + tree sum.  Slices are aligned whenever Bk % 8 == 0 (the tiled
    # path); at tiny Bk the shifts are one vreg each on the free XLU slot.
    pos = [
        jnp.dot(y2[r * bk:(r + 1) * bk, :], w3_ref[r],
                preferred_element_type=f32)
        for r in range(9)
    ]
    feat = jnp.maximum(_tree_sum(pos) + b3_ref[...], 0.0)     # (Bk, 64) == flatten

    # flatten_linear + ReLU -> features (Bk, 512)
    feats = jnp.dot(feat, wf_ref[...], preferred_element_type=f32)
    feats = jnp.maximum(feats + bf_ref[...], 0.0)

    # Packed first layers of both branches: [mlp_fc1 | pred_fc1] -> (Bk, 2*hid)
    hp = jnp.dot(feats, w1h_ref[...], preferred_element_type=f32)
    hp = jnp.maximum(hp + b1h_ref[...], 0.0)

    # mlp fc2 + ReLU on the first (lane-aligned) half.
    h2 = jnp.dot(hp[:, :hid], w2h_ref[...], preferred_element_type=f32)
    h2 = jnp.maximum(h2 + b2h_ref[...], 0.0)

    # Merged heads: block weights give [action | prediction] in one
    # lane-padded output buffer (single masked store / single writeback).
    out = (jnp.dot(h2, wha_ref[...], preferred_element_type=f32)
           + jnp.dot(hp[:, hid:], whb_ref[...], preferred_element_type=f32)
           + bh_ref[...])
    out_ref[...] = out.astype(out_ref.dtype)


# ------------------------------- XLA-side glue ------------------------------ #
def _conv1_patches(x):
    """NCHW obs (B,C,36,36) -> conv1 im2col patches (B, 8, 8, C*64).

    Built directly from NCHW (no NHWC transpose of the observation); columns
    ordered (c, kh, kw) to match w1.reshape(32, -1).T.
    """
    B, C, H, W = x.shape
    k, s = 8, 4
    OH = (H - k) // s + 1
    OW = (W - k) // s + 1
    cols = []
    for i in range(k):
        for j in range(k):
            cols.append(x[:, :, i:i + s * (OH - 1) + 1:s,
                          j:j + s * (OW - 1) + 1:s])          # (B, C, OH, OW)
    p = jnp.stack(cols, axis=2)                               # (B, C, 64, OH, OW)
    p = jnp.transpose(p, (0, 3, 4, 1, 2))                     # (B, OH, OW, C, 64)
    return p.reshape(B, OH, OW, C * k * k)


def _dup_patches(p1c):
    """(nb, Bk, 8, 8, D) conv1 patches -> (nb, 16*Gp, D) tap-duplicated rows.

    Within each of the 16 conv2 taps (kh, kw): rows ordered
    (conv2-output-position r = oh2*3+ow2, batch b), zero-padded to Gp rows so
    every tap group starts on a sublane boundary inside the kernel.
    """
    nb, bk, _, _, D = p1c.shape
    g = 9 * bk
    gp = ((g + 7) // 8) * 8
    groups = []
    for kh in range(4):
        for kw in range(4):
            tap = p1c[:, :, kh:kh + 5:2, kw:kw + 5:2, :]      # (nb, Bk, 3, 3, D)
            tap = jnp.transpose(tap, (0, 2, 3, 1, 4))         # (nb, 3, 3, Bk, D)
            tap = tap.reshape(nb, g, D)
            if gp != g:
                tap = jnp.pad(tap, ((0, 0), (0, gp - g), (0, 0)))
            groups.append(tap)
    return jnp.concatenate(groups, axis=1)                    # (nb, 16*Gp, D)


# -------------------------------- Call paths -------------------------------- #
def _forward_small(packed, obs):
    """Latency path (B <= _SMALL_BATCH_MAX): one gridless whole-VMEM call."""
    B = obs.shape[0]
    p1 = _conv1_patches(obs)                                  # (B, 8, 8, C*64)
    p1d = _dup_patches(p1[None])[0]                           # (16*Gp, C*64)
    nout = packed["bh"].shape[1]
    return pl.pallas_call(
        _fused_forward_kernel,
        out_shape=jax.ShapeDtypeStruct((B, nout), jnp.float32),
        in_specs=[_VMEM] * (1 + len(_WEIGHTS)),
        out_specs=_VMEM,
    )(p1d, *[packed[k] for k in _WEIGHTS])


def _forward_tiled(packed, obs, tile_b=_TILE_B):
    """Throughput path (large B): batch grid, weights VMEM-resident."""
    B = obs.shape[0]
    nb = pl.cdiv(B, tile_b)
    bpad = nb * tile_b
    if bpad != B:                      # never fall back to a whole-array block
        obs = jnp.pad(obs, ((0, bpad - B), (0, 0), (0, 0), (0, 0)))
    p1 = _conv1_patches(obs)                                  # (Bpad, 8, 8, D)
    D = p1.shape[-1]
    p1c = p1.reshape(nb, tile_b, 8, 8, D)
    p1d = _dup_patches(p1c)                                   # (nb, 16*Gp, D)
    gp = p1d.shape[1] // 16
    p1d = p1d.reshape(nb * 16 * gp, D)
    nout = packed["bh"].shape[1]

    def const_spec(a):
        return pl.BlockSpec(a.shape, lambda i, _n=a.ndim: (0,) * _n)

    out = pl.pallas_call(
        _fused_forward_kernel,
        out_shape=jax.ShapeDtypeStruct((bpad, nout), jnp.float32),
        grid=(nb,),
        in_specs=[pl.BlockSpec((16 * gp, D), lambda i: (i, 0))]
        + [const_spec(packed[k]) for k in _WEIGHTS],
        out_specs=pl.BlockSpec((tile_b, nout), lambda i: (i, 0)),
        compiler_params=pltpu.CompilerParams(
            dimension_semantics=("parallel",)),
    )(p1d, *[packed[k] for k in _WEIGHTS])
    return out[:B]


def cnn_with_rl_forward(packed, observations, *, action_dim):
    """observations: (B, C, H, W) NCHW (PyTorch convention)."""
    B, C, H, W = observations.shape
    # TODO(synk): the fused kernel hard-codes the 36x36 conv geometry
    # (36 -> 8 -> 3 -> 1); other observation sizes need a generalized tap map.
    assert (H - 8) % 4 == 0 and (W - 8) % 4 == 0, (H, W)
    assert (H - 8) // 4 + 1 == 8 and (W - 8) // 4 + 1 == 8, (H, W)

    if B <= _SMALL_BATCH_MAX:
        out = _forward_small(packed, observations)
    else:
        out = _forward_tiled(packed, observations)
    return out[:, :action_dim], out[:, action_dim:]


# ----------------------------- Parameter handling --------------------------- #
def init_params(key, n_input_channels, n_flatten, action_dim, predict_dim,
                features_dim=512, hidden_dim=128):
    """PyTorch-layout parameters: Linear (out,in), Conv (out,in,kh,kw)."""
    def lin(k, fan_in, fan_out):
        kw, kb = jax.random.split(k)
        s = 1.0 / jnp.sqrt(fan_in)
        w = jax.random.uniform(kw, (fan_out, fan_in), jnp.float32, -s, s)
        b = jax.random.uniform(kb, (fan_out,), jnp.float32, -s, s)
        return w, b

    def conv(k, cin, cout, ksz):
        kw, kb = jax.random.split(k)
        s = 1.0 / jnp.sqrt(cin * ksz * ksz)
        w = jax.random.uniform(kw, (cout, cin, ksz, ksz), jnp.float32, -s, s)
        b = jax.random.uniform(kb, (cout,), jnp.float32, -s, s)
        return w, b

    keys = jax.random.split(key, 9)
    return {
        "conv1": conv(keys[0], n_input_channels, 32, 8),
        "conv2": conv(keys[1], 32, 64, 4),
        "conv3": conv(keys[2], 64, 64, 3),
        "flatten_linear": lin(keys[3], n_flatten, features_dim),
        "mlp_fc1": lin(keys[4], features_dim, hidden_dim),
        "mlp_fc2": lin(keys[5], hidden_dim, hidden_dim),
        "mlp_fc3": lin(keys[6], hidden_dim, action_dim),
        "pred_fc1": lin(keys[7], features_dim, hidden_dim),
        "pred_fc2": lin(keys[8], hidden_dim, predict_dim),
    }


def prepare_params(params):
    """One-time repack into kernel-ready layouts (no per-forward transposes).

    TODO(synk): add an optional bf16 weight/activation mode (MXU-native on
    v6e/v7x) once validated against the f32 reference at the 1e-3 tolerance.
    """
    pk = {}
    w1, b1 = params["conv1"]                       # (32, C, 8, 8)
    pk["w1"] = w1.reshape(w1.shape[0], -1).T       # (C*64, 32), rows (c,kh,kw)
    pk["b1"] = b1.reshape(1, -1)
    w2, b2 = params["conv2"]                       # (64, 32, 4, 4)
    pk["w2"] = w2.transpose(2, 3, 1, 0).reshape(16, 32, 64)   # (tap, ci, co)
    pk["b2"] = b2.reshape(1, -1)
    w3, b3 = params["conv3"]                       # (64, 64, 3, 3)
    pk["w3"] = w3.transpose(2, 3, 1, 0).reshape(9, 64, 64)    # (pos, ci, co)
    pk["b3"] = b3.reshape(1, -1)
    wf, bf = params["flatten_linear"]
    pk["wf"], pk["bf"] = wf.T, bf.reshape(1, -1)
    # Pack mlp_fc1 and pred_fc1 into one lane-dense (512, 2*hid) matmul.
    w_m1, b_m1 = params["mlp_fc1"]
    w_p1, b_p1 = params["pred_fc1"]
    pk["w1h"] = jnp.concatenate([w_m1.T, w_p1.T], axis=1)
    pk["b1h"] = jnp.concatenate([b_m1, b_p1]).reshape(1, -1)
    w_m2, b_m2 = params["mlp_fc2"]
    pk["w2h"], pk["b2h"] = w_m2.T, b_m2.reshape(1, -1)
    # Block head weights -> one merged (B, action+predict) output.
    w_m3, b_m3 = params["mlp_fc3"]
    w_p2, b_p2 = params["pred_fc2"]
    hid = w_m2.shape[0]
    adim, pdim = w_m3.shape[0], w_p2.shape[0]
    wha = jnp.zeros((hid, adim + pdim), jnp.float32).at[:, :adim].set(w_m3.T)
    whb = jnp.zeros((hid, adim + pdim), jnp.float32).at[:, adim:].set(w_p2.T)
    pk["wha"], pk["whb"] = wha, whb
    pk["bh"] = jnp.concatenate([b_m3, b_p2]).reshape(1, -1)
    return pk


# ------------------------------ Pure-JAX reference -------------------------- #
def reference_forward(params, observations):
    """XLA reference at full f32 precision, PyTorch semantics."""
    hi = jax.lax.Precision.HIGHEST

    def conv(x, wb, stride):
        w, b = wb
        y = jax.lax.conv_general_dilated(
            x, w, window_strides=(stride, stride), padding="VALID",
            dimension_numbers=("NCHW", "OIHW", "NCHW"), precision=hi)
        return jnp.maximum(y + b[None, :, None, None], 0.0)

    def lin(x, wb, relu):
        w, b = wb
        y = jnp.dot(x, w.T, precision=hi) + b
        return jnp.maximum(y, 0.0) if relu else y

    x = conv(observations, params["conv1"], 4)
    x = conv(x, params["conv2"], 2)
    x = conv(x, params["conv3"], 1)
    x = x.reshape(x.shape[0], -1)
    feats = lin(x, params["flatten_linear"], True)
    h = lin(feats, params["mlp_fc1"], True)
    h = lin(h, params["mlp_fc2"], True)
    action = lin(h, params["mlp_fc3"], False)
    p = lin(feats, params["pred_fc1"], True)
    pred = lin(p, params["pred_fc2"], False)
    return action, pred


def _max_err(a, b):
    return float(jnp.max(jnp.abs(a - b)))


# ------------------------------------ Main ----------------------------------- #
if __name__ == "__main__":
    # Observation space: Box with shape (4, 36, 36).  Conv arithmetic:
    # 36 --(k8,s4)--> 8 --(k4,s2)--> 3 --(k3,s1)--> 1  =>  n_flatten = 64.
    B, C, H, W = 2, 4, 36, 36
    action_dim, predict_dim = 6, 10
    features_dim, hidden_dim = 512, 128
    n_flatten = 64

    key = jax.random.PRNGKey(0)
    k_obs, k_par, k_obs2 = jax.random.split(key, 3)
    observations = jax.random.uniform(k_obs, (B, C, H, W), jnp.float32)
    params = init_params(k_par, C, n_flatten, action_dim, predict_dim,
                         features_dim, hidden_dim)
    packed = prepare_params(params)          # one-time weight repack/transpose

    fwd = jax.jit(functools.partial(cnn_with_rl_forward, action_dim=action_dim))

    # ---- latency path (B=2): single gridless fused kernel ----
    action_out, pred_out = fwd(packed, observations)
    jax.block_until_ready((action_out, pred_out))
    assert action_out.shape == (B, action_dim), action_out.shape
    assert pred_out.shape == (B, predict_dim), pred_out.shape
    assert action_out.dtype == jnp.float32 and pred_out.dtype == jnp.float32

    ref_act, ref_pred = reference_forward(params, observations)
    err = max(_max_err(action_out, ref_act), _max_err(pred_out, ref_pred))
    assert err < 1e-3, f"small-batch mismatch vs reference: max_abs_err={err}"

    # ---- throughput path (B=40, not a tile multiple): padded batch grid ----
    B2 = 40
    obs2 = jax.random.uniform(k_obs2, (B2, C, H, W), jnp.float32)
    act2, pred2 = fwd(packed, obs2)
    jax.block_until_ready((act2, pred2))
    assert act2.shape == (B2, action_dim) and pred2.shape == (B2, predict_dim)

    ref_a2, ref_p2 = reference_forward(params, obs2)
    err2 = max(_max_err(act2, ref_a2), _max_err(pred2, ref_p2))
    assert err2 < 1e-3, f"tiled-batch mismatch vs reference: max_abs_err={err2}"

    print("KERNEL_OK")
</pallas_src>

<mosaic_0001>
module attributes {stable_mosaic.version = 11 : i64} {
  func.func @_fused_forward_kernel(%arg0: memref<384x256xf32, #tpu.memory_space<vmem>>, %arg1: memref<256x32xf32, #tpu.memory_space<vmem>>, %arg2: memref<1x32xf32, #tpu.memory_space<vmem>>, %arg3: memref<16x32x64xf32, #tpu.memory_space<vmem>>, %arg4: memref<1x64xf32, #tpu.memory_space<vmem>>, %arg5: memref<9x64x64xf32, #tpu.memory_space<vmem>>, %arg6: memref<1x64xf32, #tpu.memory_space<vmem>>, %arg7: memref<64x512xf32, #tpu.memory_space<vmem>>, %arg8: memref<1x512xf32, #tpu.memory_space<vmem>>, %arg9: memref<512x256xf32, #tpu.memory_space<vmem>>, %arg10: memref<1x256xf32, #tpu.memory_space<vmem>>, %arg11: memref<128x128xf32, #tpu.memory_space<vmem>>, %arg12: memref<1x128xf32, #tpu.memory_space<vmem>>, %arg13: memref<128x16xf32, #tpu.memory_space<vmem>>, %arg14: memref<128x16xf32, #tpu.memory_space<vmem>>, %arg15: memref<1x16xf32, #tpu.memory_space<vmem>>, %arg16: memref<2x16xf32, #tpu.memory_space<vmem>>) attributes {dimension_semantics = [], scalar_prefetch = 0 : i64, scratch_operands = 0 : i64, tpu.core_type = #tpu.core_type<tc>} {
    %c0 = arith.constant 0 : index
    %c0_0 = arith.constant 0 : index
    %0 = vector.load %arg0[%c0, %c0_0] : memref<384x256xf32, #tpu.memory_space<vmem>>, vector<384x256xf32>
    %c0_1 = arith.constant 0 : index
    %c0_2 = arith.constant 0 : index
    %1 = vector.load %arg1[%c0_1, %c0_2] : memref<256x32xf32, #tpu.memory_space<vmem>>, vector<256x32xf32>
    %cst = arith.constant dense<0.000000e+00> : vector<384x32xf32>
    %2 = tpu.matmul %0, %1, %cst {dimension_numbers = #tpu.dot_dimension_numbers<[1], [0], [0], [1], [0, 0, 1, 1], [], []>} : vector<384x256xf32>, vector<256x32xf32>, vector<384x32xf32> -> vector<384x32xf32>
    %c0_3 = arith.constant 0 : index
    %c0_4 = arith.constant 0 : index
    %3 = vector.load %arg2[%c0_3, %c0_4] : memref<1x32xf32, #tpu.memory_space<vmem>>, vector<1x32xf32>
    %4 = vector.broadcast %3 : vector<1x32xf32> to vector<384x32xf32>
    %5 = arith.addf %2, %4 : vector<384x32xf32>
    %cst_5 = arith.constant 0.000000e+00 : f32
    %6 = vector.broadcast %cst_5 : f32 to vector<384x32xf32>
    %7 = arith.maximumf %5, %6 : vector<384x32xf32>
    %8 = vector.extract_strided_slice %7 {offsets = [0, 0], sizes = [24, 32], strides = [1, 1]} : vector<384x32xf32> to vector<24x32xf32>
    %c0_6 = arith.constant 0 : index
    %c0_7 = arith.constant 0 : index
    %c0_8 = arith.constant 0 : index
    %9 = vector.load %arg3[%c0_6, %c0_7, %c0_8] : memref<16x32x64xf32, #tpu.memory_space<vmem>>, vector<1x32x64xf32>
    %10 = vector.shape_cast %9 : vector<1x32x64xf32> to vector<32x64xf32>
    %cst_9 = arith.constant dense<0.000000e+00> : vector<24x64xf32>
    %11 = tpu.matmul %8, %10, %cst_9 {dimension_numbers = #tpu.dot_dimension_numbers<[1], [0], [0], [1], [0, 0, 1, 1], [], []>} : vector<24x32xf32>, vector<32x64xf32>, vector<24x64xf32> -> vector<24x64xf32>
    %12 = vector.extract_strided_slice %7 {offsets = [24, 0], sizes = [24, 32], strides = [1, 1]} : vector<384x32xf32> to vector<24x32xf32>
    %c1 = arith.constant 1 : index
    %c0_10 = arith.constant 0 : index
    %c0_11 = arith.constant 0 : index
    %13 = vector.load %arg3[%c1, %c0_10, %c0_11] : memref<16x32x64xf32, #tpu.memory_space<vmem>>, vector<1x32x64xf32>
    %14 = vector.shape_cast %13 : vector<1x32x64xf32> to vector<32x64xf32>
    %cst_12 = arith.constant dense<0.000000e+00> : vector<24x64xf32>
    %15 = tpu.matmul %12, %14, %cst_12 {dimension_numbers = #tpu.dot_dimension_numbers<[1], [0], [0], [1], [0, 0, 1, 1], [], []>} : vector<24x32xf32>, vector<32x64xf32>, vector<24x64xf32> -> vector<24x64xf32>
    %16 = vector.extract_strided_slice %7 {offsets = [48, 0], sizes = [24, 32], strides = [1, 1]} : vector<384x32xf32> to vector<24x32xf32>
    %c2 = arith.constant 2 : index
    %c0_13 = arith.constant 0 : index
    %c0_14 = arith.constant 0 : index
    %17 = vector.load %arg3[%c2, %c0_13, %c0_14] : memref<16x32x64xf32, #tpu.memory_space<vmem>>, vector<1x32x64xf32>
    %18 = vector.shape_cast %17 : vector<1x32x64xf32> to vector<32x64xf32>
    %cst_15 = arith.constant dense<0.000000e+00> : vector<24x64xf32>
    %19 = tpu.matmul %16, %18, %cst_15 {dimension_numbers = #tpu.dot_dimension_numbers<[1], [0], [0], [1], [0, 0, 1, 1], [], []>} : vector<24x32xf32>, vector<32x64xf32>, vector<24x64xf32> -> vector<24x64xf32>
    %20 = vector.extract_strided_slice %7 {offsets = [72, 0], sizes = [24, 32], strides = [1, 1]} : vector<384x32xf32> to vector<24x32xf32>
    %c3 = arith.constant 3 : index
    %c0_16 = arith.constant 0 : index
    %c0_17 = arith.constant 0 : index
    %21 = vector.load %arg3[%c3, %c0_16, %c0_17] : memref<16x32x64xf32, #tpu.memory_space<vmem>>, vector<1x32x64xf32>
    %22 = vector.shape_cast %21 : vector<1x32x64xf32> to vector<32x64xf32>
    %cst_18 = arith.constant dense<0.000000e+00> : vector<24x64xf32>
    %23 = tpu.matmul %20, %22, %cst_18 {dimension_numbers = #tpu.dot_dimension_numbers<[1], [0], [0], [1], [0, 0, 1, 1], [], []>} : vector<24x32xf32>, vector<32x64xf32>, vector<24x64xf32> -> vector<24x64xf32>
    %24 = vector.extract_strided_slice %7 {offsets = [96, 0], sizes = [24, 32], strides = [1, 1]} : vector<384x32xf32> to vector<24x32xf32>
    %c4 = arith.constant 4 : index
    %c0_19 = arith.constant 0 : index
    %c0_20 = arith.constant 0 : index
    %25 = vector.load %arg3[%c4, %c0_19, %c0_20] : memref<16x32x64xf32, #tpu.memory_space<vmem>>, vector<1x32x64xf32>
    %26 = vector.shape_cast %25 : vector<1x32x64xf32> to vector<32x64xf32>
    %cst_21 = arith.constant dense<0.000000e+00> : vector<24x64xf32>
    %27 = tpu.matmul %24, %26, %cst_21 {dimension_numbers = #tpu.dot_dimension_numbers<[1], [0], [0], [1], [0, 0, 1, 1], [], []>} : vector<24x32xf32>, vector<32x64xf32>, vector<24x64xf32> -> vector<24x64xf32>
    %28 = vector.extract_strided_slice %7 {offsets = [120, 0], sizes = [24, 32], strides = [1, 1]} : vector<384x32xf32> to vector<24x32xf32>
    %c5 = arith.constant 5 : index
    %c0_22 = arith.constant 0 : index
    %c0_23 = arith.constant 0 : index
    %29 = vector.load %arg3[%c5, %c0_22, %c0_23] : memref<16x32x64xf32, #tpu.memory_space<vmem>>, vector<1x32x64xf32>
    %30 = vector.shape_cast %29 : vector<1x32x64xf32> to vector<32x64xf32>
    %cst_24 = arith.constant dense<0.000000e+00> : vector<24x64xf32>
    %31 = tpu.matmul %28, %30, %cst_24 {dimension_numbers = #tpu.dot_dimension_numbers<[1], [0], [0], [1], [0, 0, 1, 1], [], []>} : vector<24x32xf32>, vector<32x64xf32>, vector<24x64xf32> -> vector<24x64xf32>
    %32 = vector.extract_strided_slice %7 {offsets = [144, 0], sizes = [24, 32], strides = [1, 1]} : vector<384x32xf32> to vector<24x32xf32>
    %c6 = arith.constant 6 : index
    %c0_25 = arith.constant 0 : index
    %c0_26 = arith.constant 0 : index
    %33 = vector.load %arg3[%c6, %c0_25, %c0_26] : memref<16x32x64xf32, #tpu.memory_space<vmem>>, vector<1x32x64xf32>
    %34 = vector.shape_cast %33 : vector<1x32x64xf32> to vector<32x64xf32>
    %cst_27 = arith.constant dense<0.000000e+00> : vector<24x64xf32>
    %35 = tpu.matmul %32, %34, %cst_27 {dimension_numbers = #tpu.dot_dimension_numbers<[1], [0], [0], [1], [0, 0, 1, 1], [], []>} : vector<24x32xf32>, vector<32x64xf32>, vector<24x64xf32> -> vector<24x64xf32>
    %36 = vector.extract_strided_slice %7 {offsets = [168, 0], sizes = [24, 32], strides = [1, 1]} : vector<384x32xf32> to vector<24x32xf32>
    %c7 = arith.constant 7 : index
    %c0_28 = arith.constant 0 : index
    %c0_29 = arith.constant 0 : index
    %37 = vector.load %arg3[%c7, %c0_28, %c0_29] : memref<16x32x64xf32, #tpu.memory_space<vmem>>, vector<1x32x64xf32>
    %38 = vector.shape_cast %37 : vector<1x32x64xf32> to vector<32x64xf32>
    %cst_30 = arith.constant dense<0.000000e+00> : vector<24x64xf32>
    %39 = tpu.matmul %36, %38, %cst_30 {dimension_numbers = #tpu.dot_dimension_numbers<[1], [0], [0], [1], [0, 0, 1, 1], [], []>} : vector<24x32xf32>, vector<32x64xf32>, vector<24x64xf32> -> vector<24x64xf32>
    %40 = vector.extract_strided_slice %7 {offsets = [192, 0], sizes = [24, 32], strides = [1, 1]} : vector<384x32xf32> to vector<24x32xf32>
    %c8 = arith.constant 8 : index
    %c0_31 = arith.constant 0 : index
    %c0_32 = arith.constant 0 : index
    %41 = vector.load %arg3[%c8, %c0_31, %c0_32] : memref<16x32x64xf32, #tpu.memory_space<vmem>>, vector<1x32x64xf32>
    %42 = vector.shape_cast %41 : vector<1x32x64xf32> to vector<32x64xf32>
    %cst_33 = arith.constant dense<0.000000e+00> : vector<24x64xf32>
    %43 = tpu.matmul %40, %42, %cst_33 {dimension_numbers = #tpu.dot_dimension_numbers<[1], [0], [0], [1], [0, 0, 1, 1], [], []>} : vector<24x32xf32>, vector<32x64xf32>, vector<24x64xf32> -> vector<24x64xf32>
    %44 = vector.extract_strided_slice %7 {offsets = [216, 0], sizes = [24, 32], strides = [1, 1]} : vector<384x32xf32> to vector<24x32xf32>
    %c9 = arith.constant 9 : index
    %c0_34 = arith.constant 0 : index
    %c0_35 = arith.constant 0 : index
    %45 = vector.load %arg3[%c9, %c0_34, %c0_35] : memref<16x32x64xf32, #tpu.memory_space<vmem>>, vector<1x32x64xf32>
    %46 = vector.shape_cast %45 : vector<1x32x64xf32> to vector<32x64xf32>
    %cst_36 = arith.constant dense<0.000000e+00> : vector<24x64xf32>
    %47 = tpu.matmul %44, %46, %cst_36 {dimension_numbers = #tpu.dot_dimension_numbers<[1], [0], [0], [1], [0, 0, 1, 1], [], []>} : vector<24x32xf32>, vector<32x64xf32>, vector<24x64xf32> -> vector<24x64xf32>
    %48 = vector.extract_strided_slice %7 {offsets = [240, 0], sizes = [24, 32], strides = [1, 1]} : vector<384x32xf32> to vector<24x32xf32>
    %c10 = arith.constant 10 : index
    %c0_37 = arith.constant 0 : index
    %c0_38 = arith.constant 0 : index
    %49 = vector.load %arg3[%c10, %c0_37, %c0_38] : memref<16x32x64xf32, #tpu.memory_space<vmem>>, vector<1x32x64xf32>
    %50 = vector.shape_cast %49 : vector<1x32x64xf32> to vector<32x64xf32>
    %cst_39 = arith.constant dense<0.000000e+00> : vector<24x64xf32>
    %51 = tpu.matmul %48, %50, %cst_39 {dimension_numbers = #tpu.dot_dimension_numbers<[1], [0], [0], [1], [0, 0, 1, 1], [], []>} : vector<24x32xf32>, vector<32x64xf32>, vector<24x64xf32> -> vector<24x64xf32>
    %52 = vector.extract_strided_slice %7 {offsets = [264, 0], sizes = [24, 32], strides = [1, 1]} : vector<384x32xf32> to vector<24x32xf32>
    %c11 = arith.constant 11 : index
    %c0_40 = arith.constant 0 : index
    %c0_41 = arith.constant 0 : index
    %53 = vector.load %arg3[%c11, %c0_40, %c0_41] : memref<16x32x64xf32, #tpu.memory_space<vmem>>, vector<1x32x64xf32>
    %54 = vector.shape_cast %53 : vector<1x32x64xf32> to vector<32x64xf32>
    %cst_42 = arith.constant dense<0.000000e+00> : vector<24x64xf32>
    %55 = tpu.matmul %52, %54, %cst_42 {dimension_numbers = #tpu.dot_dimension_numbers<[1], [0], [0], [1], [0, 0, 1, 1], [], []>} : vector<24x32xf32>, vector<32x64xf32>, vector<24x64xf32> -> vector<24x64xf32>
    %56 = vector.extract_strided_slice %7 {offsets = [288, 0], sizes = [24, 32], strides = [1, 1]} : vector<384x32xf32> to vector<24x32xf32>
    %c12 = arith.constant 12 : index
    %c0_43 = arith.constant 0 : index
    %c0_44 = arith.constant 0 : index
    %57 = vector.load %arg3[%c12, %c0_43, %c0_44] : memref<16x32x64xf32, #tpu.memory_space<vmem>>, vector<1x32x64xf32>
    %58 = vector.shape_cast %57 : vector<1x32x64xf32> to vector<32x64xf32>
    %cst_45 = arith.constant dense<0.000000e+00> : vector<24x64xf32>
    %59 = tpu.matmul %56, %58, %cst_45 {dimension_numbers = #tpu.dot_dimension_numbers<[1], [0], [0], [1], [0, 0, 1, 1], [], []>} : vector<24x32xf32>, vector<32x64xf32>, vector<24x64xf32> -> vector<24x64xf32>
    %60 = vector.extract_strided_slice %7 {offsets = [312, 0], sizes = [24, 32], strides = [1, 1]} : vector<384x32xf32> to vector<24x32xf32>
    %c13 = arith.constant 13 : index
    %c0_46 = arith.constant 0 : index
    %c0_47 = arith.constant 0 : index
    %61 = vector.load %arg3[%c13, %c0_46, %c0_47] : memref<16x32x64xf32, #tpu.memory_space<vmem>>, vector<1x32x64xf32>
    %62 = vector.shape_cast %61 : vector<1x32x64xf32> to vector<32x64xf32>
    %cst_48 = arith.constant dense<0.000000e+00> : vector<24x64xf32>
    %63 = tpu.matmul %60, %62, %cst_48 {dimension_numbers = #tpu.dot_dimension_numbers<[1], [0], [0], [1], [0, 0, 1, 1], [], []>} : vector<24x32xf32>, vector<32x64xf32>, vector<24x64xf32> -> vector<24x64xf32>
    %64 = vector.extract_strided_slice %7 {offsets = [336, 0], sizes = [24, 32], strides = [1, 1]} : vector<384x32xf32> to vector<24x32xf32>
    %c14 = arith.constant 14 : index
    %c0_49 = arith.constant 0 : index
    %c0_50 = arith.constant 0 : index
    %65 = vector.load %arg3[%c14, %c0_49, %c0_50] : memref<16x32x64xf32, #tpu.memory_space<vmem>>, vector<1x32x64xf32>
    %66 = vector.shape_cast %65 : vector<1x32x64xf32> to vector<32x64xf32>
    %cst_51 = arith.constant dense<0.000000e+00> : vector<24x64xf32>
    %67 = tpu.matmul %64, %66, %cst_51 {dimension_numbers = #tpu.dot_dimension_numbers<[1], [0], [0], [1], [0, 0, 1, 1], [], []>} : vector<24x32xf32>, vector<32x64xf32>, vector<24x64xf32> -> vector<24x64xf32>
    %68 = vector.extract_strided_slice %7 {offsets = [360, 0], sizes = [24, 32], strides = [1, 1]} : vector<384x32xf32> to vector<24x32xf32>
    %c15 = arith.constant 15 : index
    %c0_52 = arith.constant 0 : index
    %c0_53 = arith.constant 0 : index
    %69 = vector.load %arg3[%c15, %c0_52, %c0_53] : memref<16x32x64xf32, #tpu.memory_space<vmem>>, vector<1x32x64xf32>
    %70 = vector.shape_cast %69 : vector<1x32x64xf32> to vector<32x64xf32>
    %cst_54 = arith.constant dense<0.000000e+00> : vector<24x64xf32>
    %71 = tpu.matmul %68, %70, %cst_54 {dimension_numbers = #tpu.dot_dimension_numbers<[1], [0], [0], [1], [0, 0, 1, 1], [], []>} : vector<24x32xf32>, vector<32x64xf32>, vector<24x64xf32> -> vector<24x64xf32>
    %72 = arith.addf %11, %15 : vector<24x64xf32>
    %73 = arith.addf %19, %23 : vector<24x64xf32>
    %74 = arith.addf %27, %31 : vector<24x64xf32>
    %75 = arith.addf %35, %39 : vector<24x64xf32>
    %76 = arith.addf %43, %47 : vector<24x64xf32>
    %77 = arith.addf %51, %55 : vector<24x64xf32>
    %78 = arith.addf %59, %63 : vector<24x64xf32>
    %79 = arith.addf %67, %71 : vector<24x64xf32>
    %80 = arith.addf %72, %73 : vector<24x64xf32>
    %81 = arith.addf %74, %75 : vector<24x64xf32>
    %82 = arith.addf %76, %77 : vector<24x64xf32>
    %83 = arith.addf %78, %79 : vector<24x64xf32>
    %84 = arith.addf %80, %81 : vector<24x64xf32>
    %85 = arith.addf %82, %83 : vector<24x64xf32>
    %86 = arith.addf %84, %85 : vector<24x64xf32>
    %c0_55 = arith.constant 0 : index
    %c0_56 = arith.constant 0 : index
    %87 = vector.load %arg4[%c0_55, %c0_56] : memref<1x64xf32, #tpu.memory_space<vmem>>, vector<1x64xf32>
    %88 = vector.broadcast %87 : vector<1x64xf32> to vector<24x64xf32>
    %89 = arith.addf %86, %88 : vector<24x64xf32>
    %cst_57 = arith.constant 0.000000e+00 : f32
    %90 = vector.broadcast %cst_57 : f32 to vector<24x64xf32>
    %91 = arith.maximumf %89, %90 : vector<24x64xf32>
    %92 = vector.extract_strided_slice %91 {offsets = [0, 0], sizes = [2, 64], strides = [1, 1]} : vector<24x64xf32> to vector<2x64xf32>
    %c0_58 = arith.constant 0 : index
    %c0_59 = arith.constant 0 : index
    %c0_60 = arith.constant 0 : index
    %93 = vector.load %arg5[%c0_58, %c0_59, %c0_60] : memref<9x64x64xf32, #tpu.memory_space<vmem>>, vector<1x64x64xf32>
    %94 = vector.shape_cast %93 : vector<1x64x64xf32> to vector<64x64xf32>
    %cst_61 = arith.constant dense<0.000000e+00> : vector<2x64xf32>
    %95 = tpu.matmul %92, %94, %cst_61 {dimension_numbers = #tpu.dot_dimension_numbers<[1], [0], [0], [1], [0, 0, 1, 1], [], []>} : vector<2x64xf32>, vector<64x64xf32>, vector<2x64xf32> -> vector<2x64xf32>
    %96 = vector.extract_strided_slice %91 {offsets = [2, 0], sizes = [2, 64], strides = [1, 1]} : vector<24x64xf32> to vector<2x64xf32>
    %c1_62 = arith.constant 1 : index
    %c0_63 = arith.constant 0 : index
    %c0_64 = arith.constant 0 : index
    %97 = vector.load %arg5[%c1_62, %c0_63, %c0_64] : memref<9x64x64xf32, #tpu.memory_space<vmem>>, vector<1x64x64xf32>
    %98 = vector.shape_cast %97 : vector<1x64x64xf32> to vector<64x64xf32>
    %cst_65 = arith.constant dense<0.000000e+00> : vector<2x64xf32>
    %99 = tpu.matmul %96, %98, %cst_65 {dimension_numbers = #tpu.dot_dimension_numbers<[1], [0], [0], [1], [0, 0, 1, 1], [], []>} : vector<2x64xf32>, vector<64x64xf32>, vector<2x64xf32> -> vector<2x64xf32>
    %100 = vector.extract_strided_slice %91 {offsets = [4, 0], sizes = [2, 64], strides = [1, 1]} : vector<24x64xf32> to vector<2x64xf32>
    %c2_66 = arith.constant 2 : index
    %c0_67 = arith.constant 0 : index
    %c0_68 = arith.constant 0 : index
    %101 = vector.load %arg5[%c2_66, %c0_67, %c0_68] : memref<9x64x64xf32, #tpu.memory_space<vmem>>, vector<1x64x64xf32>
    %102 = vector.shape_cast %101 : vector<1x64x64xf32> to vector<64x64xf32>
    %cst_69 = arith.constant dense<0.000000e+00> : vector<2x64xf32>
    %103 = tpu.matmul %100, %102, %cst_69 {dimension_numbers = #tpu.dot_dimension_numbers<[1], [0], [0], [1], [0, 0, 1, 1], [], []>} : vector<2x64xf32>, vector<64x64xf32>, vector<2x64xf32> -> vector<2x64xf32>
    %104 = vector.extract_strided_slice %91 {offsets = [6, 0], sizes = [2, 64], strides = [1, 1]} : vector<24x64xf32> to vector<2x64xf32>
    %c3_70 = arith.constant 3 : index
    %c0_71 = arith.constant 0 : index
    %c0_72 = arith.constant 0 : index
    %105 = vector.load %arg5[%c3_70, %c0_71, %c0_72] : memref<9x64x64xf32, #tpu.memory_space<vmem>>, vector<1x64x64xf32>
    %106 = vector.shape_cast %105 : vector<1x64x64xf32> to vector<64x64xf32>
    %cst_73 = arith.constant dense<0.000000e+00> : vector<2x64xf32>
    %107 = tpu.matmul %104, %106, %cst_73 {dimension_numbers = #tpu.dot_dimension_numbers<[1], [0], [0], [1], [0, 0, 1, 1], [], []>} : vector<2x64xf32>, vector<64x64xf32>, vector<2x64xf32> -> vector<2x64xf32>
    %108 = vector.extract_strided_slice %91 {offsets = [8, 0], sizes = [2, 64], strides = [1, 1]} : vector<24x64xf32> to vector<2x64xf32>
    %c4_74 = arith.constant 4 : index
    %c0_75 = arith.constant 0 : index
    %c0_76 = arith.constant 0 : index
    %109 = vector.load %arg5[%c4_74, %c0_75, %c0_76] : memref<9x64x64xf32, #tpu.memory_space<vmem>>, vector<1x64x64xf32>
    %110 = vector.shape_cast %109 : vector<1x64x64xf32> to vector<64x64xf32>
    %cst_77 = arith.constant dense<0.000000e+00> : vector<2x64xf32>
    %111 = tpu.matmul %108, %110, %cst_77 {dimension_numbers = #tpu.dot_dimension_numbers<[1], [0], [0], [1], [0, 0, 1, 1], [], []>} : vector<2x64xf32>, vector<64x64xf32>, vector<2x64xf32> -> vector<2x64xf32>
    %112 = vector.extract_strided_slice %91 {offsets = [10, 0], sizes = [2, 64], strides = [1, 1]} : vector<24x64xf32> to vector<2x64xf32>
    %c5_78 = arith.constant 5 : index
    %c0_79 = arith.constant 0 : index
    %c0_80 = arith.constant 0 : index
    %113 = vector.load %arg5[%c5_78, %c0_79, %c0_80] : memref<9x64x64xf32, #tpu.memory_space<vmem>>, vector<1x64x64xf32>
    %114 = vector.shape_cast %113 : vector<1x64x64xf32> to vector<64x64xf32>
    %cst_81 = arith.constant dense<0.000000e+00> : vector<2x64xf32>
    %115 = tpu.matmul %112, %114, %cst_81 {dimension_numbers = #tpu.dot_dimension_numbers<[1], [0], [0], [1], [0, 0, 1, 1], [], []>} : vector<2x64xf32>, vector<64x64xf32>, vector<2x64xf32> -> vector<2x64xf32>
    %116 = vector.extract_strided_slice %91 {offsets = [12, 0], sizes = [2, 64], strides = [1, 1]} : vector<24x64xf32> to vector<2x64xf32>
    %c6_82 = arith.constant 6 : index
    %c0_83 = arith.constant 0 : index
    %c0_84 = arith.constant 0 : index
    %117 = vector.load %arg5[%c6_82, %c0_83, %c0_84] : memref<9x64x64xf32, #tpu.memory_space<vmem>>, vector<1x64x64xf32>
    %118 = vector.shape_cast %117 : vector<1x64x64xf32> to vector<64x64xf32>
    %cst_85 = arith.constant dense<0.000000e+00> : vector<2x64xf32>
    %119 = tpu.matmul %116, %118, %cst_85 {dimension_numbers = #tpu.dot_dimension_numbers<[1], [0], [0], [1], [0, 0, 1, 1], [], []>} : vector<2x64xf32>, vector<64x64xf32>, vector<2x64xf32> -> vector<2x64xf32>
    %120 = vector.extract_strided_slice %91 {offsets = [14, 0], sizes = [2, 64], strides = [1, 1]} : vector<24x64xf32> to vector<2x64xf32>
    %c7_86 = arith.constant 7 : index
    %c0_87 = arith.constant 0 : index
    %c0_88 = arith.constant 0 : index
    %121 = vector.load %arg5[%c7_86, %c0_87, %c0_88] : memref<9x64x64xf32, #tpu.memory_space<vmem>>, vector<1x64x64xf32>
    %122 = vector.shape_cast %121 : vector<1x64x64xf32> to vector<64x64xf32>
    %cst_89 = arith.constant dense<0.000000e+00> : vector<2x64xf32>
    %123 = tpu.matmul %120, %122, %cst_89 {dimension_numbers = #tpu.dot_dimension_numbers<[1], [0], [0], [1], [0, 0, 1, 1], [], []>} : vector<2x64xf32>, vector<64x64xf32>, vector<2x64xf32> -> vector<2x64xf32>
    %124 = vector.extract_strided_slice %91 {offsets = [16, 0], sizes = [2, 64], strides = [1, 1]} : vector<24x64xf32> to vector<2x64xf32>
    %c8_90 = arith.constant 8 : index
    %c0_91 = arith.constant 0 : index
    %c0_92 = arith.constant 0 : index
    %125 = vector.load %arg5[%c8_90, %c0_91, %c0_92] : memref<9x64x64xf32, #tpu.memory_space<vmem>>, vector<1x64x64xf32>
    %126 = vector.shape_cast %125 : vector<1x64x64xf32> to vector<64x64xf32>
    %cst_93 = arith.constant dense<0.000000e+00> : vector<2x64xf32>
    %127 = tpu.matmul %124, %126, %cst_93 {dimension_numbers = #tpu.dot_dimension_numbers<[1], [0], [0], [1], [0, 0, 1, 1], [], []>} : vector<2x64xf32>, vector<64x64xf32>, vector<2x64xf32> -> vector<2x64xf32>
    %128 = arith.addf %95, %99 : vector<2x64xf32>
    %129 = arith.addf %103, %107 : vector<2x64xf32>
    %130 = arith.addf %111, %115 : vector<2x64xf32>
    %131 = arith.addf %119, %123 : vector<2x64xf32>
    %132 = arith.addf %128, %129 : vector<2x64xf32>
    %133 = arith.addf %130, %131 : vector<2x64xf32>
    %134 = arith.addf %132, %133 : vector<2x64xf32>
    %135 = arith.addf %134, %127 : vector<2x64xf32>
    %c0_94 = arith.constant 0 : index
    %c0_95 = arith.constant 0 : index
    %136 = vector.load %arg6[%c0_94, %c0_95] : memref<1x64xf32, #tpu.memory_space<vmem>>, vector<1x64xf32>
    %137 = vector.broadcast %136 : vector<1x64xf32> to vector<2x64xf32>
    %138 = arith.addf %135, %137 : vector<2x64xf32>
    %cst_96 = arith.constant 0.000000e+00 : f32
    %139 = vector.broadcast %cst_96 : f32 to vector<2x64xf32>
    %140 = arith.maximumf %138, %139 : vector<2x64xf32>
    %c0_97 = arith.constant 0 : index
    %c0_98 = arith.constant 0 : index
    %141 = vector.load %arg7[%c0_97, %c0_98] : memref<64x512xf32, #tpu.memory_space<vmem>>, vector<64x512xf32>
    %cst_99 = arith.constant dense<0.000000e+00> : vector<2x512xf32>
    %142 = tpu.matmul %140, %141, %cst_99 {dimension_numbers = #tpu.dot_dimension_numbers<[1], [0], [0], [1], [0, 0, 1, 1], [], []>} : vector<2x64xf32>, vector<64x512xf32>, vector<2x512xf32> -> vector<2x512xf32>
    %c0_100 = arith.constant 0 : index
    %c0_101 = arith.constant 0 : index
    %143 = vector.load %arg8[%c0_100, %c0_101] : memref<1x512xf32, #tpu.memory_space<vmem>>, vector<1x512xf32>
    %144 = vector.broadcast %143 : vector<1x512xf32> to vector<2x512xf32>
    %145 = arith.addf %142, %144 : vector<2x512xf32>
    %cst_102 = arith.constant 0.000000e+00 : f32
    %146 = vector.broadcast %cst_102 : f32 to vector<2x512xf32>
    %147 = arith.maximumf %145, %146 : vector<2x512xf32>
    %c0_103 = arith.constant 0 : index
    %c0_104 = arith.constant 0 : index
    %148 = vector.load %arg9[%c0_103, %c0_104] : memref<512x256xf32, #tpu.memory_space<vmem>>, vector<512x256xf32>
    %cst_105 = arith.constant dense<0.000000e+00> : vector<2x256xf32>
    %149 = tpu.matmul %147, %148, %cst_105 {dimension_numbers = #tpu.dot_dimension_numbers<[1], [0], [0], [1], [0, 0, 1, 1], [], []>} : vector<2x512xf32>, vector<512x256xf32>, vector<2x256xf32> -> vector<2x256xf32>
    %c0_106 = arith.constant 0 : index
    %c0_107 = arith.constant 0 : index
    %150 = vector.load %arg10[%c0_106, %c0_107] : memref<1x256xf32, #tpu.memory_space<vmem>>, vector<1x256xf32>
    %151 = vector.broadcast %150 : vector<1x256xf32> to vector<2x256xf32>
    %152 = arith.addf %149, %151 : vector<2x256xf32>
    %cst_108 = arith.constant 0.000000e+00 : f32
    %153 = vector.broadcast %cst_108 : f32 to vector<2x256xf32>
    %154 = arith.maximumf %152, %153 : vector<2x256xf32>
    %155 = vector.extract_strided_slice %154 {offsets = [0, 0], sizes = [2, 128], strides = [1, 1]} : vector<2x256xf32> to vector<2x128xf32>
    %c0_109 = arith.constant 0 : index
    %c0_110 = arith.constant 0 : index
    %156 = vector.load %arg11[%c0_109, %c0_110] : memref<128x128xf32, #tpu.memory_space<vmem>>, vector<128x128xf32>
    %cst_111 = arith.constant dense<0.000000e+00> : vector<2x128xf32>
    %157 = tpu.matmul %155, %156, %cst_111 {dimension_numbers = #tpu.dot_dimension_numbers<[1], [0], [0], [1], [0, 0, 1, 1], [], []>} : vector<2x128xf32>, vector<128x128xf32>, vector<2x128xf32> -> vector<2x128xf32>
    %c0_112 = arith.constant 0 : index
    %c0_113 = arith.constant 0 : index
    %158 = vector.load %arg12[%c0_112, %c0_113] : memref<1x128xf32, #tpu.memory_space<vmem>>, vector<1x128xf32>
    %159 = vector.broadcast %158 : vector<1x128xf32> to vector<2x128xf32>
    %160 = arith.addf %157, %159 : vector<2x128xf32>
    %cst_114 = arith.constant 0.000000e+00 : f32
    %161 = vector.broadcast %cst_114 : f32 to vector<2x128xf32>
    %162 = arith.maximumf %160, %161 : vector<2x128xf32>
    %c0_115 = arith.constant 0 : index
    %c0_116 = arith.constant 0 : index
    %163 = vector.load %arg13[%c0_115, %c0_116] : memref<128x16xf32, #tpu.memory_space<vmem>>, vector<128x16xf32>
    %cst_117 = arith.constant dense<0.000000e+00> : vector<2x16xf32>
    %164 = tpu.matmul %162, %163, %cst_117 {dimension_numbers = #tpu.dot_dimension_numbers<[1], [0], [0], [1], [0, 0, 1, 1], [], []>} : vector<2x128xf32>, vector<128x16xf32>, vector<2x16xf32> -> vector<2x16xf32>
    %165 = vector.extract_strided_slice %154 {offsets = [0, 128], sizes = [2, 128], strides = [1, 1]} : vector<2x256xf32> to vector<2x128xf32>
    %c0_118 = arith.constant 0 : index
    %c0_119 = arith.constant 0 : index
    %166 = vector.load %arg14[%c0_118, %c0_119] : memref<128x16xf32, #tpu.memory_space<vmem>>, vector<128x16xf32>
    %cst_120 = arith.constant dense<0.000000e+00> : vector<2x16xf32>
    %167 = tpu.matmul %165, %166, %cst_120 {dimension_numbers = #tpu.dot_dimension_numbers<[1], [0], [0], [1], [0, 0, 1, 1], [], []>} : vector<2x128xf32>, vector<128x16xf32>, vector<2x16xf32> -> vector<2x16xf32>
    %168 = arith.addf %164, %167 : vector<2x16xf32>
    %c0_121 = arith.constant 0 : index
    %c0_122 = arith.constant 0 : index
    %169 = vector.load %arg15[%c0_121, %c0_122] : memref<1x16xf32, #tpu.memory_space<vmem>>, vector<1x16xf32>
    %170 = vector.broadcast %169 : vector<1x16xf32> to vector<2x16xf32>
    %171 = arith.addf %168, %170 : vector<2x16xf32>
    %c0_123 = arith.constant 0 : index
    %c0_124 = arith.constant 0 : index
    %172 = vector.load %arg16[%c0_123, %c0_124] : memref<2x16xf32, #tpu.memory_space<vmem>>, vector<2x16xf32>
    tpu.vector_store %arg16[%c0_123, %c0_124], %171 {strides = array<i32>} : memref<2x16xf32, #tpu.memory_space<vmem>>, vector<2x16xf32>,
    return
  }
}

</mosaic_0001>

<llo_original>
// kernel: cnn_with_rl_forward.1
$region0: #{cnn_with_rl_forward.1}
  #allocation0 [shape = 'u32[]', space=smem, size = 0x4, offset = 0x4, fixed_abs, tag = 'smem constant byte address 0x4 - core index']
  #allocation1 [shape = 'u32[144,128]{1,0:T(1,128)}', space=vmem, size = 0x12000, scoped, tag = 'internal scratch']
  %s0 = inlined_call_operand.vmem [shape: f32[384,256], index: 0, kind: input, shape index: {}]
  %s1 = inlined_call_operand.vmem [shape: f32[256,32], index: 1, kind: input, shape index: {}]
  %s2 = inlined_call_operand.vmem [shape: f32[1,32], index: 2, kind: input, shape index: {}]
  %s3 = inlined_call_operand.vmem [shape: f32[16,32,64], index: 3, kind: input, shape index: {}]
  %s4 = inlined_call_operand.vmem [shape: f32[1,64], index: 4, kind: input, shape index: {}]
  %s5 = inlined_call_operand.vmem [shape: f32[9,64,64], index: 5, kind: input, shape index: {}]
  %s6 = inlined_call_operand.vmem [shape: f32[1,64], index: 6, kind: input, shape index: {}]
  %s7 = inlined_call_operand.vmem [shape: f32[64,512], index: 7, kind: input, shape index: {}]
  %s8 = inlined_call_operand.vmem [shape: f32[1,512], index: 8, kind: input, shape index: {}]
  %s9 = inlined_call_operand.vmem [shape: f32[512,256], index: 9, kind: input, shape index: {}]
  %s10 = inlined_call_operand.vmem [shape: f32[1,256], index: 10, kind: input, shape index: {}]
  %s11 = inlined_call_operand.vmem [shape: f32[128,128], index: 11, kind: input, shape index: {}]
  %s12 = inlined_call_operand.vmem [shape: f32[1,128], index: 12, kind: input, shape index: {}]
  %s13 = inlined_call_operand.vmem [shape: f32[128,16], index: 13, kind: input, shape index: {}]
  %s14 = inlined_call_operand.vmem [shape: f32[128,16], index: 14, kind: input, shape index: {}]
  %s15 = inlined_call_operand.vmem [shape: f32[1,16], index: 15, kind: input, shape index: {}]
  %s16 = inlined_call_operand.vmem [shape: f32[2,16], index: 16, kind: output, shape index: {}]
  %s17 = sld [smem:[#allocation0]]
  $region74: #{cnn_with_rl_forward.1} parent=0
    _
  %s19 = ssub.s32 1, %s17
  %s20 = scalar_select 0, %s19, %s17
  // Predicated region
  $region2: #{cnn_with_rl_forward.1} parent=0 // pred_check
    _
  $region3: #{cnn_with_rl_forward.1} parent=0 // pred_check_branch
    %22 = sbr.rel (0) target = $region5
  $region4: #{cnn_with_rl_forward.1} parent=0 // pred_region
    _
  $region5: #{cnn_with_rl_forward.1} parent=0 // pred_fallthru
    _
  // Predicated region
  $region6: #{cnn_with_rl_forward.1} parent=0 // pred_check
    _
  $region7: #{cnn_with_rl_forward.1} parent=0 // pred_check_branch
    %24 = sbr.rel (0) target = $region9
  $region8: #{cnn_with_rl_forward.1} parent=0 // pred_region
    _
  $region9: #{cnn_with_rl_forward.1} parent=0 // pred_fallthru
    _
  // Predicated region
  $region10: #{cnn_with_rl_forward.1} parent=0 // pred_check
    _
  $region11: #{cnn_with_rl_forward.1} parent=0 // pred_check_branch
    %26 = sbr.rel (0) target = $region13
  $region12: #{cnn_with_rl_forward.1} parent=0 // pred_region
    _
  $region13: #{cnn_with_rl_forward.1} parent=0 // pred_fallthru
    _
  // Predicated region
  $region14: #{cnn_with_rl_forward.1} parent=0 // pred_check
    _
  $region15: #{cnn_with_rl_forward.1} parent=0 // pred_check_branch
    %28 = sbr.rel (0) target = $region17
  $region16: #{cnn_with_rl_forward.1} parent=0 // pred_region
    _
  $region17: #{cnn_with_rl_forward.1} parent=0 // pred_fallthru
    _
  // Predicated region
  $region18: #{cnn_with_rl_forward.1} parent=0 // pred_check
    _
  $region19: #{cnn_with_rl_forward.1} parent=0 // pred_check_branch
    %30 = sbr.rel (0) target = $region21
  $region20: #{cnn_with_rl_forward.1} parent=0 // pred_region
    _
  $region21: #{cnn_with_rl_forward.1} parent=0 // pred_fallthru
    _
  // Predicated region
  $region22: #{cnn_with_rl_forward.1} parent=0 // pred_check
    _
  $region23: #{cnn_with_rl_forward.1} parent=0 // pred_check_branch
    %32 = sbr.rel (0) target = $region25
  $region24: #{cnn_with_rl_forward.1} parent=0 // pred_region
    _
  $region25: #{cnn_with_rl_forward.1} parent=0 // pred_fallthru
    _
  // Predicated region
  $region26: #{cnn_with_rl_forward.1} parent=0 // pred_check
    _
  $region27: #{cnn_with_rl_forward.1} parent=0 // pred_check_branch
    %34 = sbr.rel (0) target = $region29
  $region28: #{cnn_with_rl_forward.1} parent=0 // pred_region
    _
  $region29: #{cnn_with_rl_forward.1} parent=0 // pred_fallthru
    _
  // Predicated region
  $region30: #{cnn_with_rl_forward.1} parent=0 // pred_check
    _
  $region31: #{cnn_with_rl_forward.1} parent=0 // pred_check_branch
    %36 = sbr.rel (0) target = $region33
  $region32: #{cnn_with_rl_forward.1} parent=0 // pred_region
    _
  $region33: #{cnn_with_rl_forward.1} parent=0 // pred_fallthru
    _
  // Predicated region
  $region34: #{cnn_with_rl_forward.1} parent=0 // pred_check
    _
  $region35: #{cnn_with_rl_forward.1} parent=0 // pred_check_branch
    %38 = sbr.rel (0) target = $region37
  $region36: #{cnn_with_rl_forward.1} parent=0 // pred_region
    _
  $region37: #{cnn_with_rl_forward.1} parent=0 // pred_fallthru
    _
  // Predicated region
  $region38: #{cnn_with_rl_forward.1} parent=0 // pred_check
    _
  $region39: #{cnn_with_rl_forward.1} parent=0 // pred_check_branch
    %40 = sbr.rel (0) target = $region41
  $region40: #{cnn_with_rl_forward.1} parent=0 // pred_region
    _
  $region41: #{cnn_with_rl_forward.1} parent=0 // pred_fallthru
    _
  // Predicated region
  $region42: #{cnn_with_rl_forward.1} parent=0 // pred_check
    _
  $region43: #{cnn_with_rl_forward.1} parent=0 // pred_check_branch
    %42 = sbr.rel (0) target = $region45
  $region44: #{cnn_with_rl_forward.1} parent=0 // pred_region
    _
  $region45: #{cnn_with_rl_forward.1} parent=0 // pred_fallthru
    _
  // Predicated region
  $region46: #{cnn_with_rl_forward.1} parent=0 // pred_check
    _
  $region47: #{cnn_with_rl_forward.1} parent=0 // pred_check_branch
    %44 = sbr.rel (0) target = $region49
  $region48: #{cnn_with_rl_forward.1} parent=0 // pred_region
    _
  $region49: #{cnn_with_rl_forward.1} parent=0 // pred_fallthru
    _
  // Predicated region
  $region50: #{cnn_with_rl_forward.1} parent=0 // pred_check
    _
  $region51: #{cnn_with_rl_forward.1} parent=0 // pred_check_branch
    %46 = sbr.rel (0) target = $region53
  $region52: #{cnn_with_rl_forward.1} parent=0 // pred_region
    _
  $region53: #{cnn_with_rl_forward.1} parent=0 // pred_fallthru
    _
  // Predicated region
  $region54: #{cnn_with_rl_forward.1} parent=0 // pred_check
    _
  $region55: #{cnn_with_rl_forward.1} parent=0 // pred_check_branch
    %48 = sbr.rel (0) target = $region57
  $region56: #{cnn_with_rl_forward.1} parent=0 // pred_region
    _
  $region57: #{cnn_with_rl_forward.1} parent=0 // pred_fallthru
    _
  // Predicated region
  $region58: #{cnn_with_rl_forward.1} parent=0 // pred_check
    _
  $region59: #{cnn_with_rl_forward.1} parent=0 // pred_check_branch
    %50 = sbr.rel (0) target = $region61
  $region60: #{cnn_with_rl_forward.1} parent=0 // pred_region
    _
  $region61: #{cnn_with_rl_forward.1} parent=0 // pred_fallthru
    _
  // Predicated region
  $region62: #{cnn_with_rl_forward.1} parent=0 // pred_check
    _
  $region63: #{cnn_with_rl_forward.1} parent=0 // pred_check_branch
    %52 = sbr.rel (0) target = $region65
  $region64: #{cnn_with_rl_forward.1} parent=0 // pred_region
    _
  $region65: #{cnn_with_rl_forward.1} parent=0 // pred_fallthru
    _
  %v53 = vld [vmem:[%s0] sm:$0xff]
  %v54 = vld [vmem:[%s0 + $0x8] sm:$0xff]
  %v55 = vld [vmem:[%s0 + $0x10] sm:$0xff]
  %v56 = vld [vmem:[%s0 + $0x18] sm:$0xff]
  %v57 = vld [vmem:[%s0 + $0x20] sm:$0xff]
  %v58 = vld [vmem:[%s0 + $0x28] sm:$0xff]
  %v59 = vld [vmem:[%s0 + $0x30] sm:$0xff]
  %v60 = vld [vmem:[%s0 + $0x38] sm:$0xff]
  %v61 = vld [vmem:[%s0 + $0x40] sm:$0xff]
  %v62 = vld [vmem:[%s0 + $0x48] sm:$0xff]
  %v63 = vld [vmem:[%s0 + $0x50] sm:$0xff]
  %v64 = vld [vmem:[%s0 + $0x58] sm:$0xff]
  %v65 = vld [vmem:[%s0 + $0x60] sm:$0xff]
  %v66 = vld [vmem:[%s0 + $0x68] sm:$0xff]
  %v67 = vld [vmem:[%s0 + $0x70] sm:$0xff]
  %v68 = vld [vmem:[%s0 + $0x78] sm:$0xff]
  %v69 = vld [vmem:[%s0 + $0x80] sm:$0xff]
  %v70 = vld [vmem:[%s0 + $0x88] sm:$0xff]
  %v71 = vld [vmem:[%s0 + $0x90] sm:$0xff]
  %v72 = vld [vmem:[%s0 + $0x98] sm:$0xff]
  %v73 = vld [vmem:[%s0 + $0xa0] sm:$0xff]
  %v74 = vld [vmem:[%s0 + $0xa8] sm:$0xff]
  %v75 = vld [vmem:[%s0 + $0xb0] sm:$0xff]
  %v76 = vld [vmem:[%s0 + $0xb8] sm:$0xff]
  %v77 = vld [vmem:[%s0 + $0xc0] sm:$0xff]
  %v78 = vld [vmem:[%s0 + $0xc8] sm:$0xff]
  %v79 = vld [vmem:[%s0 + $0xd0] sm:$0xff]
  %v80 = vld [vmem:[%s0 + $0xd8] sm:$0xff]
  %v81 = vld [vmem:[%s0 + $0xe0] sm:$0xff]
  %v82 = vld [vmem:[%s0 + $0xe8] sm:$0xff]
  %v83 = vld [vmem:[%s0 + $0xf0] sm:$0xff]
  %v84 = vld [vmem:[%s0 + $0xf8] sm:$0xff]
  %v85 = vld [vmem:[%s0 + $0x100] sm:$0xff]
  %v86 = vld [vmem:[%s0 + $0x108] sm:$0xff]
  %v87 = vld [vmem:[%s0 + $0x110] sm:$0xff]
  %v88 = vld [vmem:[%s0 + $0x118] sm:$0xff]
  %v89 = vld [vmem:[%s0 + $0x120] sm:$0xff]
  %v90 = vld [vmem:[%s0 + $0x128] sm:$0xff]
  %v91 = vld [vmem:[%s0 + $0x130] sm:$0xff]
  %v92 = vld [vmem:[%s0 + $0x138] sm:$0xff]
  %v93 = vld [vmem:[%s0 + $0x140] sm:$0xff]
  %v94 = vld [vmem:[%s0 + $0x148] sm:$0xff]
  %v95 = vld [vmem:[%s0 + $0x150] sm:$0xff]
  %v96 = vld [vmem:[%s0 + $0x158] sm:$0xff]
  %v97 = vld [vmem:[%s0 + $0x160] sm:$0xff]
  %v98 = vld [vmem:[%s0 + $0x168] sm:$0xff]
  %v99 = vld [vmem:[%s0 + $0x170] sm:$0xff]
  %v100 = vld [vmem:[%s0 + $0x178] sm:$0xff]
  %v101 = vld [vmem:[%s0 + $0x180] sm:$0xff]
  %v102 = vld [vmem:[%s0 + $0x188] sm:$0xff]
  %v103 = vld [vmem:[%s0 + $0x190] sm:$0xff]
  %v104 = vld [vmem:[%s0 + $0x198] sm:$0xff]
  %v105 = vld [vmem:[%s0 + $0x1a0] sm:$0xff]
  %v106 = vld [vmem:[%s0 + $0x1a8] sm:$0xff]
  %v107 = vld [vmem:[%s0 + $0x1b0] sm:$0xff]
  %v108 = vld [vmem:[%s0 + $0x1b8] sm:$0xff]
  %v109 = vld [vmem:[%s0 + $0x1c0] sm:$0xff]
  %v110 = vld [vmem:[%s0 + $0x1c8] sm:$0xff]
  %v111 = vld [vmem:[%s0 + $0x1d0] sm:$0xff]
  %v112 = vld [vmem:[%s0 + $0x1d8] sm:$0xff]
  %v113 = vld [vmem:[%s0 + $0x1e0] sm:$0xff]
  %v114 = vld [vmem:[%s0 + $0x1e8] sm:$0xff]
  %v115 = vld [vmem:[%s0 + $0x1f0] sm:$0xff]
  %v116 = vld [vmem:[%s0 + $0x1f8] sm:$0xff]
  %v117 = vld [vmem:[%s0 + $0x200] sm:$0xff]
  %v118 = vld [vmem:[%s0 + $0x208] sm:$0xff]
  %v119 = vld [vmem:[%s0 + $0x210] sm:$0xff]
  %v120 = vld [vmem:[%s0 + $0x218] sm:$0xff]
  %v121 = vld [vmem:[%s0 + $0x220] sm:$0xff]
  %v122 = vld [vmem:[%s0 + $0x228] sm:$0xff]
  %v123 = vld [vmem:[%s0 + $0x230] sm:$0xff]
  %v124 = vld [vmem:[%s0 + $0x238] sm:$0xff]
  %v125 = vld [vmem:[%s0 + $0x240] sm:$0xff]
  %v126 = vld [vmem:[%s0 + $0x248] sm:$0xff]
  %v127 = vld [vmem:[%s0 + $0x250] sm:$0xff]
  %v128 = vld [vmem:[%s0 + $0x258] sm:$0xff]
  %v129 = vld [vmem:[%s0 + $0x260] sm:$0xff]
  %v130 = vld [vmem:[%s0 + $0x268] sm:$0xff]
  %v131 = vld [vmem:[%s0 + $0x270] sm:$0xff]
  %v132 = vld [vmem:[%s0 + $0x278] sm:$0xff]
  %v133 = vld [vmem:[%s0 + $0x280] sm:$0xff]
  %v134 = vld [vmem:[%s0 + $0x288] sm:$0xff]
  %v135 = vld [vmem:[%s0 + $0x290] sm:$0xff]
  %v136 = vld [vmem:[%s0 + $0x298] sm:$0xff]
  %v137 = vld [vmem:[%s0 + $0x2a0] sm:$0xff]
  %v138 = vld [vmem:[%s0 + $0x2a8] sm:$0xff]
  %v139 = vld [vmem:[%s0 + $0x2b0] sm:$0xff]
  %v140 = vld [vmem:[%s0 + $0x2b8] sm:$0xff]
  %v141 = vld [vmem:[%s0 + $0x2c0] sm:$0xff]
  %v142 = vld [vmem:[%s0 + $0x2c8] sm:$0xff]
  %v143 = vld [vmem:[%s0 + $0x2d0] sm:$0xff]
  %v144 = vld [vmem:[%s0 + $0x2d8] sm:$0xff]
  %v145 = vld [vmem:[%s0 + $0x2e0] sm:$0xff]
  %v146 = vld [vmem:[%s0 + $0x2e8] sm:$0xff]
  %v147 = vld [vmem:[%s0 + $0x2f0] sm:$0xff]
  %v148 = vld [vmem:[%s0 + $0x2f8] sm:$0xff]
  %v149 = vld [vmem:[%s1] sm:$0xff]
  %v150 = vld [vmem:[%s1 + $0x8] sm:$0xff]
  %v151 = vld [vmem:[%s1 + $0x10] sm:$0xff]
  %v152 = vld [vmem:[%s1 + $0x18] sm:$0xff]
  %v153 = vld [vmem:[%s1 + $0x20] sm:$0xff]
  %v154 = vld [vmem:[%s1 + $0x28] sm:$0xff]
  %v155 = vld [vmem:[%s1 + $0x30] sm:$0xff]
  %v156 = vld [vmem:[%s1 + $0x38] sm:$0xff]
  %v157 = vld [vmem:[%s1 + $0x40] sm:$0xff]
  %v158 = vld [vmem:[%s1 + $0x48] sm:$0xff]
  %v159 = vld [vmem:[%s1 + $0x50] sm:$0xff]
  %v160 = vld [vmem:[%s1 + $0x58] sm:$0xff]
  %v161 = vld [vmem:[%s1 + $0x60] sm:$0xff]
  %v162 = vld [vmem:[%s1 + $0x68] sm:$0xff]
  %v163 = vld [vmem:[%s1 + $0x70] sm:$0xff]
  %v164 = vld [vmem:[%s1 + $0x78] sm:$0xff]
  %v165 = vld [vmem:[%s1 + $0x80] sm:$0xff]
  %v166 = vld [vmem:[%s1 + $0x88] sm:$0xff]
  %v167 = vld [vmem:[%s1 + $0x90] sm:$0xff]
  %v168 = vld [vmem:[%s1 + $0x98] sm:$0xff]
  %v169 = vld [vmem:[%s1 + $0xa0] sm:$0xff]
  %v170 = vld [vmem:[%s1 + $0xa8] sm:$0xff]
  %v171 = vld [vmem:[%s1 + $0xb0] sm:$0xff]
  %v172 = vld [vmem:[%s1 + $0xb8] sm:$0xff]
  %v173 = vld [vmem:[%s1 + $0xc0] sm:$0xff]
  %v174 = vld [vmem:[%s1 + $0xc8] sm:$0xff]
  %v175 = vld [vmem:[%s1 + $0xd0] sm:$0xff]
  %v176 = vld [vmem:[%s1 + $0xd8] sm:$0xff]
  %v177 = vld [vmem:[%s1 + $0xe0] sm:$0xff]
  %v178 = vld [vmem:[%s1 + $0xe8] sm:$0xff]
  %v179 = vld [vmem:[%s1 + $0xf0] sm:$0xff]
  %v180 = vld [vmem:[%s1 + $0xf8] sm:$0xff]
  %v181 = vld [vmem:[%s2] sm:$0x1]
  %v183 = vlaneseq
  %v184 = vshrl.u32 %v183, 7
  %v185 = vsub.s32 0, %v184
  %v186 = vrot.slane %v181, %v185
  %188 = vmatprep.subr.mxu0 0.0
  %189 = vmatpush1.msra.mxu0 %v149
  %190 = vmatprep.subr.mxu0 0.0
  %191 = vmatpush1.msra.mxu0 %v150
  %192 = vmatprep.subr.mxu0 0.0
  %193 = vmatpush1.msra.mxu0 %v151
  %194 = vmatprep.subr.mxu0 0.0
  %195 = vmatpush1.msra.mxu0 %v152
  %196 = vmatprep.subr.mxu0 0.0
  %197 = vmatpush1.msra.mxu0 %v153
  %198 = vmatprep.subr.mxu0 0.0
  %199 = vmatpush1.msra.mxu0 %v154
  %200 = vmatprep.subr.mxu0 0.0
  %201 = vmatpush1.msra.mxu0 %v155
  %202 = vmatprep.subr.mxu0 0.0
  %203 = vmatpush1.msra.mxu0 %v156
  %204 = vmatprep.subr.mxu0 0.0
  %205 = vmatpush1.msra.mxu0 %v157
  %206 = vmatprep.subr.mxu0 0.0
  %207 = vmatpush1.msra.mxu0 %v158
  %208 = vmatprep.subr.mxu0 0.0
  %209 = vmatpush1.msra.mxu0 %v159
  %210 = vmatprep.subr.mxu0 0.0
  %211 = vmatpush1.msra.mxu0 %v160
  %212 = vmatprep.subr.mxu0 0.0
  %213 = vmatpush1.msra.mxu0 %v161
  %214 = vmatprep.subr.mxu0 0.0
  %215 = vmatpush1.msra.mxu0 %v162
  %216 = vmatprep.subr.mxu0 0.0
  %217 = vmatpush1.msra.mxu0 %v163
  %218 = vmatprep.subr.mxu0 0.0
  %219 = vmatpush1.msra.mxu0 %v164
  %220 = vmatprep.subr.mxu0 0.0
  %221 = vmatpush1.msra.mxu0 %v165
  %222 = vmatprep.subr.mxu0 0.0
  %223 = vmatpush1.msra.mxu0 %v166
  %224 = vmatprep.subr.mxu0 0.0
  %225 = vmatpush1.msra.mxu0 %v167
  %226 = vmatprep.subr.mxu0 0.0
  %227 = vmatpush1.msra.mxu0 %v168
  %228 = vmatprep.subr.mxu0 0.0
  %229 = vmatpush1.msra.mxu0 %v169
  %230 = vmatprep.subr.mxu0 0.0
  %231 = vmatpush1.msra.mxu0 %v170
  %232 = vmatprep.subr.mxu0 0.0
  %233 = vmatpush1.msra.mxu0 %v171
  %234 = vmatprep.subr.mxu0 0.0
  %235 = vmatpush1.msra.mxu0 %v172
  %236 = vmatprep.subr.mxu0 0.0
  %237 = vmatpush1.msra.mxu0 %v173
  %238 = vmatprep.subr.mxu0 0.0
  %239 = vmatpush1.msra.mxu0 %v174
  %240 = vmatprep.subr.mxu0 0.0
  %241 = vmatpush1.msra.mxu0 %v175
  %242 = vmatprep.subr.mxu0 0.0
  %243 = vmatpush1.msra.mxu0 %v176
  %244 = vmatprep.subr.mxu0 0.0
  %245 = vmatpush1.msra.mxu0 %v177
  %246 = vmatprep.subr.mxu0 0.0
  %247 = vmatpush1.msra.mxu0 %v178
  %248 = vmatprep.subr.mxu0 0.0
  %249 = vmatpush1.msra.mxu0 %v179
  %250 = vmatprep.subr.mxu0 0.0
  %251 = vmatpush1.msra.mxu0 %v180
  %252 = vmatprep.mubr.f32.mxu0 %v54
  %253 = vmatmul.mubr.f32.gmra.mrb[0].mxu0 %v53
  %v254 = vpop.f32.mrb[0].mxu0
  %v255 = vadd.f32 %v186, %v254
  %v256 = vpop.f32.mrb[0].mxu0
  %257 = vmatprep.mubr.f32.mxu0 %v56
  %258 = vmatmul.mubr.f32.gmra.mrb[0].mxu0 %v55
  %v259 = vpop.f32.mrb[0].mxu0
  %v260 = vadd.f32 %v186, %v259
  %v261 = vpop.f32.mrb[0].mxu0
  %262 = vmatprep.mubr.f32.mxu0 %v58
  %263 = vmatmul.mubr.f32.gmra.mrb[0].mxu0 %v57
  %v264 = vpop.f32.mrb[0].mxu0
  %v265 = vadd.f32 %v186, %v264
  %v266 = vpop.f32.mrb[0].mxu0
  %267 = vmatprep.mubr.f32.mxu0 %v60
  %268 = vmatmul.mubr.f32.gmra.mrb[0].mxu0 %v59
  %v269 = vpop.f32.mrb[0].mxu0
  %v270 = vadd.f32 %v186, %v269
  %v271 = vpop.f32.mrb[0].mxu0
  %272 = vmatprep.mubr.f32.mxu0 %v62
  %273 = vmatmul.mubr.f32.gmra.mrb[0].mxu0 %v61
  %v274 = vpop.f32.mrb[0].mxu0
  %v275 = vadd.f32 %v186, %v274
  %v276 = vpop.f32.mrb[0].mxu0
  %277 = vmatprep.mubr.f32.mxu0 %v64
  %278 = vmatmul.mubr.f32.gmra.mrb[0].mxu0 %v63
  %v279 = vpop.f32.mrb[0].mxu0
  %v280 = vadd.f32 %v186, %v279
  %v281 = vpop.f32.mrb[0].mxu0
  %282 = vmatprep.mubr.f32.mxu0 %v66
  %283 = vmatmul.mubr.f32.gmra.mrb[0].mxu0 %v65
  %v284 = vpop.f32.mrb[0].mxu0
  %v285 = vadd.f32 %v186, %v284
  %v286 = vpop.f32.mrb[0].mxu0
  %287 = vmatprep.mubr.f32.mxu0 %v68
  %288 = vmatmul.mubr.f32.gmra.mrb[0].mxu0 %v67
  %v289 = vpop.f32.mrb[0].mxu0
  %v290 = vadd.f32 %v186, %v289
  %v291 = vpop.f32.mrb[0].mxu0
  %292 = vmatprep.mubr.f32.mxu0 %v70
  %293 = vmatmul.mubr.f32.gmra.mrb[0].mxu0 %v69
  %v294 = vpop.f32.mrb[0].mxu0
  %v295 = vadd.f32 %v186, %v294
  %v296 = vpop.f32.mrb[0].mxu0
  %297 = vmatprep.mubr.f32.mxu0 %v72
  %298 = vmatmul.mubr.f32.gmra.mrb[0].mxu0 %v71
  %v299 = vpop.f32.mrb[0].mxu0
  %v300 = vadd.f32 %v186, %v299
  %v301 = vpop.f32.mrb[0].mxu0
  %302 = vmatprep.mubr.f32.mxu0 %v74
  %303 = vmatmul.mubr.f32.gmra.mrb[0].mxu0 %v73
  %v304 = vpop.f32.mrb[0].mxu0
  %v305 = vadd.f32 %v186, %v304
  %v306 = vpop.f32.mrb[0].mxu0
  %307 = vmatprep.mubr.f32.mxu0 %v76
  %308 = vmatmul.mubr.f32.gmra.mrb[0].mxu0 %v75
  %v309 = vpop.f32.mrb[0].mxu0
  %v310 = vadd.f32 %v186, %v309
  %v311 = vpop.f32.mrb[0].mxu0
  %312 = vmatprep.mubr.f32.mxu0 %v78
  %313 = vmatmul.mubr.f32.gmra.mrb[0].mxu0 %v77
  %v314 = vpop.f32.mrb[0].mxu0
  %v315 = vadd.f32 %v186, %v314
  %v316 = vpop.f32.mrb[0].mxu0
  %317 = vmatprep.mubr.f32.mxu0 %v80
  %318 = vmatmul.mubr.f32.gmra.mrb[0].mxu0 %v79
  %v319 = vpop.f32.mrb[0].mxu0
  %v320 = vadd.f32 %v186, %v319
  %v321 = vpop.f32.mrb[0].mxu0
  %322 = vmatprep.mubr.f32.mxu0 %v82
  %323 = vmatmul.mubr.f32.gmra.mrb[0].mxu0 %v81
  %v324 = vpop.f32.mrb[0].mxu0
  %v325 = vadd.f32 %v186, %v324
  %v326 = vpop.f32.mrb[0].mxu0
  %327 = vmatprep.mubr.f32.mxu0 %v84
  %328 = vmatmul.mubr.f32.gmra.mrb[0].mxu0 %v83
  %v329 = vpop.f32.mrb[0].mxu0
  %v330 = vadd.f32 %v186, %v329
  %v331 = vpop.f32.mrb[0].mxu0
  %332 = vmatprep.mubr.f32.mxu0 %v86
  %333 = vmatmul.mubr.f32.gmra.mrb[0].mxu0 %v85
  %v334 = vpop.f32.mrb[0].mxu0
  %v335 = vadd.f32 %v186, %v334
  %v336 = vpop.f32.mrb[0].mxu0
  %337 = vmatprep.mubr.f32.mxu0 %v88
  %338 = vmatmul.mubr.f32.gmra.mrb[0].mxu0 %v87
  %v339 = vpop.f32.mrb[0].mxu0
  %v340 = vadd.f32 %v186, %v339
  %v341 = vpop.f32.mrb[0].mxu0
  %342 = vmatprep.mubr.f32.mxu0 %v90
  %343 = vmatmul.mubr.f32.gmra.mrb[0].mxu0 %v89
  %v344 = vpop.f32.mrb[0].mxu0
  %v345 = vadd.f32 %v186, %v344
  %v346 = vpop.f32.mrb[0].mxu0
  %347 = vmatprep.mubr.f32.mxu0 %v92
  %348 = vmatmul.mubr.f32.gmra.mrb[0].mxu0 %v91
  %v349 = vpop.f32.mrb[0].mxu0
  %v350 = vadd.f32 %v186, %v349
  %v351 = vpop.f32.mrb[0].mxu0
  %352 = vmatprep.mubr.f32.mxu0 %v94
  %353 = vmatmul.mubr.f32.gmra.mrb[0].mxu0 %v93
  %v354 = vpop.f32.mrb[0].mxu0
  %v355 = vadd.f32 %v186, %v354
  %v356 = vpop.f32.mrb[0].mxu0
  %357 = vmatprep.mubr.f32.mxu0 %v96
  %358 = vmatmul.mubr.f32.gmra.mrb[0].mxu0 %v95
  %v359 = vpop.f32.mrb[0].mxu0
  %v360 = vadd.f32 %v186, %v359
  %v361 = vpop.f32.mrb[0].mxu0
  %362 = vmatprep.mubr.f32.mxu0 %v98
  %363 = vmatmul.mubr.f32.gmra.mrb[0].mxu0 %v97
  %v364 = vpop.f32.mrb[0].mxu0
  %v365 = vadd.f32 %v186, %v364
  %v366 = vpop.f32.mrb[0].mxu0
  %367 = vmatprep.mubr.f32.mxu0 %v100
  %368 = vmatmul.mubr.f32.gmra.mrb[0].mxu0 %v99
  %v369 = vpop.f32.mrb[0].mxu0
  %v370 = vadd.f32 %v186, %v369
  %v371 = vpop.f32.mrb[0].mxu0
  %372 = vmatprep.mubr.f32.mxu0 %v102
  %373 = vmatmul.mubr.f32.gmra.mrb[0].mxu0 %v101
  %v374 = vpop.f32.mrb[0].mxu0
  %v375 = vadd.f32 %v186, %v374
  %v376 = vpop.f32.mrb[0].mxu0
  %377 = vmatprep.mubr.f32.mxu0 %v104
  %378 = vmatmul.mubr.f32.gmra.mrb[0].mxu0 %v103
  %v379 = vpop.f32.mrb[0].mxu0
  %v380 = vadd.f32 %v186, %v379
  %v381 = vpop.f32.mrb[0].mxu0
  %382 = vmatprep.mubr.f32.mxu0 %v106
  %383 = vmatmul.mubr.f32.gmra.mrb[0].mxu0 %v105
  %v384 = vpop.f32.mrb[0].mxu0
  %v385 = vadd.f32 %v186, %v384
  %v386 = vpop.f32.mrb[0].mxu0
  %387 = vmatprep.mubr.f32.mxu0 %v108
  %388 = vmatmul.mubr.f32.gmra.mrb[0].mxu0 %v107
  %v389 = vpop.f32.mrb[0].mxu0
  %v390 = vadd.f32 %v186, %v389
  %v391 = vpop.f32.mrb[0].mxu0
  %392 = vmatprep.mubr.f32.mxu0 %v110
  %393 = vmatmul.mubr.f32.gmra.mrb[0].mxu0 %v109
  %v394 = vpop.f32.mrb[0].mxu0
  %v395 = vadd.f32 %v186, %v394
  %v396 = vpop.f32.mrb[0].mxu0
  %397 = vmatprep.mubr.f32.mxu0 %v112
  %398 = vmatmul.mubr.f32.gmra.mrb[0].mxu0 %v111
  %v399 = vpop.f32.mrb[0].mxu0
  %v400 = vadd.f32 %v186, %v399
  %v401 = vpop.f32.mrb[0].mxu0
  %402 = vmatprep.mubr.f32.mxu0 %v114
  %403 = vmatmul.mubr.f32.gmra.mrb[0].mxu0 %v113
  %v404 = vpop.f32.mrb[0].mxu0
  %v405 = vadd.f32 %v186, %v404
  %v406 = vpop.f32.mrb[0].mxu0
  %407 = vmatprep.mubr.f32.mxu0 %v116
  %408 = vmatmul.mubr.f32.gmra.mrb[0].mxu0 %v115
  %v409 = vpop.f32.mrb[0].mxu0
  %v410 = vadd.f32 %v186, %v409
  %v411 = vpop.f32.mrb[0].mxu0
  %412 = vmatprep.mubr.f32.mxu0 %v118
  %413 = vmatmul.mubr.f32.gmra.mrb[0].mxu0 %v117
  %v414 = vpop.f32.mrb[0].mxu0
  %v415 = vadd.f32 %v186, %v414
  %v416 = vpop.f32.mrb[0].mxu0
  %417 = vmatprep.mubr.f32.mxu0 %v120
  %418 = vmatmul.mubr.f32.gmra.mrb[0].mxu0 %v119
  %v419 = vpop.f32.mrb[0].mxu0
  %v420 = vadd.f32 %v186, %v419
  %v421 = vpop.f32.mrb[0].mxu0
  %422 = vmatprep.mubr.f32.mxu0 %v122
  %423 = vmatmul.mubr.f32.gmra.mrb[0].mxu0 %v121
  %v424 = vpop.f32.mrb[0].mxu0
  %v425 = vadd.f32 %v186, %v424
  %v426 = vpop.f32.mrb[0].mxu0
  %427 = vmatprep.mubr.f32.mxu0 %v124
  %428 = vmatmul.mubr.f32.gmra.mrb[0].mxu0 %v123
  %v429 = vpop.f32.mrb[0].mxu0
  %v430 = vadd.f32 %v186, %v429
  %v431 = vpop.f32.mrb[0].mxu0
  %432 = vmatprep.mubr.f32.mxu0 %v126
  %433 = vmatmul.mubr.f32.gmra.mrb[0].mxu0 %v125
  %v434 = vpop.f32.mrb[0].mxu0
  %v435 = vadd.f32 %v186, %v434
  %v436 = vpop.f32.mrb[0].mxu0
  %437 = vmatprep.mubr.f32.mxu0 %v128
  %438 = vmatmul.mubr.f32.gmra.mrb[0].mxu0 %v127
  %v439 = vpop.f32.mrb[0].mxu0
  %v440 = vadd.f32 %v186, %v439
  %v441 = vpop.f32.mrb[0].mxu0
  %442 = vmatprep.mubr.f32.mxu0 %v130
  %443 = vmatmul.mubr.f32.gmra.mrb[0].mxu0 %v129
  %v444 = vpop.f32.mrb[0].mxu0
  %v445 = vadd.f32 %v186, %v444
  %v446 = vpop.f32.mrb[0].mxu0
  %447 = vmatprep.mubr.f32.mxu0 %v132
  %448 = vmatmul.mubr.f32.gmra.mrb[0].mxu0 %v131
  %v449 = vpop.f32.mrb[0].mxu0
  %v450 = vadd.f32 %v186, %v449
  %v451 = vpop.f32.mrb[0].mxu0
  %452 = vmatprep.mubr.f32.mxu0 %v134
  %453 = vmatmul.mubr.f32.gmra.mrb[0].mxu0 %v133
  %v454 = vpop.f32.mrb[0].mxu0
  %v455 = vadd.f32 %v186, %v454
  %v456 = vpop.f32.mrb[0].mxu0
  %457 = vmatprep.mubr.f32.mxu0 %v136
  %458 = vmatmul.mubr.f32.gmra.mrb[0].mxu0 %v135
  %v459 = vpop.f32.mrb[0].mxu0
  %v460 = vadd.f32 %v186, %v459
  %v461 = vpop.f32.mrb[0].mxu0
  %462 = vmatprep.mubr.f32.mxu0 %v138
  %463 = vmatmul.mubr.f32.gmra.mrb[0].mxu0 %v137
  %v464 = vpop.f32.mrb[0].mxu0
  %v465 = vadd.f32 %v186, %v464
  %v466 = vpop.f32.mrb[0].mxu0
  %467 = vmatprep.mubr.f32.mxu0 %v140
  %468 = vmatmul.mubr.f32.gmra.mrb[0].mxu0 %v139
  %v469 = vpop.f32.mrb[0].mxu0
  %v470 = vadd.f32 %v186, %v469
  %v471 = vpop.f32.mrb[0].mxu0
  %472 = vmatprep.mubr.f32.mxu0 %v142
  %473 = vmatmul.mubr.f32.gmra.mrb[0].mxu0 %v141
  %v474 = vpop.f32.mrb[0].mxu0
  %v475 = vadd.f32 %v186, %v474
  %v476 = vpop.f32.mrb[0].mxu0
  %477 = vmatprep.mubr.f32.mxu0 %v144
  %478 = vmatmul.mubr.f32.gmra.mrb[0].mxu0 %v143
  %v479 = vpop.f32.mrb[0].mxu0
  %v480 = vadd.f32 %v186, %v479
  %v481 = vpop.f32.mrb[0].mxu0
  %482 = vmatprep.mubr.f32.mxu0 %v146
  %483 = vmatmul.mubr.f32.gmra.mrb[0].mxu0 %v145
  %v484 = vpop.f32.mrb[0].mxu0
  %v485 = vadd.f32 %v186, %v484
  %v486 = vpop.f32.mrb[0].mxu0
  %487 = vmatprep.mubr.f32.mxu0 %v148
  %488 = vmatmul.mubr.f32.gmra.mrb[0].mxu0 %v147
  %v489 = vpop.f32.mrb[0].mxu0
  %v490 = vadd.f32 %v186, %v489
  %v491 = vpop.f32.mrb[0].mxu0
  %492 = vdwg.mxu0
  %v493 = vmax.f32 %v255, 0.0
  %v494 = vmax.f32 %v260, 0.0
  %v495 = vmax.f32 %v265, 0.0
  %v496 = vmax.f32 %v270, 0.0
  %v497 = vmax.f32 %v275, 0.0
  %v498 = vmax.f32 %v280, 0.0
  %v499 = vmax.f32 %v285, 0.0
  %v500 = vmax.f32 %v290, 0.0
  %v501 = vmax.f32 %v295, 0.0
  %v502 = vmax.f32 %v300, 0.0
  %v503 = vmax.f32 %v305, 0.0
  %v504 = vmax.f32 %v310, 0.0
  %v505 = vmax.f32 %v315, 0.0
  %v506 = vmax.f32 %v320, 0.0
  %v507 = vmax.f32 %v325, 0.0
  %v508 = vmax.f32 %v330, 0.0
  %v509 = vmax.f32 %v335, 0.0
  %v510 = vmax.f32 %v340, 0.0
  %v511 = vmax.f32 %v345, 0.0
  %v512 = vmax.f32 %v350, 0.0
  %v513 = vmax.f32 %v355, 0.0
  %v514 = vmax.f32 %v360, 0.0
  %v515 = vmax.f32 %v365, 0.0
  %v516 = vmax.f32 %v370, 0.0
  %v517 = vmax.f32 %v375, 0.0
  %v518 = vmax.f32 %v380, 0.0
  %v519 = vmax.f32 %v385, 0.0
  %v520 = vmax.f32 %v390, 0.0
  %v521 = vmax.f32 %v395, 0.0
  %v522 = vmax.f32 %v400, 0.0
  %v523 = vmax.f32 %v405, 0.0
  %v524 = vmax.f32 %v410, 0.0
  %v525 = vmax.f32 %v415, 0.0
  %v526 = vmax.f32 %v420, 0.0
  %v527 = vmax.f32 %v425, 0.0
  %v528 = vmax.f32 %v430, 0.0
  %v529 = vmax.f32 %v435, 0.0
  %v530 = vmax.f32 %v440, 0.0
  %v531 = vmax.f32 %v445, 0.0
  %v532 = vmax.f32 %v450, 0.0
  %v533 = vmax.f32 %v455, 0.0
  %v534 = vmax.f32 %v460, 0.0
  %v535 = vmax.f32 %v465, 0.0
  %v536 = vmax.f32 %v470, 0.0
  %v537 = vmax.f32 %v475, 0.0
  %v538 = vmax.f32 %v480, 0.0
  %v539 = vmax.f32 %v485, 0.0
  %v540 = vmax.f32 %v490, 0.0
  %v541 = vld [vmem:[%s3] sm:$0xff]
  %v542 = vld [vmem:[%s3 + $0x8] sm:$0xff]
  %v543 = vld [vmem:[%s3 + $0x10] sm:$0xff]
  %v544 = vld [vmem:[%s3 + $0x18] sm:$0xff]
  %s545 = scalar_lea.vmem %s3, 32
  %v546 = vld [vmem:[%s545] sm:$0xff]
  %v547 = vld [vmem:[%s545 + $0x8] sm:$0xff]
  %v548 = vld [vmem:[%s545 + $0x10] sm:$0xff]
  %v549 = vld [vmem:[%s545 + $0x18] sm:$0xff]
  %vm550 = vcmask 261120
  %v552 = vsel %vm550, %v496, 0
  %v555 = vsel %vm550, %v497, 0
  %v558 = vsel %vm550, %v498, 0
  %560 = vmatprep.subr.mxu0 0.0
  %561 = vmatpush1.msra.mxu0 %v546
  %562 = vmatprep.subr.mxu0 0.0
  %563 = vmatpush1.msra.mxu0 %v547
  %564 = vmatprep.subr.mxu0 0.0
  %565 = vmatpush1.msra.mxu0 %v548
  %566 = vmatprep.subr.mxu0 0.0
  %567 = vmatpush1.msra.mxu0 %v549
  %568 = vmatprep.subr.mxu0 0.0
  %569 = vmatpush1.msra.mxu0 0.0
  %570 = vmatprep.subr.mxu0 0.0
  %571 = vmatpush1.msra.mxu0 0.0
  %572 = vmatprep.subr.mxu0 0.0
  %573 = vmatpush1.msra.mxu0 0.0
  %574 = vmatprep.subr.mxu0 0.0
  %575 = vmatpush1.msra.mxu0 0.0
  %576 = vmatprep.subr.mxu0 0.0
  %577 = vmatpush1.msra.mxu0 0.0
  %578 = vmatprep.subr.mxu0 0.0
  %579 = vmatpush1.msra.mxu0 0.0
  %580 = vmatprep.subr.mxu0 0.0
  %581 = vmatpush1.msra.mxu0 0.0
  %582 = vmatprep.subr.mxu0 0.0
  %583 = vmatpush1.msra.mxu0 0.0
  %584 = vmatprep.subr.mxu0 0.0
  %585 = vmatpush1.msra.mxu0 0.0
  %586 = vmatprep.subr.mxu0 0.0
  %587 = vmatpush1.msra.mxu0 0.0
  %588 = vmatprep.subr.mxu0 0.0
  %589 = vmatpush1.msra.mxu0 0.0
  %590 = vmatprep.subr.mxu0 0.0
  %591 = vmatpush1.msra.mxu0 0.0
  %592 = vmatprep.subr.mxu0 0.0
  %593 = vmatpush1.msra.mxu0 0.0
  %594 = vmatprep.subr.mxu0 0.0
  %595 = vmatpush1.msra.mxu0 0.0
  %596 = vmatprep.subr.mxu0 0.0
  %597 = vmatpush1.msra.mxu0 0.0
  %598 = vmatprep.subr.mxu0 0.0
  %599 = vmatpush1.msra.mxu0 0.0
  %600 = vmatprep.subr.mxu0 0.0
  %601 = vmatpush1.msra.mxu0 0.0
  %602 = vmatprep.subr.mxu0 0.0
  %603 = vmatpush1.msra.mxu0 0.0
  %604 = vmatprep.subr.mxu0 0.0
  %605 = vmatpush1.msra.mxu0 0.0
  %606 = vmatprep.subr.mxu0 0.0
  %607 = vmatpush1.msra.mxu0 0.0
  %608 = vmatprep.subr.mxu0 0.0
  %609 = vmatpush1.msra.mxu0 0.0
  %610 = vmatprep.subr.mxu0 0.0
  %611 = vmatpush1.msra.mxu0 0.0
  %612 = vmatprep.subr.mxu0 0.0
  %613 = vmatpush1.msra.mxu0 0.0
  %614 = vmatprep.subr.mxu0 0.0
  %615 = vmatpush1.msra.mxu0 0.0
  %616 = vmatprep.subr.mxu0 0.0
  %617 = vmatpush1.msra.mxu0 0.0
  %618 = vmatprep.subr.mxu0 0.0
  %619 = vmatpush1.msra.mxu0 0.0
  %620 = vmatprep.subr.mxu0 0.0
  %621 = vmatpush1.msra.mxu0 0.0
  %622 = vmatprep.subr.mxu0 0.0
  %623 = vmatpush1.msra.mxu0 0.0
  %624 = vmatprep.mubr.f32.mxu0 0.0
  %625 = vmatmul.mubr.f32.gmra.mrb[0].mxu0 %v552
  %v626 = vpop.f32.mrb[0].mxu0
  %v627 = vadd.f32 0.0, %v626
  %v628 = vpop.f32.mrb[0].mxu0
  %629 = vmatprep.mubr.f32.mxu0 0.0
  %630 = vmatmul.mubr.f32.gmra.mrb[0].mxu0 %v555
  %v631 = vpop.f32.mrb[0].mxu0
  %v632 = vadd.f32 0.0, %v631
  %v633 = vpop.f32.mrb[0].mxu0
  %634 = vmatprep.mubr.f32.mxu0 0.0
  %635 = vmatmul.mubr.f32.gmra.mrb[0].mxu0 %v558
  %v636 = vpop.f32.mrb[0].mxu0
  %v637 = vadd.f32 0.0, %v636
  %v638 = vpop.f32.mrb[0].mxu0
  %639 = vdwg.mxu0
  %s640 = scalar_lea.vmem %s3, 64
  %v641 = vld [vmem:[%s640] sm:$0xff]
  %v642 = vld [vmem:[%s640 + $0x8] sm:$0xff]
  %v643 = vld [vmem:[%s640 + $0x10] sm:$0xff]
  %v644 = vld [vmem:[%s640 + $0x18] sm:$0xff]
  %s645 = scalar_lea.vmem %s3, 96
  %v646 = vld [vmem:[%s645] sm:$0xff]
  %v647 = vld [vmem:[%s645 + $0x8] sm:$0xff]
  %v648 = vld [vmem:[%s645 + $0x10] sm:$0xff]
  %v649 = vld [vmem:[%s645 + $0x18] sm:$0xff]
  %v651 = vsel %vm550, %v502, 0
  %v654 = vsel %vm550, %v503, 0
  %v657 = vsel %vm550, %v504, 0
  %659 = vmatprep.subr.mxu0 0.0
  %660 = vmatpush1.msra.mxu0 %v646
  %661 = vmatprep.subr.mxu0 0.0
  %662 = vmatpush1.msra.mxu0 %v647
  %663 = vmatprep.subr.mxu0 0.0
  %664 = vmatpush1.msra.mxu0 %v648
  %665 = vmatprep.subr.mxu0 0.0
  %666 = vmatpush1.msra.mxu0 %v649
  %667 = vmatprep.subr.mxu0 0.0
  %668 = vmatpush1.msra.mxu0 0.0
  %669 = vmatprep.subr.mxu0 0.0
  %670 = vmatpush1.msra.mxu0 0.0
  %671 = vmatprep.subr.mxu0 0.0
  %672 = vmatpush1.msra.mxu0 0.0
  %673 = vmatprep.subr.mxu0 0.0
  %674 = vmatpush1.msra.mxu0 0.0
  %675 = vmatprep.subr.mxu0 0.0
  %676 = vmatpush1.msra.mxu0 0.0
  %677 = vmatprep.subr.mxu0 0.0
  %678 = vmatpush1.msra.mxu0 0.0
  %679 = vmatprep.subr.mxu0 0.0
  %680 = vmatpush1.msra.mxu0 0.0
  %681 = vmatprep.subr.mxu0 0.0
  %682 = vmatpush1.msra.mxu0 0.0
  %683 = vmatprep.subr.mxu0 0.0
  %684 = vmatpush1.msra.mxu0 0.0
  %685 = vmatprep.subr.mxu0 0.0
  %686 = vmatpush1.msra.mxu0 0.0
  %687 = vmatprep.subr.mxu0 0.0
  %688 = vmatpush1.msra.mxu0 0.0
  %689 = vmatprep.subr.mxu0 0.0
  %690 = vmatpush1.msra.mxu0 0.0
  %691 = vmatprep.subr.mxu0 0.0
  %692 = vmatpush1.msra.mxu0 0.0
  %693 = vmatprep.subr.mxu0 0.0
  %694 = vmatpush1.msra.mxu0 0.0
  %695 = vmatprep.subr.mxu0 0.0
  %696 = vmatpush1.msra.mxu0 0.0
  %697 = vmatprep.subr.mxu0 0.0
  %698 = vmatpush1.msra.mxu0 0.0
  %699 = vmatprep.subr.mxu0 0.0
  %700 = vmatpush1.msra.mxu0 0.0
  %701 = vmatprep.subr.mxu0 0.0
  %702 = vmatpush1.msra.mxu0 0.0
  %703 = vmatprep.subr.mxu0 0.0
  %704 = vmatpush1.msra.mxu0 0.0
  %705 = vmatprep.subr.mxu0 0.0
  %706 = vmatpush1.msra.mxu0 0.0
  %707 = vmatprep.subr.mxu0 0.0
  %708 = vmatpush1.msra.mxu0 0.0
  %709 = vmatprep.subr.mxu0 0.0
  %710 = vmatpush1.msra.mxu0 0.0
  %711 = vmatprep.subr.mxu0 0.0
  %712 = vmatpush1.msra.mxu0 0.0
  %713 = vmatprep.subr.mxu0 0.0
  %714 = vmatpush1.msra.mxu0 0.0
  %715 = vmatprep.subr.mxu0 0.0
  %716 = vmatpush1.msra.mxu0 0.0
  %717 = vmatprep.subr.mxu0 0.0
  %718 = vmatpush1.msra.mxu0 0.0
  %719 = vmatprep.subr.mxu0 0.0
  %720 = vmatpush1.msra.mxu0 0.0
  %721 = vmatprep.subr.mxu0 0.0
  %722 = vmatpush1.msra.mxu0 0.0
  %723 = vmatprep.mubr.f32.mxu0 0.0
  %724 = vmatmul.mubr.f32.gmra.mrb[0].mxu0 %v651
  %v725 = vpop.f32.mrb[0].mxu0
  %v726 = vadd.f32 0.0, %v725
  %v727 = vpop.f32.mrb[0].mxu0
  %728 = vmatprep.mubr.f32.mxu0 0.0
  %729 = vmatmul.mubr.f32.gmra.mrb[0].mxu0 %v654
  %v730 = vpop.f32.mrb[0].mxu0
  %v731 = vadd.f32 0.0, %v730
  %v732 = vpop.f32.mrb[0].mxu0
  %733 = vmatprep.mubr.f32.mxu0 0.0
  %734 = vmatmul.mubr.f32.gmra.mrb[0].mxu0 %v657
  %v735 = vpop.f32.mrb[0].mxu0
  %v736 = vadd.f32 0.0, %v735
  %v737 = vpop.f32.mrb[0].mxu0
  %738 = vdwg.mxu0
  %s739 = scalar_lea.vmem %s3, 128
  %v740 = vld [vmem:[%s739] sm:$0xff]
  %v741 = vld [vmem:[%s739 + $0x8] sm:$0xff]
  %v742 = vld [vmem:[%s739 + $0x10] sm:$0xff]
  %v743 = vld [vmem:[%s739 + $0x18] sm:$0xff]
  %s744 = scalar_lea.vmem %s3, 160
  %v745 = vld [vmem:[%s744] sm:$0xff]
  %v746 = vld [vmem:[%s744 + $0x8] sm:$0xff]
  %v747 = vld [vmem:[%s744 + $0x10] sm:$0xff]
  %v748 = vld [vmem:[%s744 + $0x18] sm:$0xff]
  %v750 = vsel %vm550, %v508, 0
  %v753 = vsel %vm550, %v509, 0
  %v756 = vsel %vm550, %v510, 0
  %758 = vmatprep.subr.mxu0 0.0
  %759 = vmatpush1.msra.mxu0 %v745
  %760 = vmatprep.subr.mxu0 0.0
  %761 = vmatpush1.msra.mxu0 %v746
  %762 = vmatprep.subr.mxu0 0.0
  %763 = vmatpush1.msra.mxu0 %v747
  %764 = vmatprep.subr.mxu0 0.0
  %765 = vmatpush1.msra.mxu0 %v748
  %766 = vmatprep.subr.mxu0 0.0
  %767 = vmatpush1.msra.mxu0 0.0
  %768 = vmatprep.subr.mxu0 0.0
  %769 = vmatpush1.msra.mxu0 0.0
  %770 = vmatprep.subr.mxu0 0.0
  %771 = vmatpush1.msra.mxu0 0.0
  %772 = vmatprep.subr.mxu0 0.0
  %773 = vmatpush1.msra.mxu0 0.0
  %774 = vmatprep.subr.mxu0 0.0
  %775 = vmatpush1.msra.mxu0 0.0
  %776 = vmatprep.subr.mxu0 0.0
  %777 = vmatpush1.msra.mxu0 0.0
  %778 = vmatprep.subr.mxu0 0.0
  %779 = vmatpush1.msra.mxu0 0.0
  %780 = vmatprep.subr.mxu0 0.0
  %781 = vmatpush1.msra.mxu0 0.0
  %782 = vmatprep.subr.mxu0 0.0
  %783 = vmatpush1.msra.mxu0 0.0
  %784 = vmatprep.subr.mxu0 0.0
  %785 = vmatpush1.msra.mxu0 0.0
  %786 = vmatprep.subr.mxu0 0.0
  %787 = vmatpush1.msra.mxu0 0.0
  %788 = vmatprep.subr.mxu0 0.0
  %789 = vmatpush1.msra.mxu0 0.0
  %790 = vmatprep.subr.mxu0 0.0
  %791 = vmatpush1.msra.mxu0 0.0
  %792 = vmatprep.subr.mxu0 0.0
  %793 = vmatpush1.msra.mxu0 0.0
  %794 = vmatprep.subr.mxu0 0.0
  %795 = vmatpush1.msra.mxu0 0.0
  %796 = vmatprep.subr.mxu0 0.0
  %797 = vmatpush1.msra.mxu0 0.0
  %798 = vmatprep.subr.mxu0 0.0
  %799 = vmatpush1.msra.mxu0 0.0
  %800 = vmatprep.subr.mxu0 0.0
  %801 = vmatpush1.msra.mxu0 0.0
  %802 = vmatprep.subr.mxu0 0.0
  %803 = vmatpush1.msra.mxu0 0.0
  %804 = vmatprep.subr.mxu0 0.0
  %805 = vmatpush1.msra.mxu0 0.0
  %806 = vmatprep.subr.mxu0 0.0
  %807 = vmatpush1.msra.mxu0 0.0
  %808 = vmatprep.subr.mxu0 0.0
  %809 = vmatpush1.msra.mxu0 0.0
  %810 = vmatprep.subr.mxu0 0.0
  %811 = vmatpush1.msra.mxu0 0.0
  %812 = vmatprep.subr.mxu0 0.0
  %813 = vmatpush1.msra.mxu0 0.0
  %814 = vmatprep.subr.mxu0 0.0
  %815 = vmatpush1.msra.mxu0 0.0
  %816 = vmatprep.subr.mxu0 0.0
  %817 = vmatpush1.msra.mxu0 0.0
  %818 = vmatprep.subr.mxu0 0.0
  %819 = vmatpush1.msra.mxu0 0.0
  %820 = vmatprep.subr.mxu0 0.0
  %821 = vmatpush1.msra.mxu0 0.0
  %822 = vmatprep.mubr.f32.mxu0 0.0
  %823 = vmatmul.mubr.f32.gmra.mrb[0].mxu0 %v750
  %v824 = vpop.f32.mrb[0].mxu0
  %v825 = vadd.f32 0.0, %v824
  %v826 = vpop.f32.mrb[0].mxu0
  %827 = vmatprep.mubr.f32.mxu0 0.0
  %828 = vmatmul.mubr.f32.gmra.mrb[0].mxu0 %v753
  %v829 = vpop.f32.mrb[0].mxu0
  %v830 = vadd.f32 0.0, %v829
  %v831 = vpop.f32.mrb[0].mxu0
  %832 = vmatprep.mubr.f32.mxu0 0.0
  %833 = vmatmul.mubr.f32.gmra.mrb[0].mxu0 %v756
  %v834 = vpop.f32.mrb[0].mxu0
  %v835 = vadd.f32 0.0, %v834
  %v836 = vpop.f32.mrb[0].mxu0
  %837 = vdwg.mxu0
  %s838 = scalar_lea.vmem %s3, 192
  %v839 = vld [vmem:[%s838] sm:$0xff]
  %v840 = vld [vmem:[%s838 + $0x8] sm:$0xff]
  %v841 = vld [vmem:[%s838 + $0x10] sm:$0xff]
  %v842 = vld [vmem:[%s838 + $0x18] sm:$0xff]
  %s843 = scalar_lea.vmem %s3, 224
  %v844 = vld [vmem:[%s843] sm:$0xff]
  %v845 = vld [vmem:[%s843 + $0x8] sm:$0xff]
  %v846 = vld [vmem:[%s843 + $0x10] sm:$0xff]
  %v847 = vld [vmem:[%s843 + $0x18] sm:$0xff]
  %v849 = vsel %vm550, %v514, 0
  %v852 = vsel %vm550, %v515, 0
  %v855 = vsel %vm550, %v516, 0
  %857 = vmatprep.subr.mxu0 0.0
  %858 = vmatpush1.msra.mxu0 %v844
  %859 = vmatprep.subr.mxu0 0.0
  %860 = vmatpush1.msra.mxu0 %v845
  %861 = vmatprep.subr.mxu0 0.0
  %862 = vmatpush1.msra.mxu0 %v846
  %863 = vmatprep.subr.mxu0 0.0
  %864 = vmatpush1.msra.mxu0 %v847
  %865 = vmatprep.subr.mxu0 0.0
  %866 = vmatpush1.msra.mxu0 0.0
  %867 = vmatprep.subr.mxu0 0.0
  %868 = vmatpush1.msra.mxu0 0.0
  %869 = vmatprep.subr.mxu0 0.0
  %870 = vmatpush1.msra.mxu0 0.0
  %871 = vmatprep.subr.mxu0 0.0
  %872 = vmatpush1.msra.mxu0 0.0
  %873 = vmatprep.subr.mxu0 0.0
  %874 = vmatpush1.msra.mxu0 0.0
  %875 = vmatprep.subr.mxu0 0.0
  %876 = vmatpush1.msra.mxu0 0.0
  %877 = vmatprep.subr.mxu0 0.0
  %878 = vmatpush1.msra.mxu0 0.0
  %879 = vmatprep.subr.mxu0 0.0
  %880 = vmatpush1.msra.mxu0 0.0
  %881 = vmatprep.subr.mxu0 0.0
  %882 = vmatpush1.msra.mxu0 0.0
  %883 = vmatprep.subr.mxu0 0.0
  %884 = vmatpush1.msra.mxu0 0.0
  %885 = vmatprep.subr.mxu0 0.0
  %886 = vmatpush1.msra.mxu0 0.0
  %887 = vmatprep.subr.mxu0 0.0
  %888 = vmatpush1.msra.mxu0 0.0
  %889 = vmatprep.subr.mxu0 0.0
  %890 = vmatpush1.msra.mxu0 0.0
  %891 = vmatprep.subr.mxu0 0.0
  %892 = vmatpush1.msra.mxu0 0.0
  %893 = vmatprep.subr.mxu0 0.0
  %894 = vmatpush1.msra.mxu0 0.0
  %895 = vmatprep.subr.mxu0 0.0
  %896 = vmatpush1.msra.mxu0 0.0
  %897 = vmatprep.subr.mxu0 0.0
  %898 = vmatpush1.msra.mxu0 0.0
  %899 = vmatprep.subr.mxu0 0.0
  %900 = vmatpush1.msra.mxu0 0.0
  %901 = vmatprep.subr.mxu0 0.0
  %902 = vmatpush1.msra.mxu0 0.0
  %903 = vmatprep.subr.mxu0 0.0
  %904 = vmatpush1.msra.mxu0 0.0
  %905 = vmatprep.subr.mxu0 0.0
  %906 = vmatpush1.msra.mxu0 0.0
  %907 = vmatprep.subr.mxu0 0.0
  %908 = vmatpush1.msra.mxu0 0.0
  %909 = vmatprep.subr.mxu0 0.0
  %910 = vmatpush1.msra.mxu0 0.0
  %911 = vmatprep.subr.mxu0 0.0
  %912 = vmatpush1.msra.mxu0 0.0
  %913 = vmatprep.subr.mxu0 0.0
  %914 = vmatpush1.msra.mxu0 0.0
  %915 = vmatprep.subr.mxu0 0.0
  %916 = vmatpush1.msra.mxu0 0.0
  %917 = vmatprep.subr.mxu0 0.0
  %918 = vmatpush1.msra.mxu0 0.0
  %919 = vmatprep.subr.mxu0 0.0
  %920 = vmatpush1.msra.mxu0 0.0
  %921 = vmatprep.mubr.f32.mxu0 0.0
  %922 = vmatmul.mubr.f32.gmra.mrb[0].mxu0 %v849
  %v923 = vpop.f32.mrb[0].mxu0
  %v924 = vadd.f32 0.0, %v923
  %v925 = vpop.f32.mrb[0].mxu0
  %926 = vmatprep.mubr.f32.mxu0 0.0
  %927 = vmatmul.mubr.f32.gmra.mrb[0].mxu0 %v852
  %v928 = vpop.f32.mrb[0].mxu0
  %v929 = vadd.f32 0.0, %v928
  %v930 = vpop.f32.mrb[0].mxu0
  %931 = vmatprep.mubr.f32.mxu0 0.0
  %932 = vmatmul.mubr.f32.gmra.mrb[0].mxu0 %v855
  %v933 = vpop.f32.mrb[0].mxu0
  %v934 = vadd.f32 0.0, %v933
  %v935 = vpop.f32.mrb[0].mxu0
  %936 = vdwg.mxu0
  %s937 = scalar_lea.vmem %s3, 256
  %v938 = vld [vmem:[%s937] sm:$0xff]
  %v939 = vld [vmem:[%s937 + $0x8] sm:$0xff]
  %v940 = vld [vmem:[%s937 + $0x10] sm:$0xff]
  %v941 = vld [vmem:[%s937 + $0x18] sm:$0xff]
  %s942 = scalar_lea.vmem %s3, 288
  %v943 = vld [vmem:[%s942] sm:$0xff]
  %v944 = vld [vmem:[%s942 + $0x8] sm:$0xff]
  %v945 = vld [vmem:[%s942 + $0x10] sm:$0xff]
  %v946 = vld [vmem:[%s942 + $0x18] sm:$0xff]
  %v948 = vsel %vm550, %v520, 0
  %v951 = vsel %vm550, %v521, 0
  %v954 = vsel %vm550, %v522, 0
  %956 = vmatprep.subr.mxu0 0.0
  %957 = vmatpush1.msra.mxu0 %v943
  %958 = vmatprep.subr.mxu0 0.0
  %959 = vmatpush1.msra.mxu0 %v944
  %960 = vmatprep.subr.mxu0 0.0
  %961 = vmatpush1.msra.mxu0 %v945
  %962 = vmatprep.subr.mxu0 0.0
  %963 = vmatpush1.msra.mxu0 %v946
  %964 = vmatprep.subr.mxu0 0.0
  %965 = vmatpush1.msra.mxu0 0.0
  %966 = vmatprep.subr.mxu0 0.0
  %967 = vmatpush1.msra.mxu0 0.0
  %968 = vmatprep.subr.mxu0 0.0
  %969 = vmatpush1.msra.mxu0 0.0
  %970 = vmatprep.subr.mxu0 0.0
  %971 = vmatpush1.msra.mxu0 0.0
  %972 = vmatprep.subr.mxu0 0.0
  %973 = vmatpush1.msra.mxu0 0.0
  %974 = vmatprep.subr.mxu0 0.0
  %975 = vmatpush1.msra.mxu0 0.0
  %976 = vmatprep.subr.mxu0 0.0
  %977 = vmatpush1.msra.mxu0 0.0
  %978 = vmatprep.subr.mxu0 0.0
  %979 = vmatpush1.msra.mxu0 0.0
  %980 = vmatprep.subr.mxu0 0.0
  %981 = vmatpush1.msra.mxu0 0.0
  %982 = vmatprep.subr.mxu0 0.0
  %983 = vmatpush1.msra.mxu0 0.0
  %984 = vmatprep.subr.mxu0 0.0
  %985 = vmatpush1.msra.mxu0 0.0
  %986 = vmatprep.subr.mxu0 0.0
  %987 = vmatpush1.msra.mxu0 0.0
  %988 = vmatprep.subr.mxu0 0.0
  %989 = vmatpush1.msra.mxu0 0.0
  %990 = vmatprep.subr.mxu0 0.0
  %991 = vmatpush1.msra.mxu0 0.0
  %992 = vmatprep.subr.mxu0 0.0
  %993 = vmatpush1.msra.mxu0 0.0
  %994 = vmatprep.subr.mxu0 0.0
  %995 = vmatpush1.msra.mxu0 0.0
  %996 = vmatprep.subr.mxu0 0.0
  %997 = vmatpush1.msra.mxu0 0.0
  %998 = vmatprep.subr.mxu0 0.0
  %999 = vmatpush1.msra.mxu0 0.0
  %1000 = vmatprep.subr.mxu0 0.0
  %1001 = vmatpush1.msra.mxu0 0.0
  %1002 = vmatprep.subr.mxu0 0.0
  %1003 = vmatpush1.msra.mxu0 0.0
  %1004 = vmatprep.subr.mxu0 0.0
  %1005 = vmatpush1.msra.mxu0 0.0
  %1006 = vmatprep.subr.mxu0 0.0
  %1007 = vmatpush1.msra.mxu0 0.0
  %1008 = vmatprep.subr.mxu0 0.0
  %1009 = vmatpush1.msra.mxu0 0.0
  %1010 = vmatprep.subr.mxu0 0.0
  %1011 = vmatpush1.msra.mxu0 0.0
  %1012 = vmatprep.subr.mxu0 0.0
  %1013 = vmatpush1.msra.mxu0 0.0
  %1014 = vmatprep.subr.mxu0 0.0
  %1015 = vmatpush1.msra.mxu0 0.0
  %1016 = vmatprep.subr.mxu0 0.0
  %1017 = vmatpush1.msra.mxu0 0.0
  %1018 = vmatprep.subr.mxu0 0.0
  %1019 = vmatpush1.msra.mxu0 0.0
  %1020 = vmatprep.mubr.f32.mxu0 0.0
  %1021 = vmatmul.mubr.f32.gmra.mrb[0].mxu0 %v948
  %v1022 = vpop.f32.mrb[0].mxu0
  %v1023 = vadd.f32 0.0, %v1022
  %v1024 = vpop.f32.mrb[0].mxu0
  %1025 = vmatprep.mubr.f32.mxu0 0.0
  %1026 = vmatmul.mubr.f32.gmra.mrb[0].mxu0 %v951
  %v1027 = vpop.f32.mrb[0].mxu0
  %v1028 = vadd.f32 0.0, %v1027
  %v1029 = vpop.f32.mrb[0].mxu0
  %1030 = vmatprep.mubr.f32.mxu0 0.0
  %1031 = vmatmul.mubr.f32.gmra.mrb[0].mxu0 %v954
  %v1032 = vpop.f32.mrb[0].mxu0
  %v1033 = vadd.f32 0.0, %v1032
  %v1034 = vpop.f32.mrb[0].mxu0
  %1035 = vdwg.mxu0
  %s1036 = scalar_lea.vmem %s3, 320
  %v1037 = vld [vmem:[%s1036] sm:$0xff]
  %v1038 = vld [vmem:[%s1036 + $0x8] sm:$0xff]
  %v1039 = vld [vmem:[%s1036 + $0x10] sm:$0xff]
  %v1040 = vld [vmem:[%s1036 + $0x18] sm:$0xff]
  %s1041 = scalar_lea.vmem %s3, 352
  %v1042 = vld [vmem:[%s1041] sm:$0xff]
  %v1043 = vld [vmem:[%s1041 + $0x8] sm:$0xff]
  %v1044 = vld [vmem:[%s1041 + $0x10] sm:$0xff]
  %v1045 = vld [vmem:[%s1041 + $0x18] sm:$0xff]
  %v1047 = vsel %vm550, %v526, 0
  %v1050 = vsel %vm550, %v527, 0
  %v1053 = vsel %vm550, %v528, 0
  %1055 = vmatprep.subr.mxu0 0.0
  %1056 = vmatpush1.msra.mxu0 %v1042
  %1057 = vmatprep.subr.mxu0 0.0
  %1058 = vmatpush1.msra.mxu0 %v1043
  %1059 = vmatprep.subr.mxu0 0.0
  %1060 = vmatpush1.msra.mxu0 %v1044
  %1061 = vmatprep.subr.mxu0 0.0
  %1062 = vmatpush1.msra.mxu0 %v1045
  %1063 = vmatprep.subr.mxu0 0.0
  %1064 = vmatpush1.msra.mxu0 0.0
  %1065 = vmatprep.subr.mxu0 0.0
  %1066 = vmatpush1.msra.mxu0 0.0
  %1067 = vmatprep.subr.mxu0 0.0
  %1068 = vmatpush1.msra.mxu0 0.0
  %1069 = vmatprep.subr.mxu0 0.0
  %1070 = vmatpush1.msra.mxu0 0.0
  %1071 = vmatprep.subr.mxu0 0.0
  %1072 = vmatpush1.msra.mxu0 0.0
  %1073 = vmatprep.subr.mxu0 0.0
  %1074 = vmatpush1.msra.mxu0 0.0
  %1075 = vmatprep.subr.mxu0 0.0
  %1076 = vmatpush1.msra.mxu0 0.0
  %1077 = vmatprep.subr.mxu0 0.0
  %1078 = vmatpush1.msra.mxu0 0.0
  %1079 = vmatprep.subr.mxu0 0.0
  %1080 = vmatpush1.msra.mxu0 0.0
  %1081 = vmatprep.subr.mxu0 0.0
  %1082 = vmatpush1.msra.mxu0 0.0
  %1083 = vmatprep.subr.mxu0 0.0
  %1084 = vmatpush1.msra.mxu0 0.0
  %1085 = vmatprep.subr.mxu0 0.0
  %1086 = vmatpush1.msra.mxu0 0.0
  %1087 = vmatprep.subr.mxu0 0.0
  %1088 = vmatpush1.msra.mxu0 0.0
  %1089 = vmatprep.subr.mxu0 0.0
  %1090 = vmatpush1.msra.mxu0 0.0
  %1091 = vmatprep.subr.mxu0 0.0
  %1092 = vmatpush1.msra.mxu0 0.0
  %1093 = vmatprep.subr.mxu0 0.0
  %1094 = vmatpush1.msra.mxu0 0.0
  %1095 = vmatprep.subr.mxu0 0.0
  %1096 = vmatpush1.msra.mxu0 0.0
  %1097 = vmatprep.subr.mxu0 0.0
  %1098 = vmatpush1.msra.mxu0 0.0
  %1099 = vmatprep.subr.mxu0 0.0
  %1100 = vmatpush1.msra.mxu0 0.0
  %1101 = vmatprep.subr.mxu0 0.0
  %1102 = vmatpush1.msra.mxu0 0.0
  %1103 = vmatprep.subr.mxu0 0.0
  %1104 = vmatpush1.msra.mxu0 0.0
  %1105 = vmatprep.subr.mxu0 0.0
  %1106 = vmatpush1.msra.mxu0 0.0
  %1107 = vmatprep.subr.mxu0 0.0
  %1108 = vmatpush1.msra.mxu0 0.0
  %1109 = vmatprep.subr.mxu0 0.0
  %1110 = vmatpush1.msra.mxu0 0.0
  %1111 = vmatprep.subr.mxu0 0.0
  %1112 = vmatpush1.msra.mxu0 0.0
  %1113 = vmatprep.subr.mxu0 0.0
  %1114 = vmatpush1.msra.mxu0 0.0
  %1115 = vmatprep.subr.mxu0 0.0
  %1116 = vmatpush1.msra.mxu0 0.0
  %1117 = vmatprep.subr.mxu0 0.0
  %1118 = vmatpush1.msra.mxu0 0.0
  %1119 = vmatprep.mubr.f32.mxu0 0.0
  %1120 = vmatmul.mubr.f32.gmra.mrb[0].mxu0 %v1047
  %v1121 = vpop.f32.mrb[0].mxu0
  %v1122 = vadd.f32 0.0, %v1121
  %v1123 = vpop.f32.mrb[0].mxu0
  %1124 = vmatprep.mubr.f32.mxu0 0.0
  %1125 = vmatmul.mubr.f32.gmra.mrb[0].mxu0 %v1050
  %v1126 = vpop.f32.mrb[0].mxu0
  %v1127 = vadd.f32 0.0, %v1126
  %v1128 = vpop.f32.mrb[0].mxu0
  %1129 = vmatprep.mubr.f32.mxu0 0.0
  %1130 = vmatmul.mubr.f32.gmra.mrb[0].mxu0 %v1053
  %v1131 = vpop.f32.mrb[0].mxu0
  %v1132 = vadd.f32 0.0, %v1131
  %v1133 = vpop.f32.mrb[0].mxu0
  %1134 = vdwg.mxu0
  %s1135 = scalar_lea.vmem %s3, 384
  %v1136 = vld [vmem:[%s1135] sm:$0xff]
  %v1137 = vld [vmem:[%s1135 + $0x8] sm:$0xff]
  %v1138 = vld [vmem:[%s1135 + $0x10] sm:$0xff]
  %v1139 = vld [vmem:[%s1135 + $0x18] sm:$0xff]
  %s1140 = scalar_lea.vmem %s3, 416
  %v1141 = vld [vmem:[%s1140] sm:$0xff]
  %v1142 = vld [vmem:[%s1140 + $0x8] sm:$0xff]
  %v1143 = vld [vmem:[%s1140 + $0x10] sm:$0xff]
  %v1144 = vld [vmem:[%s1140 + $0x18] sm:$0xff]
  %v1146 = vsel %vm550, %v532, 0
  %v1149 = vsel %vm550, %v533, 0
  %v1152 = vsel %vm550, %v534, 0
  %1154 = vmatprep.subr.mxu0 0.0
  %1155 = vmatpush1.msra.mxu0 %v1141
  %1156 = vmatprep.subr.mxu0 0.0
  %1157 = vmatpush1.msra.mxu0 %v1142
  %1158 = vmatprep.subr.mxu0 0.0
  %1159 = vmatpush1.msra.mxu0 %v1143
  %1160 = vmatprep.subr.mxu0 0.0
  %1161 = vmatpush1.msra.mxu0 %v1144
  %1162 = vmatprep.subr.mxu0 0.0
  %1163 = vmatpush1.msra.mxu0 0.0
  %1164 = vmatprep.subr.mxu0 0.0
  %1165 = vmatpush1.msra.mxu0 0.0
  %1166 = vmatprep.subr.mxu0 0.0
  %1167 = vmatpush1.msra.mxu0 0.0
  %1168 = vmatprep.subr.mxu0 0.0
  %1169 = vmatpush1.msra.mxu0 0.0
  %1170 = vmatprep.subr.mxu0 0.0
  %1171 = vmatpush1.msra.mxu0 0.0
  %1172 = vmatprep.subr.mxu0 0.0
  %1173 = vmatpush1.msra.mxu0 0.0
  %1174 = vmatprep.subr.mxu0 0.0
  %1175 = vmatpush1.msra.mxu0 0.0
  %1176 = vmatprep.subr.mxu0 0.0
  %1177 = vmatpush1.msra.mxu0 0.0
  %1178 = vmatprep.subr.mxu0 0.0
  %1179 = vmatpush1.msra.mxu0 0.0
  %1180 = vmatprep.subr.mxu0 0.0
  %1181 = vmatpush1.msra.mxu0 0.0
  %1182 = vmatprep.subr.mxu0 0.0
  %1183 = vmatpush1.msra.mxu0 0.0
  %1184 = vmatprep.subr.mxu0 0.0
  %1185 = vmatpush1.msra.mxu0 0.0
  %1186 = vmatprep.subr.mxu0 0.0
  %1187 = vmatpush1.msra.mxu0 0.0
  %1188 = vmatprep.subr.mxu0 0.0
  %1189 = vmatpush1.msra.mxu0 0.0
  %1190 = vmatprep.subr.mxu0 0.0
  %1191 = vmatpush1.msra.mxu0 0.0
  %1192 = vmatprep.subr.mxu0 0.0
  %1193 = vmatpush1.msra.mxu0 0.0
  %1194 = vmatprep.subr.mxu0 0.0
  %1195 = vmatpush1.msra.mxu0 0.0
  %1196 = vmatprep.subr.mxu0 0.0
  %1197 = vmatpush1.msra.mxu0 0.0
  %1198 = vmatprep.subr.mxu0 0.0
  %1199 = vmatpush1.msra.mxu0 0.0
  %1200 = vmatprep.subr.mxu0 0.0
  %1201 = vmatpush1.msra.mxu0 0.0
  %1202 = vmatprep.subr.mxu0 0.0
  %1203 = vmatpush1.msra.mxu0 0.0
  %1204 = vmatprep.subr.mxu0 0.0
  %1205 = vmatpush1.msra.mxu0 0.0
  %1206 = vmatprep.subr.mxu0 0.0
  %1207 = vmatpush1.msra.mxu0 0.0
  %1208 = vmatprep.subr.mxu0 0.0
  %1209 = vmatpush1.msra.mxu0 0.0
  %1210 = vmatprep.subr.mxu0 0.0
  %1211 = vmatpush1.msra.mxu0 0.0
  %1212 = vmatprep.subr.mxu0 0.0
  %1213 = vmatpush1.msra.mxu0 0.0
  %1214 = vmatprep.subr.mxu0 0.0
  %1215 = vmatpush1.msra.mxu0 0.0
  %1216 = vmatprep.subr.mxu0 0.0
  %1217 = vmatpush1.msra.mxu0 0.0
  %1218 = vmatprep.mubr.f32.mxu0 0.0
  %1219 = vmatmul.mubr.f32.gmra.mrb[0].mxu0 %v1146
  %v1220 = vpop.f32.mrb[0].mxu0
  %v1221 = vadd.f32 0.0, %v1220
  %v1222 = vpop.f32.mrb[0].mxu0
  %1223 = vmatprep.mubr.f32.mxu0 0.0
  %1224 = vmatmul.mubr.f32.gmra.mrb[0].mxu0 %v1149
  %v1225 = vpop.f32.mrb[0].mxu0
  %v1226 = vadd.f32 0.0, %v1225
  %v1227 = vpop.f32.mrb[0].mxu0
  %1228 = vmatprep.mubr.f32.mxu0 0.0
  %1229 = vmatmul.mubr.f32.gmra.mrb[0].mxu0 %v1152
  %v1230 = vpop.f32.mrb[0].mxu0
  %v1231 = vadd.f32 0.0, %v1230
  %v1232 = vpop.f32.mrb[0].mxu0
  %1233 = vdwg.mxu0
  %s1234 = scalar_lea.vmem %s3, 448
  %v1235 = vld [vmem:[%s1234] sm:$0xff]
  %v1236 = vld [vmem:[%s1234 + $0x8] sm:$0xff]
  %v1237 = vld [vmem:[%s1234 + $0x10] sm:$0xff]
  %v1238 = vld [vmem:[%s1234 + $0x18] sm:$0xff]
  %s1239 = scalar_lea.vmem %s3, 480
  %v1240 = vld [vmem:[%s1239] sm:$0xff]
  %v1241 = vld [vmem:[%s1239 + $0x8] sm:$0xff]
  %v1242 = vld [vmem:[%s1239 + $0x10] sm:$0xff]
  %v1243 = vld [vmem:[%s1239 + $0x18] sm:$0xff]
  %v1245 = vsel %vm550, %v538, 0
  %v1248 = vsel %vm550, %v539, 0
  %v1251 = vsel %vm550, %v540, 0
  %1253 = vmatprep.subr.mxu0 0.0
  %1254 = vmatpush1.msra.mxu0 %v1240
  %1255 = vmatprep.subr.mxu0 0.0
  %1256 = vmatpush1.msra.mxu0 %v1241
  %1257 = vmatprep.subr.mxu0 0.0
  %1258 = vmatpush1.msra.mxu0 %v1242
  %1259 = vmatprep.subr.mxu0 0.0
  %1260 = vmatpush1.msra.mxu0 %v1243
  %1261 = vmatprep.subr.mxu0 0.0
  %1262 = vmatpush1.msra.mxu0 0.0
  %1263 = vmatprep.subr.mxu0 0.0
  %1264 = vmatpush1.msra.mxu0 0.0
  %1265 = vmatprep.subr.mxu0 0.0
  %1266 = vmatpush1.msra.mxu0 0.0
  %1267 = vmatprep.subr.mxu0 0.0
  %1268 = vmatpush1.msra.mxu0 0.0
  %1269 = vmatprep.subr.mxu0 0.0
  %1270 = vmatpush1.msra.mxu0 0.0
  %1271 = vmatprep.subr.mxu0 0.0
  %1272 = vmatpush1.msra.mxu0 0.0
  %1273 = vmatprep.subr.mxu0 0.0
  %1274 = vmatpush1.msra.mxu0 0.0
  %1275 = vmatprep.subr.mxu0 0.0
  %1276 = vmatpush1.msra.mxu0 0.0
  %1277 = vmatprep.subr.mxu0 0.0
  %1278 = vmatpush1.msra.mxu0 0.0
  %1279 = vmatprep.subr.mxu0 0.0
  %1280 = vmatpush1.msra.mxu0 0.0
  %1281 = vmatprep.subr.mxu0 0.0
  %1282 = vmatpush1.msra.mxu0 0.0
  %1283 = vmatprep.subr.mxu0 0.0
  %1284 = vmatpush1.msra.mxu0 0.0
  %1285 = vmatprep.subr.mxu0 0.0
  %1286 = vmatpush1.msra.mxu0 0.0
  %1287 = vmatprep.subr.mxu0 0.0
  %1288 = vmatpush1.msra.mxu0 0.0
  %1289 = vmatprep.subr.mxu0 0.0
  %1290 = vmatpush1.msra.mxu0 0.0
  %1291 = vmatprep.subr.mxu0 0.0
  %1292 = vmatpush1.msra.mxu0 0.0
  %1293 = vmatprep.subr.mxu0 0.0
  %1294 = vmatpush1.msra.mxu0 0.0
  %1295 = vmatprep.subr.mxu0 0.0
  %1296 = vmatpush1.msra.mxu0 0.0
  %1297 = vmatprep.subr.mxu0 0.0
  %1298 = vmatpush1.msra.mxu0 0.0
  %1299 = vmatprep.subr.mxu0 0.0
  %1300 = vmatpush1.msra.mxu0 0.0
  %1301 = vmatprep.subr.mxu0 0.0
  %1302 = vmatpush1.msra.mxu0 0.0
  %1303 = vmatprep.subr.mxu0 0.0
  %1304 = vmatpush1.msra.mxu0 0.0
  %1305 = vmatprep.subr.mxu0 0.0
  %1306 = vmatpush1.msra.mxu0 0.0
  %1307 = vmatprep.subr.mxu0 0.0
  %1308 = vmatpush1.msra.mxu0 0.0
  %1309 = vmatprep.subr.mxu0 0.0
  %1310 = vmatpush1.msra.mxu0 0.0
  %1311 = vmatprep.subr.mxu0 0.0
  %1312 = vmatpush1.msra.mxu0 0.0
  %1313 = vmatprep.subr.mxu0 0.0
  %1314 = vmatpush1.msra.mxu0 0.0
  %1315 = vmatprep.subr.mxu0 0.0
  %1316 = vmatpush1.msra.mxu0 0.0
  %1317 = vmatprep.mubr.f32.mxu0 0.0
  %1318 = vmatmul.mubr.f32.gmra.mrb[0].mxu0 %v1245
  %v1319 = vpop.f32.mrb[0].mxu0
  %v1320 = vadd.f32 0.0, %v1319
  %v1321 = vpop.f32.mrb[0].mxu0
  %1322 = vmatprep.mubr.f32.mxu0 0.0
  %1323 = vmatmul.mubr.f32.gmra.mrb[0].mxu0 %v1248
  %v1324 = vpop.f32.mrb[0].mxu0
  %v1325 = vadd.f32 0.0, %v1324
  %v1326 = vpop.f32.mrb[0].mxu0
  %1327 = vmatprep.mubr.f32.mxu0 0.0
  %1328 = vmatmul.mubr.f32.gmra.mrb[0].mxu0 %v1251
  %v1329 = vpop.f32.mrb[0].mxu0
  %v1330 = vadd.f32 0.0, %v1329
  %v1331 = vpop.f32.mrb[0].mxu0
  %1332 = vdwg.mxu0
  %v1334 = vsel %vm550, %v493, 0
  %v1337 = vsel %vm550, %v494, 0
  %v1340 = vsel %vm550, %v495, 0
  %1342 = vmatprep.subr.mxu0 0.0
  %1343 = vmatpush1.msra.mxu0 %v541
  %1344 = vmatprep.subr.mxu0 0.0
  %1345 = vmatpush1.msra.mxu0 %v542
  %1346 = vmatprep.subr.mxu0 0.0
  %1347 = vmatpush1.msra.mxu0 %v543
  %1348 = vmatprep.subr.mxu0 0.0
  %1349 = vmatpush1.msra.mxu0 %v544
  %1350 = vmatprep.subr.mxu0 0.0
  %1351 = vmatpush1.msra.mxu0 0.0
  %1352 = vmatprep.subr.mxu0 0.0
  %1353 = vmatpush1.msra.mxu0 0.0
  %1354 = vmatprep.subr.mxu0 0.0
  %1355 = vmatpush1.msra.mxu0 0.0
  %1356 = vmatprep.subr.mxu0 0.0
  %1357 = vmatpush1.msra.mxu0 0.0
  %1358 = vmatprep.subr.mxu0 0.0
  %1359 = vmatpush1.msra.mxu0 0.0
  %1360 = vmatprep.subr.mxu0 0.0
  %1361 = vmatpush1.msra.mxu0 0.0
  %1362 = vmatprep.subr.mxu0 0.0
  %1363 = vmatpush1.msra.mxu0 0.0
  %1364 = vmatprep.subr.mxu0 0.0
  %1365 = vmatpush1.msra.mxu0 0.0
  %1366 = vmatprep.subr.mxu0 0.0
  %1367 = vmatpush1.msra.mxu0 0.0
  %1368 = vmatprep.subr.mxu0 0.0
  %1369 = vmatpush1.msra.mxu0 0.0
  %1370 = vmatprep.subr.mxu0 0.0
  %1371 = vmatpush1.msra.mxu0 0.0
  %1372 = vmatprep.subr.mxu0 0.0
  %1373 = vmatpush1.msra.mxu0 0.0
  %1374 = vmatprep.subr.mxu0 0.0
  %1375 = vmatpush1.msra.mxu0 0.0
  %1376 = vmatprep.subr.mxu0 0.0
  %1377 = vmatpush1.msra.mxu0 0.0
  %1378 = vmatprep.subr.mxu0 0.0
  %1379 = vmatpush1.msra.mxu0 0.0
  %1380 = vmatprep.subr.mxu0 0.0
  %1381 = vmatpush1.msra.mxu0 0.0
  %1382 = vmatprep.subr.mxu0 0.0
  %1383 = vmatpush1.msra.mxu0 0.0
  %1384 = vmatprep.subr.mxu0 0.0
  %1385 = vmatpush1.msra.mxu0 0.0
  %1386 = vmatprep.subr.mxu0 0.0
  %1387 = vmatpush1.msra.mxu0 0.0
  %1388 = vmatprep.subr.mxu0 0.0
  %1389 = vmatpush1.msra.mxu0 0.0
  %1390 = vmatprep.subr.mxu0 0.0
  %1391 = vmatpush1.msra.mxu0 0.0
  %1392 = vmatprep.subr.mxu0 0.0
  %1393 = vmatpush1.msra.mxu0 0.0
  %1394 = vmatprep.subr.mxu0 0.0
  %1395 = vmatpush1.msra.mxu0 0.0
  %1396 = vmatprep.subr.mxu0 0.0
  %1397 = vmatpush1.msra.mxu0 0.0
  %1398 = vmatprep.subr.mxu0 0.0
  %1399 = vmatpush1.msra.mxu0 0.0
  %1400 = vmatprep.subr.mxu0 0.0
  %1401 = vmatpush1.msra.mxu0 0.0
  %1402 = vmatprep.subr.mxu0 0.0
  %1403 = vmatpush1.msra.mxu0 0.0
  %1404 = vmatprep.subr.mxu0 0.0
  %1405 = vmatpush1.msra.mxu0 0.0
  %1406 = vmatprep.mubr.f32.mxu0 0.0
  %1407 = vmatmul.mubr.f32.gmra.mrb[0].mxu0 %v1334
  %v1408 = vpop.f32.mrb[0].mxu0
  %v1409 = vadd.f32 %v627, %v1408
  %v1410 = vpop.f32.mrb[0].mxu0
  %1411 = vmatprep.mubr.f32.mxu0 0.0
  %1412 = vmatmul.mubr.f32.gmra.mrb[0].mxu0 %v1337
  %v1413 = vpop.f32.mrb[0].mxu0
  %v1414 = vadd.f32 %v632, %v1413
  %v1415 = vpop.f32.mrb[0].mxu0
  %1416 = vmatprep.mubr.f32.mxu0 0.0
  %1417 = vmatmul.mubr.f32.gmra.mrb[0].mxu0 %v1340
  %v1418 = vpop.f32.mrb[0].mxu0
  %v1419 = vadd.f32 %v637, %v1418
  %v1420 = vpop.f32.mrb[0].mxu0
  %1421 = vdwg.mxu0
  %v1423 = vsel %vm550, %v499, 0
  %v1426 = vsel %vm550, %v500, 0
  %v1429 = vsel %vm550, %v501, 0
  %1431 = vmatprep.subr.mxu0 0.0
  %1432 = vmatpush1.msra.mxu0 %v641
  %1433 = vmatprep.subr.mxu0 0.0
  %1434 = vmatpush1.msra.mxu0 %v642
  %1435 = vmatprep.subr.mxu0 0.0
  %1436 = vmatpush1.msra.mxu0 %v643
  %1437 = vmatprep.subr.mxu0 0.0
  %1438 = vmatpush1.msra.mxu0 %v644
  %1439 = vmatprep.subr.mxu0 0.0
  %1440 = vmatpush1.msra.mxu0 0.0
  %1441 = vmatprep.subr.mxu0 0.0
  %1442 = vmatpush1.msra.mxu0 0.0
  %1443 = vmatprep.subr.mxu0 0.0
  %1444 = vmatpush1.msra.mxu0 0.0
  %1445 = vmatprep.subr.mxu0 0.0
  %1446 = vmatpush1.msra.mxu0 0.0
  %1447 = vmatprep.subr.mxu0 0.0
  %1448 = vmatpush1.msra.mxu0 0.0
  %1449 = vmatprep.subr.mxu0 0.0
  %1450 = vmatpush1.msra.mxu0 0.0
  %1451 = vmatprep.subr.mxu0 0.0
  %1452 = vmatpush1.msra.mxu0 0.0
  %1453 = vmatprep.subr.mxu0 0.0
  %1454 = vmatpush1.msra.mxu0 0.0
  %1455 = vmatprep.subr.mxu0 0.0
  %1456 = vmatpush1.msra.mxu0 0.0
  %1457 = vmatprep.subr.mxu0 0.0
  %1458 = vmatpush1.msra.mxu0 0.0
  %1459 = vmatprep.subr.mxu0 0.0
  %1460 = vmatpush1.msra.mxu0 0.0
  %1461 = vmatprep.subr.mxu0 0.0
  %1462 = vmatpush1.msra.mxu0 0.0
  %1463 = vmatprep.subr.mxu0 0.0
  %1464 = vmatpush1.msra.mxu0 0.0
  %1465 = vmatprep.subr.mxu0 0.0
  %1466 = vmatpush1.msra.mxu0 0.0
  %1467 = vmatprep.subr.mxu0 0.0
  %1468 = vmatpush1.msra.mxu0 0.0
  %1469 = vmatprep.subr.mxu0 0.0
  %1470 = vmatpush1.msra.mxu0 0.0
  %1471 = vmatprep.subr.mxu0 0.0
  %1472 = vmatpush1.msra.mxu0 0.0
  %1473 = vmatprep.subr.mxu0 0.0
  %1474 = vmatpush1.msra.mxu0 0.0
  %1475 = vmatprep.subr.mxu0 0.0
  %1476 = vmatpush1.msra.mxu0 0.0
  %1477 = vmatprep.subr.mxu0 0.0
  %1478 = vmatpush1.msra.mxu0 0.0
  %1479 = vmatprep.subr.mxu0 0.0
  %1480 = vmatpush1.msra.mxu0 0.0
  %1481 = vmatprep.subr.mxu0 0.0
  %1482 = vmatpush1.msra.mxu0 0.0
  %1483 = vmatprep.subr.mxu0 0.0
  %1484 = vmatpush1.msra.mxu0 0.0
  %1485 = vmatprep.subr.mxu0 0.0
  %1486 = vmatpush1.msra.mxu0 0.0
  %1487 = vmatprep.subr.mxu0 0.0
  %1488 = vmatpush1.msra.mxu0 0.0
  %1489 = vmatprep.subr.mxu0 0.0
  %1490 = vmatpush1.msra.mxu0 0.0
  %1491 = vmatprep.subr.mxu0 0.0
  %1492 = vmatpush1.msra.mxu0 0.0
  %1493 = vmatprep.subr.mxu0 0.0
  %1494 = vmatpush1.msra.mxu0 0.0
  %1495 = vmatprep.mubr.f32.mxu0 0.0
  %1496 = vmatmul.mubr.f32.gmra.mrb[0].mxu0 %v1423
  %v1497 = vpop.f32.mrb[0].mxu0
  %v1498 = vadd.f32 %v726, %v1497
  %v1499 = vpop.f32.mrb[0].mxu0
  %1500 = vmatprep.mubr.f32.mxu0 0.0
  %1501 = vmatmul.mubr.f32.gmra.mrb[0].mxu0 %v1426
  %v1502 = vpop.f32.mrb[0].mxu0
  %v1503 = vadd.f32 %v731, %v1502
  %v1504 = vpop.f32.mrb[0].mxu0
  %1505 = vmatprep.mubr.f32.mxu0 0.0
  %1506 = vmatmul.mubr.f32.gmra.mrb[0].mxu0 %v1429
  %v1507 = vpop.f32.mrb[0].mxu0
  %v1508 = vadd.f32 %v736, %v1507
  %v1509 = vpop.f32.mrb[0].mxu0
  %1510 = vdwg.mxu0
  %v1512 = vsel %vm550, %v505, 0
  %v1515 = vsel %vm550, %v506, 0
  %v1518 = vsel %vm550, %v507, 0
  %1520 = vmatprep.subr.mxu0 0.0
  %1521 = vmatpush1.msra.mxu0 %v740
  %1522 = vmatprep.subr.mxu0 0.0
  %1523 = vmatpush1.msra.mxu0 %v741
  %1524 = vmatprep.subr.mxu0 0.0
  %1525 = vmatpush1.msra.mxu0 %v742
  %1526 = vmatprep.subr.mxu0 0.0
  %1527 = vmatpush1.msra.mxu0 %v743
  %1528 = vmatprep.subr.mxu0 0.0
  %1529 = vmatpush1.msra.mxu0 0.0
  %1530 = vmatprep.subr.mxu0 0.0
  %1531 = vmatpush1.msra.mxu0 0.0
  %1532 = vmatprep.subr.mxu0 0.0
  %1533 = vmatpush1.msra.mxu0 0.0
  %1534 = vmatprep.subr.mxu0 0.0
  %1535 = vmatpush1.msra.mxu0 0.0
  %1536 = vmatprep.subr.mxu0 0.0
  %1537 = vmatpush1.msra.mxu0 0.0
  %1538 = vmatprep.subr.mxu0 0.0
  %1539 = vmatpush1.msra.mxu0 0.0
  %1540 = vmatprep.subr.mxu0 0.0
  %1541 = vmatpush1.msra.mxu0 0.0
  %1542 = vmatprep.subr.mxu0 0.0
  %1543 = vmatpush1.msra.mxu0 0.0
  %1544 = vmatprep.subr.mxu0 0.0
  %1545 = vmatpush1.msra.mxu0 0.0
  %1546 = vmatprep.subr.mxu0 0.0
  %1547 = vmatpush1.msra.mxu0 0.0
  %1548 = vmatprep.subr.mxu0 0.0
  %1549 = vmatpush1.msra.mxu0 0.0
  %1550 = vmatprep.subr.mxu0 0.0
  %1551 = vmatpush1.msra.mxu0 0.0
  %1552 = vmatprep.subr.mxu0 0.0
  %1553 = vmatpush1.msra.mxu0 0.0
  %1554 = vmatprep.subr.mxu0 0.0
  %1555 = vmatpush1.msra.mxu0 0.0
  %1556 = vmatprep.subr.mxu0 0.0
  %1557 = vmatpush1.msra.mxu0 0.0
  %1558 = vmatprep.subr.mxu0 0.0
  %1559 = vmatpush1.msra.mxu0 0.0
  %1560 = vmatprep.subr.mxu0 0.0
  %1561 = vmatpush1.msra.mxu0 0.0
  %1562 = vmatprep.subr.mxu0 0.0
  %1563 = vmatpush1.msra.mxu0 0.0
  %1564 = vmatprep.subr.mxu0 0.0
  %1565 = vmatpush1.msra.mxu0 0.0
  %1566 = vmatprep.subr.mxu0 0.0
  %1567 = vmatpush1.msra.mxu0 0.0
  %1568 = vmatprep.subr.mxu0 0.0
  %1569 = vmatpush1.msra.mxu0 0.0
  %1570 = vmatprep.subr.mxu0 0.0
  %1571 = vmatpush1.msra.mxu0 0.0
  %1572 = vmatprep.subr.mxu0 0.0
  %1573 = vmatpush1.msra.mxu0 0.0
  %1574 = vmatprep.subr.mxu0 0.0
  %1575 = vmatpush1.msra.mxu0 0.0
  %1576 = vmatprep.subr.mxu0 0.0
  %1577 = vmatpush1.msra.mxu0 0.0
  %1578 = vmatprep.subr.mxu0 0.0
  %1579 = vmatpush1.msra.mxu0 0.0
  %1580 = vmatprep.subr.mxu0 0.0
  %1581 = vmatpush1.msra.mxu0 0.0
  %1582 = vmatprep.subr.mxu0 0.0
  %1583 = vmatpush1.msra.mxu0 0.0
  %1584 = vmatprep.mubr.f32.mxu0 0.0
  %1585 = vmatmul.mubr.f32.gmra.mrb[0].mxu0 %v1512
  %v1586 = vpop.f32.mrb[0].mxu0
  %v1587 = vadd.f32 %v825, %v1586
  %v1588 = vpop.f32.mrb[0].mxu0
  %1589 = vmatprep.mubr.f32.mxu0 0.0
  %1590 = vmatmul.mubr.f32.gmra.mrb[0].mxu0 %v1515
  %v1591 = vpop.f32.mrb[0].mxu0
  %v1592 = vadd.f32 %v830, %v1591
  %v1593 = vpop.f32.mrb[0].mxu0
  %1594 = vmatprep.mubr.f32.mxu0 0.0
  %1595 = vmatmul.mubr.f32.gmra.mrb[0].mxu0 %v1518
  %v1596 = vpop.f32.mrb[0].mxu0
  %v1597 = vadd.f32 %v835, %v1596
  %v1598 = vpop.f32.mrb[0].mxu0
  %1599 = vdwg.mxu0
  %v1601 = vsel %vm550, %v511, 0
  %v1604 = vsel %vm550, %v512, 0
  %v1607 = vsel %vm550, %v513, 0
  %1609 = vmatprep.subr.mxu0 0.0
  %1610 = vmatpush1.msra.mxu0 %v839
  %1611 = vmatprep.subr.mxu0 0.0
  %1612 = vmatpush1.msra.mxu0 %v840
  %1613 = vmatprep.subr.mxu0 0.0
  %1614 = vmatpush1.msra.mxu0 %v841
  %1615 = vmatprep.subr.mxu0 0.0
  %1616 = vmatpush1.msra.mxu0 %v842
  %1617 = vmatprep.subr.mxu0 0.0
  %1618 = vmatpush1.msra.mxu0 0.0
  %1619 = vmatprep.subr.mxu0 0.0
  %1620 = vmatpush1.msra.mxu0 0.0
  %1621 = vmatprep.subr.mxu0 0.0
  %1622 = vmatpush1.msra.mxu0 0.0
  %1623 = vmatprep.subr.mxu0 0.0
  %1624 = vmatpush1.msra.mxu0 0.0
  %1625 = vmatprep.subr.mxu0 0.0
  %1626 = vmatpush1.msra.mxu0 0.0
  %1627 = vmatprep.subr.mxu0 0.0
  %1628 = vmatpush1.msra.mxu0 0.0
  %1629 = vmatprep.subr.mxu0 0.0
  %1630 = vmatpush1.msra.mxu0 0.0
  %1631 = vmatprep.subr.mxu0 0.0
  %1632 = vmatpush1.msra.mxu0 0.0
  %1633 = vmatprep.subr.mxu0 0.0
  %1634 = vmatpush1.msra.mxu0 0.0
  %1635 = vmatprep.subr.mxu0 0.0
  %1636 = vmatpush1.msra.mxu0 0.0
  %1637 = vmatprep.subr.mxu0 0.0
  %1638 = vmatpush1.msra.mxu0 0.0
  %1639 = vmatprep.subr.mxu0 0.0
  %1640 = vmatpush1.msra.mxu0 0.0
  %1641 = vmatprep.subr.mxu0 0.0
  %1642 = vmatpush1.msra.mxu0 0.0
  %1643 = vmatprep.subr.mxu0 0.0
  %1644 = vmatpush1.msra.mxu0 0.0
  %1645 = vmatprep.subr.mxu0 0.0
  %1646 = vmatpush1.msra.mxu0 0.0
  %1647 = vmatprep.subr.mxu0 0.0
  %1648 = vmatpush1.msra.mxu0 0.0
  %1649 = vmatprep.subr.mxu0 0.0
  %1650 = vmatpush1.msra.mxu0 0.0
  %1651 = vmatprep.subr.mxu0 0.0
  %1652 = vmatpush1.msra.mxu0 0.0
  %1653 = vmatprep.subr.mxu0 0.0
  %1654 = vmatpush1.msra.mxu0 0.0
  %1655 = vmatprep.subr.mxu0 0.0
  %1656 = vmatpush1.msra.mxu0 0.0
  %1657 = vmatprep.subr.mxu0 0.0
  %1658 = vmatpush1.msra.mxu0 0.0
  %1659 = vmatprep.subr.mxu0 0.0
  %1660 = vmatpush1.msra.mxu0 0.0
  %1661 = vmatprep.subr.mxu0 0.0
  %1662 = vmatpush1.msra.mxu0 0.0
  %1663 = vmatprep.subr.mxu0 0.0
  %1664 = vmatpush1.msra.mxu0 0.0
  %1665 = vmatprep.subr.mxu0 0.0
  %1666 = vmatpush1.msra.mxu0 0.0
  %1667 = vmatprep.subr.mxu0 0.0
  %1668 = vmatpush1.msra.mxu0 0.0
  %1669 = vmatprep.subr.mxu0 0.0
  %1670 = vmatpush1.msra.mxu0 0.0
  %1671 = vmatprep.subr.mxu0 0.0
  %1672 = vmatpush1.msra.mxu0 0.0
  %1673 = vmatprep.mubr.f32.mxu0 0.0
  %1674 = vmatmul.mubr.f32.gmra.mrb[0].mxu0 %v1601
  %v1675 = vpop.f32.mrb[0].mxu0
  %v1676 = vadd.f32 %v924, %v1675
  %v1677 = vpop.f32.mrb[0].mxu0
  %1678 = vmatprep.mubr.f32.mxu0 0.0
  %1679 = vmatmul.mubr.f32.gmra.mrb[0].mxu0 %v1604
  %v1680 = vpop.f32.mrb[0].mxu0
  %v1681 = vadd.f32 %v929, %v1680
  %v1682 = vpop.f32.mrb[0].mxu0
  %1683 = vmatprep.mubr.f32.mxu0 0.0
  %1684 = vmatmul.mubr.f32.gmra.mrb[0].mxu0 %v1607
  %v1685 = vpop.f32.mrb[0].mxu0
  %v1686 = vadd.f32 %v934, %v1685
  %v1687 = vpop.f32.mrb[0].mxu0
  %1688 = vdwg.mxu0
  %v1690 = vsel %vm550, %v517, 0
  %v1693 = vsel %vm550, %v518, 0
  %v1696 = vsel %vm550, %v519, 0
  %1698 = vmatprep.subr.mxu0 0.0
  %1699 = vmatpush1.msra.mxu0 %v938
  %1700 = vmatprep.subr.mxu0 0.0
  %1701 = vmatpush1.msra.mxu0 %v939
  %1702 = vmatprep.subr.mxu0 0.0
  %1703 = vmatpush1.msra.mxu0 %v940
  %1704 = vmatprep.subr.mxu0 0.0
  %1705 = vmatpush1.msra.mxu0 %v941
  %1706 = vmatprep.subr.mxu0 0.0
  %1707 = vmatpush1.msra.mxu0 0.0
  %1708 = vmatprep.subr.mxu0 0.0
  %1709 = vmatpush1.msra.mxu0 0.0
  %1710 = vmatprep.subr.mxu0 0.0
  %1711 = vmatpush1.msra.mxu0 0.0
  %1712 = vmatprep.subr.mxu0 0.0
  %1713 = vmatpush1.msra.mxu0 0.0
  %1714 = vmatprep.subr.mxu0 0.0
  %1715 = vmatpush1.msra.mxu0 0.0
  %1716 = vmatprep.subr.mxu0 0.0
  %1717 = vmatpush1.msra.mxu0 0.0
  %1718 = vmatprep.subr.mxu0 0.0
  %1719 = vmatpush1.msra.mxu0 0.0
  %1720 = vmatprep.subr.mxu0 0.0
  %1721 = vmatpush1.msra.mxu0 0.0
  %1722 = vmatprep.subr.mxu0 0.0
  %1723 = vmatpush1.msra.mxu0 0.0
  %1724 = vmatprep.subr.mxu0 0.0
  %1725 = vmatpush1.msra.mxu0 0.0
  %1726 = vmatprep.subr.mxu0 0.0
  %1727 = vmatpush1.msra.mxu0 0.0
  %1728 = vmatprep.subr.mxu0 0.0
  %1729 = vmatpush1.msra.mxu0 0.0
  %1730 = vmatprep.subr.mxu0 0.0
  %1731 = vmatpush1.msra.mxu0 0.0
  %1732 = vmatprep.subr.mxu0 0.0
  %1733 = vmatpush1.msra.mxu0 0.0
  %1734 = vmatprep.subr.mxu0 0.0
  %1735 = vmatpush1.msra.mxu0 0.0
  %1736 = vmatprep.subr.mxu0 0.0
  %1737 = vmatpush1.msra.mxu0 0.0
  %1738 = vmatprep.subr.mxu0 0.0
  %1739 = vmatpush1.msra.mxu0 0.0
  %1740 = vmatprep.subr.mxu0 0.0
  %1741 = vmatpush1.msra.mxu0 0.0
  %1742 = vmatprep.subr.mxu0 0.0
  %1743 = vmatpush1.msra.mxu0 0.0
  %1744 = vmatprep.subr.mxu0 0.0
  %1745 = vmatpush1.msra.mxu0 0.0
  %1746 = vmatprep.subr.mxu0 0.0
  %1747 = vmatpush1.msra.mxu0 0.0
  %1748 = vmatprep.subr.mxu0 0.0
  %1749 = vmatpush1.msra.mxu0 0.0
  %1750 = vmatprep.subr.mxu0 0.0
  %1751 = vmatpush1.msra.mxu0 0.0
  %1752 = vmatprep.subr.mxu0 0.0
  %1753 = vmatpush1.msra.mxu0 0.0
  %1754 = vmatprep.subr.mxu0 0.0
  %1755 = vmatpush1.msra.mxu0 0.0
  %1756 = vmatprep.subr.mxu0 0.0
  %1757 = vmatpush1.msra.mxu0 0.0
  %1758 = vmatprep.subr.mxu0 0.0
  %1759 = vmatpush1.msra.mxu0 0.0
  %1760 = vmatprep.subr.mxu0 0.0
  %1761 = vmatpush1.msra.mxu0 0.0
  %1762 = vmatprep.mubr.f32.mxu0 0.0
  %1763 = vmatmul.mubr.f32.gmra.mrb[0].mxu0 %v1690
  %v1764 = vpop.f32.mrb[0].mxu0
  %v1765 = vadd.f32 %v1023, %v1764
  %v1766 = vpop.f32.mrb[0].mxu0
  %1767 = vmatprep.mubr.f32.mxu0 0.0
  %1768 = vmatmul.mubr.f32.gmra.mrb[0].mxu0 %v1693
  %v1769 = vpop.f32.mrb[0].mxu0
  %v1770 = vadd.f32 %v1028, %v1769
  %v1771 = vpop.f32.mrb[0].mxu0
  %1772 = vmatprep.mubr.f32.mxu0 0.0
  %1773 = vmatmul.mubr.f32.gmra.mrb[0].mxu0 %v1696
  %v1774 = vpop.f32.mrb[0].mxu0
  %v1775 = vadd.f32 %v1033, %v1774
  %v1776 = vpop.f32.mrb[0].mxu0
  %1777 = vdwg.mxu0
  %v1779 = vsel %vm550, %v523, 0
  %v1782 = vsel %vm550, %v524, 0
  %v1785 = vsel %vm550, %v525, 0
  %1787 = vmatprep.subr.mxu0 0.0
  %1788 = vmatpush1.msra.mxu0 %v1037
  %1789 = vmatprep.subr.mxu0 0.0
  %1790 = vmatpush1.msra.mxu0 %v1038
  %1791 = vmatprep.subr.mxu0 0.0
  %1792 = vmatpush1.msra.mxu0 %v1039
  %1793 = vmatprep.subr.mxu0 0.0
  %1794 = vmatpush1.msra.mxu0 %v1040
  %1795 = vmatprep.subr.mxu0 0.0
  %1796 = vmatpush1.msra.mxu0 0.0
  %1797 = vmatprep.subr.mxu0 0.0
  %1798 = vmatpush1.msra.mxu0 0.0
  %1799 = vmatprep.subr.mxu0 0.0
  %1800 = vmatpush1.msra.mxu0 0.0
  %1801 = vmatprep.subr.mxu0 0.0
  %1802 = vmatpush1.msra.mxu0 0.0
  %1803 = vmatprep.subr.mxu0 0.0
  %1804 = vmatpush1.msra.mxu0 0.0
  %1805 = vmatprep.subr.mxu0 0.0
  %1806 = vmatpush1.msra.mxu0 0.0
  %1807 = vmatprep.subr.mxu0 0.0
  %1808 = vmatpush1.msra.mxu0 0.0
  %1809 = vmatprep.subr.mxu0 0.0
  %1810 = vmatpush1.msra.mxu0 0.0
  %1811 = vmatprep.subr.mxu0 0.0
  %1812 = vmatpush1.msra.mxu0 0.0
  %1813 = vmatprep.subr.mxu0 0.0
  %1814 = vmatpush1.msra.mxu0 0.0
  %1815 = vmatprep.subr.mxu0 0.0
  %1816 = vmatpush1.msra.mxu0 0.0
  %1817 = vmatprep.subr.mxu0 0.0
  %1818 = vmatpush1.msra.mxu0 0.0
  %1819 = vmatprep.subr.mxu0 0.0
  %1820 = vmatpush1.msra.mxu0 0.0
  %1821 = vmatprep.subr.mxu0 0.0
  %1822 = vmatpush1.msra.mxu0 0.0
  %1823 = vmatprep.subr.mxu0 0.0
  %1824 = vmatpush1.msra.mxu0 0.0
  %1825 = vmatprep.subr.mxu0 0.0
  %1826 = vmatpush1.msra.mxu0 0.0
  %1827 = vmatprep.subr.mxu0 0.0
  %1828 = vmatpush1.msra.mxu0 0.0
  %1829 = vmatprep.subr.mxu0 0.0
  %1830 = vmatpush1.msra.mxu0 0.0
  %1831 = vmatprep.subr.mxu0 0.0
  %1832 = vmatpush1.msra.mxu0 0.0
  %1833 = vmatprep.subr.mxu0 0.0
  %1834 = vmatpush1.msra.mxu0 0.0
  %1835 = vmatprep.subr.mxu0 0.0
  %1836 = vmatpush1.msra.mxu0 0.0
  %1837 = vmatprep.subr.mxu0 0.0
  %1838 = vmatpush1.msra.mxu0 0.0
  %1839 = vmatprep.subr.mxu0 0.0
  %1840 = vmatpush1.msra.mxu0 0.0
  %1841 = vmatprep.subr.mxu0 0.0
  %1842 = vmatpush1.msra.mxu0 0.0
  %1843 = vmatprep.subr.mxu0 0.0
  %1844 = vmatpush1.msra.mxu0 0.0
  %1845 = vmatprep.subr.mxu0 0.0
  %1846 = vmatpush1.msra.mxu0 0.0
  %1847 = vmatprep.subr.mxu0 0.0
  %1848 = vmatpush1.msra.mxu0 0.0
  %1849 = vmatprep.subr.mxu0 0.0
  %1850 = vmatpush1.msra.mxu0 0.0
  %1851 = vmatprep.mubr.f32.mxu0 0.0
  %1852 = vmatmul.mubr.f32.gmra.mrb[0].mxu0 %v1779
  %v1853 = vpop.f32.mrb[0].mxu0
  %v1854 = vadd.f32 %v1122, %v1853
  %v1855 = vpop.f32.mrb[0].mxu0
  %1856 = vmatprep.mubr.f32.mxu0 0.0
  %1857 = vmatmul.mubr.f32.gmra.mrb[0].mxu0 %v1782
  %v1858 = vpop.f32.mrb[0].mxu0
  %v1859 = vadd.f32 %v1127, %v1858
  %v1860 = vpop.f32.mrb[0].mxu0
  %1861 = vmatprep.mubr.f32.mxu0 0.0
  %1862 = vmatmul.mubr.f32.gmra.mrb[0].mxu0 %v1785
  %v1863 = vpop.f32.mrb[0].mxu0
  %v1864 = vadd.f32 %v1132, %v1863
  %v1865 = vpop.f32.mrb[0].mxu0
  %1866 = vdwg.mxu0
  %v1868 = vsel %vm550, %v529, 0
  %v1871 = vsel %vm550, %v530, 0
  %v1874 = vsel %vm550, %v531, 0
  %1876 = vmatprep.subr.mxu0 0.0
  %1877 = vmatpush1.msra.mxu0 %v1136
  %1878 = vmatprep.subr.mxu0 0.0
  %1879 = vmatpush1.msra.mxu0 %v1137
  %1880 = vmatprep.subr.mxu0 0.0
  %1881 = vmatpush1.msra.mxu0 %v1138
  %1882 = vmatprep.subr.mxu0 0.0
  %1883 = vmatpush1.msra.mxu0 %v1139
  %1884 = vmatprep.subr.mxu0 0.0
  %1885 = vmatpush1.msra.mxu0 0.0
  %1886 = vmatprep.subr.mxu0 0.0
  %1887 = vmatpush1.msra.mxu0 0.0
  %1888 = vmatprep.subr.mxu0 0.0
  %1889 = vmatpush1.msra.mxu0 0.0
  %1890 = vmatprep.subr.mxu0 0.0
  %1891 = vmatpush1.msra.mxu0 0.0
  %1892 = vmatprep.subr.mxu0 0.0
  %1893 = vmatpush1.msra.mxu0 0.0
  %1894 = vmatprep.subr.mxu0 0.0
  %1895 = vmatpush1.msra.mxu0 0.0
  %1896 = vmatprep.subr.mxu0 0.0
  %1897 = vmatpush1.msra.mxu0 0.0
  %1898 = vmatprep.subr.mxu0 0.0
  %1899 = vmatpush1.msra.mxu0 0.0
  %1900 = vmatprep.subr.mxu0 0.0
  %1901 = vmatpush1.msra.mxu0 0.0
  %1902 = vmatprep.subr.mxu0 0.0
  %1903 = vmatpush1.msra.mxu0 0.0
  %1904 = vmatprep.subr.mxu0 0.0
  %1905 = vmatpush1.msra.mxu0 0.0
  %1906 = vmatprep.subr.mxu0 0.0
  %1907 = vmatpush1.msra.mxu0 0.0
  %1908 = vmatprep.subr.mxu0 0.0
  %1909 = vmatpush1.msra.mxu0 0.0
  %1910 = vmatprep.subr.mxu0 0.0
  %1911 = vmatpush1.msra.mxu0 0.0
  %1912 = vmatprep.subr.mxu0 0.0
  %1913 = vmatpush1.msra.mxu0 0.0
  %1914 = vmatprep.subr.mxu0 0.0
  %1915 = vmatpush1.msra.mxu0 0.0
  %1916 = vmatprep.subr.mxu0 0.0
  %1917 = vmatpush1.msra.mxu0 0.0
  %1918 = vmatprep.subr.mxu0 0.0
  %1919 = vmatpush1.msra.mxu0 0.0
  %1920 = vmatprep.subr.mxu0 0.0
  %1921 = vmatpush1.msra.mxu0 0.0
  %1922 = vmatprep.subr.mxu0 0.0
  %1923 = vmatpush1.msra.mxu0 0.0
  %1924 = vmatprep.subr.mxu0 0.0
  %1925 = vmatpush1.msra.mxu0 0.0
  %1926 = vmatprep.subr.mxu0 0.0
  %1927 = vmatpush1.msra.mxu0 0.0
  %1928 = vmatprep.subr.mxu0 0.0
  %1929 = vmatpush1.msra.mxu0 0.0
  %1930 = vmatprep.subr.mxu0 0.0
  %1931 = vmatpush1.msra.mxu0 0.0
  %1932 = vmatprep.subr.mxu0 0.0
  %1933 = vmatpush1.msra.mxu0 0.0
  %1934 = vmatprep.subr.mxu0 0.0
  %1935 = vmatpush1.msra.mxu0 0.0
  %1936 = vmatprep.subr.mxu0 0.0
  %1937 = vmatpush1.msra.mxu0 0.0
  %1938 = vmatprep.subr.mxu0 0.0
  %1939 = vmatpush1.msra.mxu0 0.0
  %1940 = vmatprep.mubr.f32.mxu0 0.0
  %1941 = vmatmul.mubr.f32.gmra.mrb[0].mxu0 %v1868
  %v1942 = vpop.f32.mrb[0].mxu0
  %v1943 = vadd.f32 %v1221, %v1942
  %v1944 = vpop.f32.mrb[0].mxu0
  %1945 = vmatprep.mubr.f32.mxu0 0.0
  %1946 = vmatmul.mubr.f32.gmra.mrb[0].mxu0 %v1871
  %v1947 = vpop.f32.mrb[0].mxu0
  %v1948 = vadd.f32 %v1226, %v1947
  %v1949 = vpop.f32.mrb[0].mxu0
  %1950 = vmatprep.mubr.f32.mxu0 0.0
  %1951 = vmatmul.mubr.f32.gmra.mrb[0].mxu0 %v1874
  %v1952 = vpop.f32.mrb[0].mxu0
  %v1953 = vadd.f32 %v1231, %v1952
  %v1954 = vpop.f32.mrb[0].mxu0
  %1955 = vdwg.mxu0
  %v1957 = vsel %vm550, %v535, 0
  %v1960 = vsel %vm550, %v536, 0
  %v1963 = vsel %vm550, %v537, 0
  %1965 = vmatprep.subr.mxu0 0.0
  %1966 = vmatpush1.msra.mxu0 %v1235
  %1967 = vmatprep.subr.mxu0 0.0
  %1968 = vmatpush1.msra.mxu0 %v1236
  %1969 = vmatprep.subr.mxu0 0.0
  %1970 = vmatpush1.msra.mxu0 %v1237
  %1971 = vmatprep.subr.mxu0 0.0
  %1972 = vmatpush1.msra.mxu0 %v1238
  %1973 = vmatprep.subr.mxu0 0.0
  %1974 = vmatpush1.msra.mxu0 0.0
  %1975 = vmatprep.subr.mxu0 0.0
  %1976 = vmatpush1.msra.mxu0 0.0
  %1977 = vmatprep.subr.mxu0 0.0
  %1978 = vmatpush1.msra.mxu0 0.0
  %1979 = vmatprep.subr.mxu0 0.0
  %1980 = vmatpush1.msra.mxu0 0.0
  %1981 = vmatprep.subr.mxu0 0.0
  %1982 = vmatpush1.msra.mxu0 0.0
  %1983 = vmatprep.subr.mxu0 0.0
  %1984 = vmatpush1.msra.mxu0 0.0
  %1985 = vmatprep.subr.mxu0 0.0
  %1986 = vmatpush1.msra.mxu0 0.0
  %1987 = vmatprep.subr.mxu0 0.0
  %1988 = vmatpush1.msra.mxu0 0.0
  %1989 = vmatprep.subr.mxu0 0.0
  %1990 = vmatpush1.msra.mxu0 0.0
  %1991 = vmatprep.subr.mxu0 0.0
  %1992 = vmatpush1.msra.mxu0 0.0
  %1993 = vmatprep.subr.mxu0 0.0
  %1994 = vmatpush1.msra.mxu0 0.0
  %1995 = vmatprep.subr.mxu0 0.0
  %1996 = vmatpush1.msra.mxu0 0.0
  %1997 = vmatprep.subr.mxu0 0.0
  %1998 = vmatpush1.msra.mxu0 0.0
  %1999 = vmatprep.subr.mxu0 0.0
  %2000 = vmatpush1.msra.mxu0 0.0
  %2001 = vmatprep.subr.mxu0 0.0
  %2002 = vmatpush1.msra.mxu0 0.0
  %2003 = vmatprep.subr.mxu0 0.0
  %2004 = vmatpush1.msra.mxu0 0.0
  %2005 = vmatprep.subr.mxu0 0.0
  %2006 = vmatpush1.msra.mxu0 0.0
  %2007 = vmatprep.subr.mxu0 0.0
  %2008 = vmatpush1.msra.mxu0 0.0
  %2009 = vmatprep.subr.mxu0 0.0
  %2010 = vmatpush1.msra.mxu0 0.0
  %2011 = vmatprep.subr.mxu0 0.0
  %2012 = vmatpush1.msra.mxu0 0.0
  %2013 = vmatprep.subr.mxu0 0.0
  %2014 = vmatpush1.msra.mxu0 0.0
  %2015 = vmatprep.subr.mxu0 0.0
  %2016 = vmatpush1.msra.mxu0 0.0
  %2017 = vmatprep.subr.mxu0 0.0
  %2018 = vmatpush1.msra.mxu0 0.0
  %2019 = vmatprep.subr.mxu0 0.0
  %2020 = vmatpush1.msra.mxu0 0.0
  %2021 = vmatprep.subr.mxu0 0.0
  %2022 = vmatpush1.msra.mxu0 0.0
  %2023 = vmatprep.subr.mxu0 0.0
  %2024 = vmatpush1.msra.mxu0 0.0
  %2025 = vmatprep.subr.mxu0 0.0
  %2026 = vmatpush1.msra.mxu0 0.0
  %2027 = vmatprep.subr.mxu0 0.0
  %2028 = vmatpush1.msra.mxu0 0.0
  %2029 = vmatprep.mubr.f32.mxu0 0.0
  %2030 = vmatmul.mubr.f32.gmra.mrb[0].mxu0 %v1957
  %v2031 = vpop.f32.mrb[0].mxu0
  %v2032 = vadd.f32 %v1320, %v2031
  %v2033 = vpop.f32.mrb[0].mxu0
  %2034 = vmatprep.mubr.f32.mxu0 0.0
  %2035 = vmatmul.mubr.f32.gmra.mrb[0].mxu0 %v1960
  %v2036 = vpop.f32.mrb[0].mxu0
  %v2037 = vadd.f32 %v1325, %v2036
  %v2038 = vpop.f32.mrb[0].mxu0
  %2039 = vmatprep.mubr.f32.mxu0 0.0
  %2040 = vmatmul.mubr.f32.gmra.mrb[0].mxu0 %v1963
  %v2041 = vpop.f32.mrb[0].mxu0
  %v2042 = vadd.f32 %v1330, %v2041
  %v2043 = vpop.f32.mrb[0].mxu0
  %2044 = vdwg.mxu0
  %v2045 = vadd.f32 %v1409, %v1498
  %v2046 = vadd.f32 %v1414, %v1503
  %v2047 = vadd.f32 %v1419, %v1508
  %v2048 = vadd.f32 %v1587, %v1676
  %v2049 = vadd.f32 %v1592, %v1681
  %v2050 = vadd.f32 %v1597, %v1686
  %v2051 = vadd.f32 %v1765, %v1854
  %v2052 = vadd.f32 %v1770, %v1859
  %v2053 = vadd.f32 %v1775, %v1864
  %v2054 = vadd.f32 %v1943, %v2032
  %v2055 = vadd.f32 %v1948, %v2037
  %v2056 = vadd.f32 %v1953, %v2042
  %v2057 = vadd.f32 %v2045, %v2048
  %v2058 = vadd.f32 %v2046, %v2049
  %v2059 = vadd.f32 %v2047, %v2050
  %v2060 = vadd.f32 %v2051, %v2054
  %v2061 = vadd.f32 %v2052, %v2055
  %v2062 = vadd.f32 %v2053, %v2056
  %v2063 = vadd.f32 %v2057, %v2060
  %v2064 = vadd.f32 %v2058, %v2061
  %v2065 = vadd.f32 %v2059, %v2062
  %v2066 = vld [vmem:[%s4] sm:$0x1]
  %v2068 = vlaneseq
  %v2069 = vshrl.u32 %v2068, 7
  %v2070 = vsub.s32 0, %v2069
  %v2071 = vrot.slane %v2066, %v2070
  %v2073 = vadd.f32 %v2063, %v2071
  %v2074 = vadd.f32 %v2064, %v2071
  %v2075 = vadd.f32 %v2065, %v2071
  %v2076 = vmax.f32 %v2073, 0.0
  %v2077 = vmax.f32 %v2074, 0.0
  %v2078 = vmax.f32 %v2075, 0.0
  %v2079 = vld [vmem:[%s5] sm:$0xff]
  %v2080 = vld [vmem:[%s5 + $0x8] sm:$0xff]
  %v2081 = vld [vmem:[%s5 + $0x10] sm:$0xff]
  %v2082 = vld [vmem:[%s5 + $0x18] sm:$0xff]
  %v2083 = vld [vmem:[%s5 + $0x20] sm:$0xff]
  %v2084 = vld [vmem:[%s5 + $0x28] sm:$0xff]
  %v2085 = vld [vmem:[%s5 + $0x30] sm:$0xff]
  %v2086 = vld [vmem:[%s5 + $0x38] sm:$0xff]
  %s2087 = scalar_lea.vmem %s5, 64
  %v2088 = vld [vmem:[%s2087] sm:$0xff]
  %v2089 = vld [vmem:[%s2087 + $0x8] sm:$0xff]
  %v2090 = vld [vmem:[%s2087 + $0x10] sm:$0xff]
  %v2091 = vld [vmem:[%s2087 + $0x18] sm:$0xff]
  %v2092 = vld [vmem:[%s2087 + $0x20] sm:$0xff]
  %v2093 = vld [vmem:[%s2087 + $0x28] sm:$0xff]
  %v2094 = vld [vmem:[%s2087 + $0x30] sm:$0xff]
  %v2095 = vld [vmem:[%s2087 + $0x38] sm:$0xff]
  %v2097 = vrot.slane %v2076, 2
  %vm2098 = vcmask 523264
  %v2099 = vsel %vm2098, %v2097, 0
  %2101 = vmatprep.subr.mxu0 0.0
  %2102 = vmatpush1.msra.mxu0 %v2088
  %2103 = vmatprep.subr.mxu0 0.0
  %2104 = vmatpush1.msra.mxu0 %v2089
  %2105 = vmatprep.subr.mxu0 0.0
  %2106 = vmatpush1.msra.mxu0 %v2090
  %2107 = vmatprep.subr.mxu0 0.0
  %2108 = vmatpush1.msra.mxu0 %v2091
  %2109 = vmatprep.subr.mxu0 0.0
  %2110 = vmatpush1.msra.mxu0 %v2092
  %2111 = vmatprep.subr.mxu0 0.0
  %2112 = vmatpush1.msra.mxu0 %v2093
  %2113 = vmatprep.subr.mxu0 0.0
  %2114 = vmatpush1.msra.mxu0 %v2094
  %2115 = vmatprep.subr.mxu0 0.0
  %2116 = vmatpush1.msra.mxu0 %v2095
  %2117 = vmatprep.subr.mxu0 0.0
  %2118 = vmatpush1.msra.mxu0 0.0
  %2119 = vmatprep.subr.mxu0 0.0
  %2120 = vmatpush1.msra.mxu0 0.0
  %2121 = vmatprep.subr.mxu0 0.0
  %2122 = vmatpush1.msra.mxu0 0.0
  %2123 = vmatprep.subr.mxu0 0.0
  %2124 = vmatpush1.msra.mxu0 0.0
  %2125 = vmatprep.subr.mxu0 0.0
  %2126 = vmatpush1.msra.mxu0 0.0
  %2127 = vmatprep.subr.mxu0 0.0
  %2128 = vmatpush1.msra.mxu0 0.0
  %2129 = vmatprep.subr.mxu0 0.0
  %2130 = vmatpush1.msra.mxu0 0.0
  %2131 = vmatprep.subr.mxu0 0.0
  %2132 = vmatpush1.msra.mxu0 0.0
  %2133 = vmatprep.subr.mxu0 0.0
  %2134 = vmatpush1.msra.mxu0 0.0
  %2135 = vmatprep.subr.mxu0 0.0
  %2136 = vmatpush1.msra.mxu0 0.0
  %2137 = vmatprep.subr.mxu0 0.0
  %2138 = vmatpush1.msra.mxu0 0.0
  %2139 = vmatprep.subr.mxu0 0.0
  %2140 = vmatpush1.msra.mxu0 0.0
  %2141 = vmatprep.subr.mxu0 0.0
  %2142 = vmatpush1.msra.mxu0 0.0
  %2143 = vmatprep.subr.mxu0 0.0
  %2144 = vmatpush1.msra.mxu0 0.0
  %2145 = vmatprep.subr.mxu0 0.0
  %2146 = vmatpush1.msra.mxu0 0.0
  %2147 = vmatprep.subr.mxu0 0.0
  %2148 = vmatpush1.msra.mxu0 0.0
  %2149 = vmatprep.subr.mxu0 0.0
  %2150 = vmatpush1.msra.mxu0 0.0
  %2151 = vmatprep.subr.mxu0 0.0
  %2152 = vmatpush1.msra.mxu0 0.0
  %2153 = vmatprep.subr.mxu0 0.0
  %2154 = vmatpush1.msra.mxu0 0.0
  %2155 = vmatprep.subr.mxu0 0.0
  %2156 = vmatpush1.msra.mxu0 0.0
  %2157 = vmatprep.subr.mxu0 0.0
  %2158 = vmatpush1.msra.mxu0 0.0
  %2159 = vmatprep.subr.mxu0 0.0
  %2160 = vmatpush1.msra.mxu0 0.0
  %2161 = vmatprep.subr.mxu0 0.0
  %2162 = vmatpush1.msra.mxu0 0.0
  %2163 = vmatprep.subr.mxu0 0.0
  %2164 = vmatpush1.msra.mxu0 0.0
  %2165 = vmatprep.mubr.f32.mxu0 0.0
  %2166 = vmatmul.mubr.f32.gmra.mrb[0].mxu0 %v2099
  %v2167 = vpop.f32.mrb[0].mxu0
  %v2168 = vadd.f32 0.0, %v2167
  %v2169 = vpop.f32.mrb[0].mxu0
  %2170 = vdwg.mxu0
  %s2171 = scalar_lea.vmem %s5, 128
  %v2172 = vld [vmem:[%s2171] sm:$0xff]
  %v2173 = vld [vmem:[%s2171 + $0x8] sm:$0xff]
  %v2174 = vld [vmem:[%s2171 + $0x10] sm:$0xff]
  %v2175 = vld [vmem:[%s2171 + $0x18] sm:$0xff]
  %v2176 = vld [vmem:[%s2171 + $0x20] sm:$0xff]
  %v2177 = vld [vmem:[%s2171 + $0x28] sm:$0xff]
  %v2178 = vld [vmem:[%s2171 + $0x30] sm:$0xff]
  %v2179 = vld [vmem:[%s2171 + $0x38] sm:$0xff]
  %s2180 = scalar_lea.vmem %s5, 192
  %v2181 = vld [vmem:[%s2180] sm:$0xff]
  %v2182 = vld [vmem:[%s2180 + $0x8] sm:$0xff]
  %v2183 = vld [vmem:[%s2180 + $0x10] sm:$0xff]
  %v2184 = vld [vmem:[%s2180 + $0x18] sm:$0xff]
  %v2185 = vld [vmem:[%s2180 + $0x20] sm:$0xff]
  %v2186 = vld [vmem:[%s2180 + $0x28] sm:$0xff]
  %v2187 = vld [vmem:[%s2180 + $0x30] sm:$0xff]
  %v2188 = vld [vmem:[%s2180 + $0x38] sm:$0xff]
  %v2189 = vrot.slane %v2076, 6
  %v2190 = vsel %vm2098, %v2189, 0
  %2192 = vmatprep.subr.mxu0 0.0
  %2193 = vmatpush1.msra.mxu0 %v2181
  %2194 = vmatprep.subr.mxu0 0.0
  %2195 = vmatpush1.msra.mxu0 %v2182
  %2196 = vmatprep.subr.mxu0 0.0
  %2197 = vmatpush1.msra.mxu0 %v2183
  %2198 = vmatprep.subr.mxu0 0.0
  %2199 = vmatpush1.msra.mxu0 %v2184
  %2200 = vmatprep.subr.mxu0 0.0
  %2201 = vmatpush1.msra.mxu0 %v2185
  %2202 = vmatprep.subr.mxu0 0.0
  %2203 = vmatpush1.msra.mxu0 %v2186
  %2204 = vmatprep.subr.mxu0 0.0
  %2205 = vmatpush1.msra.mxu0 %v2187
  %2206 = vmatprep.subr.mxu0 0.0
  %2207 = vmatpush1.msra.mxu0 %v2188
  %2208 = vmatprep.subr.mxu0 0.0
  %2209 = vmatpush1.msra.mxu0 0.0
  %2210 = vmatprep.subr.mxu0 0.0
  %2211 = vmatpush1.msra.mxu0 0.0
  %2212 = vmatprep.subr.mxu0 0.0
  %2213 = vmatpush1.msra.mxu0 0.0
  %2214 = vmatprep.subr.mxu0 0.0
  %2215 = vmatpush1.msra.mxu0 0.0
  %2216 = vmatprep.subr.mxu0 0.0
  %2217 = vmatpush1.msra.mxu0 0.0
  %2218 = vmatprep.subr.mxu0 0.0
  %2219 = vmatpush1.msra.mxu0 0.0
  %2220 = vmatprep.subr.mxu0 0.0
  %2221 = vmatpush1.msra.mxu0 0.0
  %2222 = vmatprep.subr.mxu0 0.0
  %2223 = vmatpush1.msra.mxu0 0.0
  %2224 = vmatprep.subr.mxu0 0.0
  %2225 = vmatpush1.msra.mxu0 0.0
  %2226 = vmatprep.subr.mxu0 0.0
  %2227 = vmatpush1.msra.mxu0 0.0
  %2228 = vmatprep.subr.mxu0 0.0
  %2229 = vmatpush1.msra.mxu0 0.0
  %2230 = vmatprep.subr.mxu0 0.0
  %2231 = vmatpush1.msra.mxu0 0.0
  %2232 = vmatprep.subr.mxu0 0.0
  %2233 = vmatpush1.msra.mxu0 0.0
  %2234 = vmatprep.subr.mxu0 0.0
  %2235 = vmatpush1.msra.mxu0 0.0
  %2236 = vmatprep.subr.mxu0 0.0
  %2237 = vmatpush1.msra.mxu0 0.0
  %2238 = vmatprep.subr.mxu0 0.0
  %2239 = vmatpush1.msra.mxu0 0.0
  %2240 = vmatprep.subr.mxu0 0.0
  %2241 = vmatpush1.msra.mxu0 0.0
  %2242 = vmatprep.subr.mxu0 0.0
  %2243 = vmatpush1.msra.mxu0 0.0
  %2244 = vmatprep.subr.mxu0 0.0
  %2245 = vmatpush1.msra.mxu0 0.0
  %2246 = vmatprep.subr.mxu0 0.0
  %2247 = vmatpush1.msra.mxu0 0.0
  %2248 = vmatprep.subr.mxu0 0.0
  %2249 = vmatpush1.msra.mxu0 0.0
  %2250 = vmatprep.subr.mxu0 0.0
  %2251 = vmatpush1.msra.mxu0 0.0
  %2252 = vmatprep.subr.mxu0 0.0
  %2253 = vmatpush1.msra.mxu0 0.0
  %2254 = vmatprep.subr.mxu0 0.0
  %2255 = vmatpush1.msra.mxu0 0.0
  %2256 = vmatprep.mubr.f32.mxu0 0.0
  %2257 = vmatmul.mubr.f32.gmra.mrb[0].mxu0 %v2190
  %v2258 = vpop.f32.mrb[0].mxu0
  %v2259 = vadd.f32 0.0, %v2258
  %v2260 = vpop.f32.mrb[0].mxu0
  %2261 = vdwg.mxu0
  %s2262 = scalar_lea.vmem %s5, 256
  %v2263 = vld [vmem:[%s2262] sm:$0xff]
  %v2264 = vld [vmem:[%s2262 + $0x8] sm:$0xff]
  %v2265 = vld [vmem:[%s2262 + $0x10] sm:$0xff]
  %v2266 = vld [vmem:[%s2262 + $0x18] sm:$0xff]
  %v2267 = vld [vmem:[%s2262 + $0x20] sm:$0xff]
  %v2268 = vld [vmem:[%s2262 + $0x28] sm:$0xff]
  %v2269 = vld [vmem:[%s2262 + $0x30] sm:$0xff]
  %v2270 = vld [vmem:[%s2262 + $0x38] sm:$0xff]
  %s2271 = scalar_lea.vmem %s5, 320
  %v2272 = vld [vmem:[%s2271] sm:$0xff]
  %v2273 = vld [vmem:[%s2271 + $0x8] sm:$0xff]
  %v2274 = vld [vmem:[%s2271 + $0x10] sm:$0xff]
  %v2275 = vld [vmem:[%s2271 + $0x18] sm:$0xff]
  %v2276 = vld [vmem:[%s2271 + $0x20] sm:$0xff]
  %v2277 = vld [vmem:[%s2271 + $0x28] sm:$0xff]
  %v2278 = vld [vmem:[%s2271 + $0x30] sm:$0xff]
  %v2279 = vld [vmem:[%s2271 + $0x38] sm:$0xff]
  %v2281 = vrot.slane %v2077, 2
  %v2282 = vsel %vm2098, %v2281, 0
  %2284 = vmatprep.subr.mxu0 0.0
  %2285 = vmatpush1.msra.mxu0 %v2272
  %2286 = vmatprep.subr.mxu0 0.0
  %2287 = vmatpush1.msra.mxu0 %v2273
  %2288 = vmatprep.subr.mxu0 0.0
  %2289 = vmatpush1.msra.mxu0 %v2274
  %2290 = vmatprep.subr.mxu0 0.0
  %2291 = vmatpush1.msra.mxu0 %v2275
  %2292 = vmatprep.subr.mxu0 0.0
  %2293 = vmatpush1.msra.mxu0 %v2276
  %2294 = vmatprep.subr.mxu0 0.0
  %2295 = vmatpush1.msra.mxu0 %v2277
  %2296 = vmatprep.subr.mxu0 0.0
  %2297 = vmatpush1.msra.mxu0 %v2278
  %2298 = vmatprep.subr.mxu0 0.0
  %2299 = vmatpush1.msra.mxu0 %v2279
  %2300 = vmatprep.subr.mxu0 0.0
  %2301 = vmatpush1.msra.mxu0 0.0
  %2302 = vmatprep.subr.mxu0 0.0
  %2303 = vmatpush1.msra.mxu0 0.0
  %2304 = vmatprep.subr.mxu0 0.0
  %2305 = vmatpush1.msra.mxu0 0.0
  %2306 = vmatprep.subr.mxu0 0.0
  %2307 = vmatpush1.msra.mxu0 0.0
  %2308 = vmatprep.subr.mxu0 0.0
  %2309 = vmatpush1.msra.mxu0 0.0
  %2310 = vmatprep.subr.mxu0 0.0
  %2311 = vmatpush1.msra.mxu0 0.0
  %2312 = vmatprep.subr.mxu0 0.0
  %2313 = vmatpush1.msra.mxu0 0.0
  %2314 = vmatprep.subr.mxu0 0.0
  %2315 = vmatpush1.msra.mxu0 0.0
  %2316 = vmatprep.subr.mxu0 0.0
  %2317 = vmatpush1.msra.mxu0 0.0
  %2318 = vmatprep.subr.mxu0 0.0
  %2319 = vmatpush1.msra.mxu0 0.0
  %2320 = vmatprep.subr.mxu0 0.0
  %2321 = vmatpush1.msra.mxu0 0.0
  %2322 = vmatprep.subr.mxu0 0.0
  %2323 = vmatpush1.msra.mxu0 0.0
  %2324 = vmatprep.subr.mxu0 0.0
  %2325 = vmatpush1.msra.mxu0 0.0
  %2326 = vmatprep.subr.mxu0 0.0
  %2327 = vmatpush1.msra.mxu0 0.0
  %2328 = vmatprep.subr.mxu0 0.0
  %2329 = vmatpush1.msra.mxu0 0.0
  %2330 = vmatprep.subr.mxu0 0.0
  %2331 = vmatpush1.msra.mxu0 0.0
  %2332 = vmatprep.subr.mxu0 0.0
  %2333 = vmatpush1.msra.mxu0 0.0
  %2334 = vmatprep.subr.mxu0 0.0
  %2335 = vmatpush1.msra.mxu0 0.0
  %2336 = vmatprep.subr.mxu0 0.0
  %2337 = vmatpush1.msra.mxu0 0.0
  %2338 = vmatprep.subr.mxu0 0.0
  %2339 = vmatpush1.msra.mxu0 0.0
  %2340 = vmatprep.subr.mxu0 0.0
  %2341 = vmatpush1.msra.mxu0 0.0
  %2342 = vmatprep.subr.mxu0 0.0
  %2343 = vmatpush1.msra.mxu0 0.0
  %2344 = vmatprep.subr.mxu0 0.0
  %2345 = vmatpush1.msra.mxu0 0.0
  %2346 = vmatprep.subr.mxu0 0.0
  %2347 = vmatpush1.msra.mxu0 0.0
  %2348 = vmatprep.mubr.f32.mxu0 0.0
  %2349 = vmatmul.mubr.f32.gmra.mrb[0].mxu0 %v2282
  %v2350 = vpop.f32.mrb[0].mxu0
  %v2351 = vadd.f32 0.0, %v2350
  %v2352 = vpop.f32.mrb[0].mxu0
  %2353 = vdwg.mxu0
  %s2354 = scalar_lea.vmem %s5, 384
  %v2355 = vld [vmem:[%s2354] sm:$0xff]
  %v2356 = vld [vmem:[%s2354 + $0x8] sm:$0xff]
  %v2357 = vld [vmem:[%s2354 + $0x10] sm:$0xff]
  %v2358 = vld [vmem:[%s2354 + $0x18] sm:$0xff]
  %v2359 = vld [vmem:[%s2354 + $0x20] sm:$0xff]
  %v2360 = vld [vmem:[%s2354 + $0x28] sm:$0xff]
  %v2361 = vld [vmem:[%s2354 + $0x30] sm:$0xff]
  %v2362 = vld [vmem:[%s2354 + $0x38] sm:$0xff]
  %s2363 = scalar_lea.vmem %s5, 448
  %v2364 = vld [vmem:[%s2363] sm:$0xff]
  %v2365 = vld [vmem:[%s2363 + $0x8] sm:$0xff]
  %v2366 = vld [vmem:[%s2363 + $0x10] sm:$0xff]
  %v2367 = vld [vmem:[%s2363 + $0x18] sm:$0xff]
  %v2368 = vld [vmem:[%s2363 + $0x20] sm:$0xff]
  %v2369 = vld [vmem:[%s2363 + $0x28] sm:$0xff]
  %v2370 = vld [vmem:[%s2363 + $0x30] sm:$0xff]
  %v2371 = vld [vmem:[%s2363 + $0x38] sm:$0xff]
  %v2372 = vrot.slane %v2077, 6
  %v2373 = vsel %vm2098, %v2372, 0
  %2375 = vmatprep.subr.mxu0 0.0
  %2376 = vmatpush1.msra.mxu0 %v2364
  %2377 = vmatprep.subr.mxu0 0.0
  %2378 = vmatpush1.msra.mxu0 %v2365
  %2379 = vmatprep.subr.mxu0 0.0
  %2380 = vmatpush1.msra.mxu0 %v2366
  %2381 = vmatprep.subr.mxu0 0.0
  %2382 = vmatpush1.msra.mxu0 %v2367
  %2383 = vmatprep.subr.mxu0 0.0
  %2384 = vmatpush1.msra.mxu0 %v2368
  %2385 = vmatprep.subr.mxu0 0.0
  %2386 = vmatpush1.msra.mxu0 %v2369
  %2387 = vmatprep.subr.mxu0 0.0
  %2388 = vmatpush1.msra.mxu0 %v2370
  %2389 = vmatprep.subr.mxu0 0.0
  %2390 = vmatpush1.msra.mxu0 %v2371
  %2391 = vmatprep.subr.mxu0 0.0
  %2392 = vmatpush1.msra.mxu0 0.0
  %2393 = vmatprep.subr.mxu0 0.0
  %2394 = vmatpush1.msra.mxu0 0.0
  %2395 = vmatprep.subr.mxu0 0.0
  %2396 = vmatpush1.msra.mxu0 0.0
  %2397 = vmatprep.subr.mxu0 0.0
  %2398 = vmatpush1.msra.mxu0 0.0
  %2399 = vmatprep.subr.mxu0 0.0
  %2400 = vmatpush1.msra.mxu0 0.0
  %2401 = vmatprep.subr.mxu0 0.0
  %2402 = vmatpush1.msra.mxu0 0.0
  %2403 = vmatprep.subr.mxu0 0.0
  %2404 = vmatpush1.msra.mxu0 0.0
  %2405 = vmatprep.subr.mxu0 0.0
  %2406 = vmatpush1.msra.mxu0 0.0
  %2407 = vmatprep.subr.mxu0 0.0
  %2408 = vmatpush1.msra.mxu0 0.0
  %2409 = vmatprep.subr.mxu0 0.0
  %2410 = vmatpush1.msra.mxu0 0.0
  %2411 = vmatprep.subr.mxu0 0.0
  %2412 = vmatpush1.msra.mxu0 0.0
  %2413 = vmatprep.subr.mxu0 0.0
  %2414 = vmatpush1.msra.mxu0 0.0
  %2415 = vmatprep.subr.mxu0 0.0
  %2416 = vmatpush1.msra.mxu0 0.0
  %2417 = vmatprep.subr.mxu0 0.0
  %2418 = vmatpush1.msra.mxu0 0.0
  %2419 = vmatprep.subr.mxu0 0.0
  %2420 = vmatpush1.msra.mxu0 0.0
  %2421 = vmatprep.subr.mxu0 0.0
  %2422 = vmatpush1.msra.mxu0 0.0
  %2423 = vmatprep.subr.mxu0 0.0
  %2424 = vmatpush1.msra.mxu0 0.0
  %2425 = vmatprep.subr.mxu0 0.0
  %2426 = vmatpush1.msra.mxu0 0.0
  %2427 = vmatprep.subr.mxu0 0.0
  %2428 = vmatpush1.msra.mxu0 0.0
  %2429 = vmatprep.subr.mxu0 0.0
  %2430 = vmatpush1.msra.mxu0 0.0
  %2431 = vmatprep.subr.mxu0 0.0
  %2432 = vmatpush1.msra.mxu0 0.0
  %2433 = vmatprep.subr.mxu0 0.0
  %2434 = vmatpush1.msra.mxu0 0.0
  %2435 = vmatprep.subr.mxu0 0.0
  %2436 = vmatpush1.msra.mxu0 0.0
  %2437 = vmatprep.subr.mxu0 0.0
  %2438 = vmatpush1.msra.mxu0 0.0
  %2439 = vmatprep.mubr.f32.mxu0 0.0
  %2440 = vmatmul.mubr.f32.gmra.mrb[0].mxu0 %v2373
  %v2441 = vpop.f32.mrb[0].mxu0
  %v2442 = vadd.f32 0.0, %v2441
  %v2443 = vpop.f32.mrb[0].mxu0
  %2444 = vdwg.mxu0
  %s2445 = scalar_lea.vmem %s5, 512
  %v2446 = vld [vmem:[%s2445] sm:$0xff]
  %v2447 = vld [vmem:[%s2445 + $0x8] sm:$0xff]
  %v2448 = vld [vmem:[%s2445 + $0x10] sm:$0xff]
  %v2449 = vld [vmem:[%s2445 + $0x18] sm:$0xff]
  %v2450 = vld [vmem:[%s2445 + $0x20] sm:$0xff]
  %v2451 = vld [vmem:[%s2445 + $0x28] sm:$0xff]
  %v2452 = vld [vmem:[%s2445 + $0x30] sm:$0xff]
  %v2453 = vld [vmem:[%s2445 + $0x38] sm:$0xff]
  %v2455 = vsel %vm2098, %v2078, 0
  %2457 = vmatprep.subr.mxu0 0.0
  %2458 = vmatpush1.msra.mxu0 %v2446
  %2459 = vmatprep.subr.mxu0 0.0
  %2460 = vmatpush1.msra.mxu0 %v2447
  %2461 = vmatprep.subr.mxu0 0.0
  %2462 = vmatpush1.msra.mxu0 %v2448
  %2463 = vmatprep.subr.mxu0 0.0
  %2464 = vmatpush1.msra.mxu0 %v2449
  %2465 = vmatprep.subr.mxu0 0.0
  %2466 = vmatpush1.msra.mxu0 %v2450
  %2467 = vmatprep.subr.mxu0 0.0
  %2468 = vmatpush1.msra.mxu0 %v2451
  %2469 = vmatprep.subr.mxu0 0.0
  %2470 = vmatpush1.msra.mxu0 %v2452
  %2471 = vmatprep.subr.mxu0 0.0
  %2472 = vmatpush1.msra.mxu0 %v2453
  %2473 = vmatprep.subr.mxu0 0.0
  %2474 = vmatpush1.msra.mxu0 0.0
  %2475 = vmatprep.subr.mxu0 0.0
  %2476 = vmatpush1.msra.mxu0 0.0
  %2477 = vmatprep.subr.mxu0 0.0
  %2478 = vmatpush1.msra.mxu0 0.0
  %2479 = vmatprep.subr.mxu0 0.0
  %2480 = vmatpush1.msra.mxu0 0.0
  %2481 = vmatprep.subr.mxu0 0.0
  %2482 = vmatpush1.msra.mxu0 0.0
  %2483 = vmatprep.subr.mxu0 0.0
  %2484 = vmatpush1.msra.mxu0 0.0
  %2485 = vmatprep.subr.mxu0 0.0
  %2486 = vmatpush1.msra.mxu0 0.0
  %2487 = vmatprep.subr.mxu0 0.0
  %2488 = vmatpush1.msra.mxu0 0.0
  %2489 = vmatprep.subr.mxu0 0.0
  %2490 = vmatpush1.msra.mxu0 0.0
  %2491 = vmatprep.subr.mxu0 0.0
  %2492 = vmatpush1.msra.mxu0 0.0
  %2493 = vmatprep.subr.mxu0 0.0
  %2494 = vmatpush1.msra.mxu0 0.0
  %2495 = vmatprep.subr.mxu0 0.0
  %2496 = vmatpush1.msra.mxu0 0.0
  %2497 = vmatprep.subr.mxu0 0.0
  %2498 = vmatpush1.msra.mxu0 0.0
  %2499 = vmatprep.subr.mxu0 0.0
  %2500 = vmatpush1.msra.mxu0 0.0
  %2501 = vmatprep.subr.mxu0 0.0
  %2502 = vmatpush1.msra.mxu0 0.0
  %2503 = vmatprep.subr.mxu0 0.0
  %2504 = vmatpush1.msra.mxu0 0.0
  %2505 = vmatprep.subr.mxu0 0.0
  %2506 = vmatpush1.msra.mxu0 0.0
  %2507 = vmatprep.subr.mxu0 0.0
  %2508 = vmatpush1.msra.mxu0 0.0
  %2509 = vmatprep.subr.mxu0 0.0
  %2510 = vmatpush1.msra.mxu0 0.0
  %2511 = vmatprep.subr.mxu0 0.0
  %2512 = vmatpush1.msra.mxu0 0.0
  %2513 = vmatprep.subr.mxu0 0.0
  %2514 = vmatpush1.msra.mxu0 0.0
  %2515 = vmatprep.subr.mxu0 0.0
  %2516 = vmatpush1.msra.mxu0 0.0
  %2517 = vmatprep.subr.mxu0 0.0
  %2518 = vmatpush1.msra.mxu0 0.0
  %2519 = vmatprep.subr.mxu0 0.0
  %2520 = vmatpush1.msra.mxu0 0.0
  %2521 = vmatprep.mubr.f32.mxu0 0.0
  %2522 = vmatmul.mubr.f32.gmra.mrb[0].mxu0 %v2455
  %v2523 = vpop.f32.mrb[0].mxu0
  %v2524 = vadd.f32 0.0, %v2523
  %v2525 = vpop.f32.mrb[0].mxu0
  %2526 = vdwg.mxu0
  %v2527 = vsel %vm2098, %v2076, 0
  %2529 = vmatprep.subr.mxu0 0.0
  %2530 = vmatpush1.msra.mxu0 %v2079
  %2531 = vmatprep.subr.mxu0 0.0
  %2532 = vmatpush1.msra.mxu0 %v2080
  %2533 = vmatprep.subr.mxu0 0.0
  %2534 = vmatpush1.msra.mxu0 %v2081
  %2535 = vmatprep.subr.mxu0 0.0
  %2536 = vmatpush1.msra.mxu0 %v2082
  %2537 = vmatprep.subr.mxu0 0.0
  %2538 = vmatpush1.msra.mxu0 %v2083
  %2539 = vmatprep.subr.mxu0 0.0
  %2540 = vmatpush1.msra.mxu0 %v2084
  %2541 = vmatprep.subr.mxu0 0.0
  %2542 = vmatpush1.msra.mxu0 %v2085
  %2543 = vmatprep.subr.mxu0 0.0
  %2544 = vmatpush1.msra.mxu0 %v2086
  %2545 = vmatprep.subr.mxu0 0.0
  %2546 = vmatpush1.msra.mxu0 0.0
  %2547 = vmatprep.subr.mxu0 0.0
  %2548 = vmatpush1.msra.mxu0 0.0
  %2549 = vmatprep.subr.mxu0 0.0
  %2550 = vmatpush1.msra.mxu0 0.0
  %2551 = vmatprep.subr.mxu0 0.0
  %2552 = vmatpush1.msra.mxu0 0.0
  %2553 = vmatprep.subr.mxu0 0.0
  %2554 = vmatpush1.msra.mxu0 0.0
  %2555 = vmatprep.subr.mxu0 0.0
  %2556 = vmatpush1.msra.mxu0 0.0
  %2557 = vmatprep.subr.mxu0 0.0
  %2558 = vmatpush1.msra.mxu0 0.0
  %2559 = vmatprep.subr.mxu0 0.0
  %2560 = vmatpush1.msra.mxu0 0.0
  %2561 = vmatprep.subr.mxu0 0.0
  %2562 = vmatpush1.msra.mxu0 0.0
  %2563 = vmatprep.subr.mxu0 0.0
  %2564 = vmatpush1.msra.mxu0 0.0
  %2565 = vmatprep.subr.mxu0 0.0
  %2566 = vmatpush1.msra.mxu0 0.0
  %2567 = vmatprep.subr.mxu0 0.0
  %2568 = vmatpush1.msra.mxu0 0.0
  %2569 = vmatprep.subr.mxu0 0.0
  %2570 = vmatpush1.msra.mxu0 0.0
  %2571 = vmatprep.subr.mxu0 0.0
  %2572 = vmatpush1.msra.mxu0 0.0
  %2573 = vmatprep.subr.mxu0 0.0
  %2574 = vmatpush1.msra.mxu0 0.0
  %2575 = vmatprep.subr.mxu0 0.0
  %2576 = vmatpush1.msra.mxu0 0.0
  %2577 = vmatprep.subr.mxu0 0.0
  %2578 = vmatpush1.msra.mxu0 0.0
  %2579 = vmatprep.subr.mxu0 0.0
  %2580 = vmatpush1.msra.mxu0 0.0
  %2581 = vmatprep.subr.mxu0 0.0
  %2582 = vmatpush1.msra.mxu0 0.0
  %2583 = vmatprep.subr.mxu0 0.0
  %2584 = vmatpush1.msra.mxu0 0.0
  %2585 = vmatprep.subr.mxu0 0.0
  %2586 = vmatpush1.msra.mxu0 0.0
  %2587 = vmatprep.subr.mxu0 0.0
  %2588 = vmatpush1.msra.mxu0 0.0
  %2589 = vmatprep.subr.mxu0 0.0
  %2590 = vmatpush1.msra.mxu0 0.0
  %2591 = vmatprep.subr.mxu0 0.0
  %2592 = vmatpush1.msra.mxu0 0.0
  %2593 = vmatprep.mubr.f32.mxu0 0.0
  %2594 = vmatmul.mubr.f32.gmra.mrb[0].mxu0 %v2527
  %v2595 = vpop.f32.mrb[0].mxu0
  %v2596 = vadd.f32 %v2168, %v2595
  %v2597 = vpop.f32.mrb[0].mxu0
  %2598 = vdwg.mxu0
  %v2599 = vrot.slane %v2076, 4
  %v2600 = vsel %vm2098, %v2599, 0
  %2602 = vmatprep.subr.mxu0 0.0
  %2603 = vmatpush1.msra.mxu0 %v2172
  %2604 = vmatprep.subr.mxu0 0.0
  %2605 = vmatpush1.msra.mxu0 %v2173
  %2606 = vmatprep.subr.mxu0 0.0
  %2607 = vmatpush1.msra.mxu0 %v2174
  %2608 = vmatprep.subr.mxu0 0.0
  %2609 = vmatpush1.msra.mxu0 %v2175
  %2610 = vmatprep.subr.mxu0 0.0
  %2611 = vmatpush1.msra.mxu0 %v2176
  %2612 = vmatprep.subr.mxu0 0.0
  %2613 = vmatpush1.msra.mxu0 %v2177
  %2614 = vmatprep.subr.mxu0 0.0
  %2615 = vmatpush1.msra.mxu0 %v2178
  %2616 = vmatprep.subr.mxu0 0.0
  %2617 = vmatpush1.msra.mxu0 %v2179
  %2618 = vmatprep.subr.mxu0 0.0
  %2619 = vmatpush1.msra.mxu0 0.0
  %2620 = vmatprep.subr.mxu0 0.0
  %2621 = vmatpush1.msra.mxu0 0.0
  %2622 = vmatprep.subr.mxu0 0.0
  %2623 = vmatpush1.msra.mxu0 0.0
  %2624 = vmatprep.subr.mxu0 0.0
  %2625 = vmatpush1.msra.mxu0 0.0
  %2626 = vmatprep.subr.mxu0 0.0
  %2627 = vmatpush1.msra.mxu0 0.0
  %2628 = vmatprep.subr.mxu0 0.0
  %2629 = vmatpush1.msra.mxu0 0.0
  %2630 = vmatprep.subr.mxu0 0.0
  %2631 = vmatpush1.msra.mxu0 0.0
  %2632 = vmatprep.subr.mxu0 0.0
  %2633 = vmatpush1.msra.mxu0 0.0
  %2634 = vmatprep.subr.mxu0 0.0
  %2635 = vmatpush1.msra.mxu0 0.0
  %2636 = vmatprep.subr.mxu0 0.0
  %2637 = vmatpush1.msra.mxu0 0.0
  %2638 = vmatprep.subr.mxu0 0.0
  %2639 = vmatpush1.msra.mxu0 0.0
  %2640 = vmatprep.subr.mxu0 0.0
  %2641 = vmatpush1.msra.mxu0 0.0
  %2642 = vmatprep.subr.mxu0 0.0
  %2643 = vmatpush1.msra.mxu0 0.0
  %2644 = vmatprep.subr.mxu0 0.0
  %2645 = vmatpush1.msra.mxu0 0.0
  %2646 = vmatprep.subr.mxu0 0.0
  %2647 = vmatpush1.msra.mxu0 0.0
  %2648 = vmatprep.subr.mxu0 0.0
  %2649 = vmatpush1.msra.mxu0 0.0
  %2650 = vmatprep.subr.mxu0 0.0
  %2651 = vmatpush1.msra.mxu0 0.0
  %2652 = vmatprep.subr.mxu0 0.0
  %2653 = vmatpush1.msra.mxu0 0.0
  %2654 = vmatprep.subr.mxu0 0.0
  %2655 = vmatpush1.msra.mxu0 0.0
  %2656 = vmatprep.subr.mxu0 0.0
  %2657 = vmatpush1.msra.mxu0 0.0
  %2658 = vmatprep.subr.mxu0 0.0
  %2659 = vmatpush1.msra.mxu0 0.0
  %2660 = vmatprep.subr.mxu0 0.0
  %2661 = vmatpush1.msra.mxu0 0.0
  %2662 = vmatprep.subr.mxu0 0.0
  %2663 = vmatpush1.msra.mxu0 0.0
  %2664 = vmatprep.subr.mxu0 0.0
  %2665 = vmatpush1.msra.mxu0 0.0
  %2666 = vmatprep.mubr.f32.mxu0 0.0
  %2667 = vmatmul.mubr.f32.gmra.mrb[0].mxu0 %v2600
  %v2668 = vpop.f32.mrb[0].mxu0
  %v2669 = vadd.f32 %v2259, %v2668
  %v2670 = vpop.f32.mrb[0].mxu0
  %2671 = vdwg.mxu0
  %v2672 = vsel %vm2098, %v2077, 0
  %2674 = vmatprep.subr.mxu0 0.0
  %2675 = vmatpush1.msra.mxu0 %v2263
  %2676 = vmatprep.subr.mxu0 0.0
  %2677 = vmatpush1.msra.mxu0 %v2264
  %2678 = vmatprep.subr.mxu0 0.0
  %2679 = vmatpush1.msra.mxu0 %v2265
  %2680 = vmatprep.subr.mxu0 0.0
  %2681 = vmatpush1.msra.mxu0 %v2266
  %2682 = vmatprep.subr.mxu0 0.0
  %2683 = vmatpush1.msra.mxu0 %v2267
  %2684 = vmatprep.subr.mxu0 0.0
  %2685 = vmatpush1.msra.mxu0 %v2268
  %2686 = vmatprep.subr.mxu0 0.0
  %2687 = vmatpush1.msra.mxu0 %v2269
  %2688 = vmatprep.subr.mxu0 0.0
  %2689 = vmatpush1.msra.mxu0 %v2270
  %2690 = vmatprep.subr.mxu0 0.0
  %2691 = vmatpush1.msra.mxu0 0.0
  %2692 = vmatprep.subr.mxu0 0.0
  %2693 = vmatpush1.msra.mxu0 0.0
  %2694 = vmatprep.subr.mxu0 0.0
  %2695 = vmatpush1.msra.mxu0 0.0
  %2696 = vmatprep.subr.mxu0 0.0
  %2697 = vmatpush1.msra.mxu0 0.0
  %2698 = vmatprep.subr.mxu0 0.0
  %2699 = vmatpush1.msra.mxu0 0.0
  %2700 = vmatprep.subr.mxu0 0.0
  %2701 = vmatpush1.msra.mxu0 0.0
  %2702 = vmatprep.subr.mxu0 0.0
  %2703 = vmatpush1.msra.mxu0 0.0
  %2704 = vmatprep.subr.mxu0 0.0
  %2705 = vmatpush1.msra.mxu0 0.0
  %2706 = vmatprep.subr.mxu0 0.0
  %2707 = vmatpush1.msra.mxu0 0.0
  %2708 = vmatprep.subr.mxu0 0.0
  %2709 = vmatpush1.msra.mxu0 0.0
  %2710 = vmatprep.subr.mxu0 0.0
  %2711 = vmatpush1.msra.mxu0 0.0
  %2712 = vmatprep.subr.mxu0 0.0
  %2713 = vmatpush1.msra.mxu0 0.0
  %2714 = vmatprep.subr.mxu0 0.0
  %2715 = vmatpush1.msra.mxu0 0.0
  %2716 = vmatprep.subr.mxu0 0.0
  %2717 = vmatpush1.msra.mxu0 0.0
  %2718 = vmatprep.subr.mxu0 0.0
  %2719 = vmatpush1.msra.mxu0 0.0
  %2720 = vmatprep.subr.mxu0 0.0
  %2721 = vmatpush1.msra.mxu0 0.0
  %2722 = vmatprep.subr.mxu0 0.0
  %2723 = vmatpush1.msra.mxu0 0.0
  %2724 = vmatprep.subr.mxu0 0.0
  %2725 = vmatpush1.msra.mxu0 0.0
  %2726 = vmatprep.subr.mxu0 0.0
  %2727 = vmatpush1.msra.mxu0 0.0
  %2728 = vmatprep.subr.mxu0 0.0
  %2729 = vmatpush1.msra.mxu0 0.0
  %2730 = vmatprep.subr.mxu0 0.0
  %2731 = vmatpush1.msra.mxu0 0.0
  %2732 = vmatprep.subr.mxu0 0.0
  %2733 = vmatpush1.msra.mxu0 0.0
  %2734 = vmatprep.subr.mxu0 0.0
  %2735 = vmatpush1.msra.mxu0 0.0
  %2736 = vmatprep.subr.mxu0 0.0
  %2737 = vmatpush1.msra.mxu0 0.0
  %2738 = vmatprep.mubr.f32.mxu0 0.0
  %2739 = vmatmul.mubr.f32.gmra.mrb[0].mxu0 %v2672
  %v2740 = vpop.f32.mrb[0].mxu0
  %v2741 = vadd.f32 %v2351, %v2740
  %v2742 = vpop.f32.mrb[0].mxu0
  %2743 = vdwg.mxu0
  %v2744 = vrot.slane %v2077, 4
  %v2745 = vsel %vm2098, %v2744, 0
  %2747 = vmatprep.subr.mxu0 0.0
  %2748 = vmatpush1.msra.mxu0 %v2355
  %2749 = vmatprep.subr.mxu0 0.0
  %2750 = vmatpush1.msra.mxu0 %v2356
  %2751 = vmatprep.subr.mxu0 0.0
  %2752 = vmatpush1.msra.mxu0 %v2357
  %2753 = vmatprep.subr.mxu0 0.0
  %2754 = vmatpush1.msra.mxu0 %v2358
  %2755 = vmatprep.subr.mxu0 0.0
  %2756 = vmatpush1.msra.mxu0 %v2359
  %2757 = vmatprep.subr.mxu0 0.0
  %2758 = vmatpush1.msra.mxu0 %v2360
  %2759 = vmatprep.subr.mxu0 0.0
  %2760 = vmatpush1.msra.mxu0 %v2361
  %2761 = vmatprep.subr.mxu0 0.0
  %2762 = vmatpush1.msra.mxu0 %v2362
  %2763 = vmatprep.subr.mxu0 0.0
  %2764 = vmatpush1.msra.mxu0 0.0
  %2765 = vmatprep.subr.mxu0 0.0
  %2766 = vmatpush1.msra.mxu0 0.0
  %2767 = vmatprep.subr.mxu0 0.0
  %2768 = vmatpush1.msra.mxu0 0.0
  %2769 = vmatprep.subr.mxu0 0.0
  %2770 = vmatpush1.msra.mxu0 0.0
  %2771 = vmatprep.subr.mxu0 0.0
  %2772 = vmatpush1.msra.mxu0 0.0
  %2773 = vmatprep.subr.mxu0 0.0
  %2774 = vmatpush1.msra.mxu0 0.0
  %2775 = vmatprep.subr.mxu0 0.0
  %2776 = vmatpush1.msra.mxu0 0.0
  %2777 = vmatprep.subr.mxu0 0.0
  %2778 = vmatpush1.msra.mxu0 0.0
  %2779 = vmatprep.subr.mxu0 0.0
  %2780 = vmatpush1.msra.mxu0 0.0
  %2781 = vmatprep.subr.mxu0 0.0
  %2782 = vmatpush1.msra.mxu0 0.0
  %2783 = vmatprep.subr.mxu0 0.0
  %2784 = vmatpush1.msra.mxu0 0.0
  %2785 = vmatprep.subr.mxu0 0.0
  %2786 = vmatpush1.msra.mxu0 0.0
  %2787 = vmatprep.subr.mxu0 0.0
  %2788 = vmatpush1.msra.mxu0 0.0
  %2789 = vmatprep.subr.mxu0 0.0
  %2790 = vmatpush1.msra.mxu0 0.0
  %2791 = vmatprep.subr.mxu0 0.0
  %2792 = vmatpush1.msra.mxu0 0.0
  %2793 = vmatprep.subr.mxu0 0.0
  %2794 = vmatpush1.msra.mxu0 0.0
  %2795 = vmatprep.subr.mxu0 0.0
  %2796 = vmatpush1.msra.mxu0 0.0
  %2797 = vmatprep.subr.mxu0 0.0
  %2798 = vmatpush1.msra.mxu0 0.0
  %2799 = vmatprep.subr.mxu0 0.0
  %2800 = vmatpush1.msra.mxu0 0.0
  %2801 = vmatprep.subr.mxu0 0.0
  %2802 = vmatpush1.msra.mxu0 0.0
  %2803 = vmatprep.subr.mxu0 0.0
  %2804 = vmatpush1.msra.mxu0 0.0
  %2805 = vmatprep.subr.mxu0 0.0
  %2806 = vmatpush1.msra.mxu0 0.0
  %2807 = vmatprep.subr.mxu0 0.0
  %2808 = vmatpush1.msra.mxu0 0.0
  %2809 = vmatprep.subr.mxu0 0.0
  %2810 = vmatpush1.msra.mxu0 0.0
  %2811 = vmatprep.mubr.f32.mxu0 0.0
  %2812 = vmatmul.mubr.f32.gmra.mrb[0].mxu0 %v2745
  %v2813 = vpop.f32.mrb[0].mxu0
  %v2814 = vadd.f32 %v2442, %v2813
  %v2815 = vpop.f32.mrb[0].mxu0
  %2816 = vdwg.mxu0
  %v2817 = vadd.f32 %v2596, %v2669
  %v2818 = vadd.f32 %v2741, %v2814
  %v2819 = vadd.f32 %v2817, %v2818
  %v2820 = vadd.f32 %v2819, %v2524
  %v2821 = vld [vmem:[%s6] sm:$0x1]
  %v2823 = vlaneseq
  %v2824 = vshrl.u32 %v2823, 7
  %v2825 = vsub.s32 0, %v2824
  %v2826 = vrot.slane %v2821, %v2825
  %v2828 = vadd.f32 %v2820, %v2826
  %v2829 = vmax.f32 %v2828, 0.0
  %v2830 = vld [vmem:[%s7] sm:$0xff]
  %v2831 = vld [vmem:[%s7 + $0x8] sm:$0xff]
  %v2832 = vld [vmem:[%s7 + $0x10] sm:$0xff]
  %v2833 = vld [vmem:[%s7 + $0x18] sm:$0xff]
  %v2834 = vld [vmem:[%s7 + $0x20] sm:$0xff]
  %v2835 = vld [vmem:[%s7 + $0x28] sm:$0xff]
  %v2836 = vld [vmem:[%s7 + $0x30] sm:$0xff]
  %v2837 = vld [vmem:[%s7 + $0x38] sm:$0xff]
  %v2838 = vld [vmem:[%s7 + $0x40] sm:$0xff]
  %v2839 = vld [vmem:[%s7 + $0x48] sm:$0xff]
  %v2840 = vld [vmem:[%s7 + $0x50] sm:$0xff]
  %v2841 = vld [vmem:[%s7 + $0x58] sm:$0xff]
  %v2842 = vld [vmem:[%s7 + $0x60] sm:$0xff]
  %v2843 = vld [vmem:[%s7 + $0x68] sm:$0xff]
  %v2844 = vld [vmem:[%s7 + $0x70] sm:$0xff]
  %v2845 = vld [vmem:[%s7 + $0x78] sm:$0xff]
  %v2846 = vld [vmem:[%s7 + $0x80] sm:$0xff]
  %v2847 = vld [vmem:[%s7 + $0x88] sm:$0xff]
  %v2848 = vld [vmem:[%s7 + $0x90] sm:$0xff]
  %v2849 = vld [vmem:[%s7 + $0x98] sm:$0xff]
  %v2850 = vld [vmem:[%s7 + $0xa0] sm:$0xff]
  %v2851 = vld [vmem:[%s7 + $0xa8] sm:$0xff]
  %v2852 = vld [vmem:[%s7 + $0xb0] sm:$0xff]
  %v2853 = vld [vmem:[%s7 + $0xb8] sm:$0xff]
  %v2854 = vld [vmem:[%s7 + $0xc0] sm:$0xff]
  %v2855 = vld [vmem:[%s7 + $0xc8] sm:$0xff]
  %v2856 = vld [vmem:[%s7 + $0xd0] sm:$0xff]
  %v2857 = vld [vmem:[%s7 + $0xd8] sm:$0xff]
  %v2858 = vld [vmem:[%s7 + $0xe0] sm:$0xff]
  %v2859 = vld [vmem:[%s7 + $0xe8] sm:$0xff]
  %v2860 = vld [vmem:[%s7 + $0xf0] sm:$0xff]
  %v2861 = vld [vmem:[%s7 + $0xf8] sm:$0xff]
  %v2862 = vld [vmem:[%s8] sm:$0xf]
  %v2864 = vlaneseq
  %v2865 = vshrl.u32 %v2864, 7
  %v2866 = vsub.s32 0, %v2865
  %v2867 = vrot.slane %v2862, %v2866
  %v2868 = vlaneseq
  %v2869 = vshrl.u32 %v2868, 7
  %v2870 = vsub.s32 1, %v2869
  %v2871 = vrot.slane %v2862, %v2870
  %v2872 = vlaneseq
  %v2873 = vshrl.u32 %v2872, 7
  %v2874 = vsub.s32 2, %v2873
  %v2875 = vrot.slane %v2862, %v2874
  %v2876 = vlaneseq
  %v2877 = vshrl.u32 %v2876, 7
  %v2878 = vsub.s32 3, %v2877
  %v2879 = vrot.slane %v2862, %v2878
  %v2885 = vsel %vm2098, %v2829, 0
  %2887 = vmatprep.subr.mxu0 %v2831
  %2888 = vmatpush1.msra.mxu0 %v2830
  %2889 = vmatprep.subr.mxu0 %v2835
  %2890 = vmatpush1.msra.mxu0 %v2834
  %2891 = vmatprep.subr.mxu0 %v2839
  %2892 = vmatpush1.msra.mxu0 %v2838
  %2893 = vmatprep.subr.mxu0 %v2843
  %2894 = vmatpush1.msra.mxu0 %v2842
  %2895 = vmatprep.subr.mxu0 %v2847
  %2896 = vmatpush1.msra.mxu0 %v2846
  %2897 = vmatprep.subr.mxu0 %v2851
  %2898 = vmatpush1.msra.mxu0 %v2850
  %2899 = vmatprep.subr.mxu0 %v2855
  %2900 = vmatpush1.msra.mxu0 %v2854
  %2901 = vmatprep.subr.mxu0 %v2859
  %2902 = vmatpush1.msra.mxu0 %v2858
  %2903 = vmatprep.subr.mxu0 0.0
  %2904 = vmatpush1.msra.mxu0 0.0
  %2905 = vmatprep.subr.mxu0 0.0
  %2906 = vmatpush1.msra.mxu0 0.0
  %2907 = vmatprep.subr.mxu0 0.0
  %2908 = vmatpush1.msra.mxu0 0.0
  %2909 = vmatprep.subr.mxu0 0.0
  %2910 = vmatpush1.msra.mxu0 0.0
  %2911 = vmatprep.subr.mxu0 0.0
  %2912 = vmatpush1.msra.mxu0 0.0
  %2913 = vmatprep.subr.mxu0 0.0
  %2914 = vmatpush1.msra.mxu0 0.0
  %2915 = vmatprep.subr.mxu0 0.0
  %2916 = vmatpush1.msra.mxu0 0.0
  %2917 = vmatprep.subr.mxu0 0.0
  %2918 = vmatpush1.msra.mxu0 0.0
  %2919 = vmatprep.subr.mxu0 0.0
  %2920 = vmatpush1.msra.mxu0 0.0
  %2921 = vmatprep.subr.mxu0 0.0
  %2922 = vmatpush1.msra.mxu0 0.0
  %2923 = vmatprep.subr.mxu0 0.0
  %2924 = vmatpush1.msra.mxu0 0.0
  %2925 = vmatprep.subr.mxu0 0.0
  %2926 = vmatpush1.msra.mxu0 0.0
  %2927 = vmatprep.subr.mxu0 0.0
  %2928 = vmatpush1.msra.mxu0 0.0
  %2929 = vmatprep.subr.mxu0 0.0
  %2930 = vmatpush1.msra.mxu0 0.0
  %2931 = vmatprep.subr.mxu0 0.0
  %2932 = vmatpush1.msra.mxu0 0.0
  %2933 = vmatprep.subr.mxu0 0.0
  %2934 = vmatpush1.msra.mxu0 0.0
  %2935 = vmatprep.subr.mxu0 0.0
  %2936 = vmatpush1.msra.mxu0 0.0
  %2937 = vmatprep.subr.mxu0 0.0
  %2938 = vmatpush1.msra.mxu0 0.0
  %2939 = vmatprep.subr.mxu0 0.0
  %2940 = vmatpush1.msra.mxu0 0.0
  %2941 = vmatprep.subr.mxu0 0.0
  %2942 = vmatpush1.msra.mxu0 0.0
  %2943 = vmatprep.subr.mxu0 0.0
  %2944 = vmatpush1.msra.mxu0 0.0
  %2945 = vmatprep.subr.mxu0 0.0
  %2946 = vmatpush1.msra.mxu0 0.0
  %2947 = vmatprep.subr.mxu0 0.0
  %2948 = vmatpush1.msra.mxu0 0.0
  %2949 = vmatprep.subr.mxu0 0.0
  %2950 = vmatpush1.msra.mxu0 0.0
  %2951 = vmatprep.mubr.f32.mxu0 0.0
  %2952 = vmatmul.mubr.f32.gmra.mrb[0].mxu0 %v2885
  %v2953 = vpop.f32.mrb[0].mxu0
  %v2954 = vadd.f32 %v2867, %v2953
  %v2955 = vpop.f32.mrb[0].mxu0
  %v2956 = vadd.f32 %v2871, %v2955
  %2957 = vdwg.mxu0
  %2958 = vmatprep.subr.mxu0 %v2833
  %2959 = vmatpush1.msra.mxu0 %v2832
  %2960 = vmatprep.subr.mxu0 %v2837
  %2961 = vmatpush1.msra.mxu0 %v2836
  %2962 = vmatprep.subr.mxu0 %v2841
  %2963 = vmatpush1.msra.mxu0 %v2840
  %2964 = vmatprep.subr.mxu0 %v2845
  %2965 = vmatpush1.msra.mxu0 %v2844
  %2966 = vmatprep.subr.mxu0 %v2849
  %2967 = vmatpush1.msra.mxu0 %v2848
  %2968 = vmatprep.subr.mxu0 %v2853
  %2969 = vmatpush1.msra.mxu0 %v2852
  %2970 = vmatprep.subr.mxu0 %v2857
  %2971 = vmatpush1.msra.mxu0 %v2856
  %2972 = vmatprep.subr.mxu0 %v2861
  %2973 = vmatpush1.msra.mxu0 %v2860
  %2974 = vmatprep.subr.mxu0 0.0
  %2975 = vmatpush1.msra.mxu0 0.0
  %2976 = vmatprep.subr.mxu0 0.0
  %2977 = vmatpush1.msra.mxu0 0.0
  %2978 = vmatprep.subr.mxu0 0.0
  %2979 = vmatpush1.msra.mxu0 0.0
  %2980 = vmatprep.subr.mxu0 0.0
  %2981 = vmatpush1.msra.mxu0 0.0
  %2982 = vmatprep.subr.mxu0 0.0
  %2983 = vmatpush1.msra.mxu0 0.0
  %2984 = vmatprep.subr.mxu0 0.0
  %2985 = vmatpush1.msra.mxu0 0.0
  %2986 = vmatprep.subr.mxu0 0.0
  %2987 = vmatpush1.msra.mxu0 0.0
  %2988 = vmatprep.subr.mxu0 0.0
  %2989 = vmatpush1.msra.mxu0 0.0
  %2990 = vmatprep.subr.mxu0 0.0
  %2991 = vmatpush1.msra.mxu0 0.0
  %2992 = vmatprep.subr.mxu0 0.0
  %2993 = vmatpush1.msra.mxu0 0.0
  %2994 = vmatprep.subr.mxu0 0.0
  %2995 = vmatpush1.msra.mxu0 0.0
  %2996 = vmatprep.subr.mxu0 0.0
  %2997 = vmatpush1.msra.mxu0 0.0
  %2998 = vmatprep.subr.mxu0 0.0
  %2999 = vmatpush1.msra.mxu0 0.0
  %3000 = vmatprep.subr.mxu0 0.0
  %3001 = vmatpush1.msra.mxu0 0.0
  %3002 = vmatprep.subr.mxu0 0.0
  %3003 = vmatpush1.msra.mxu0 0.0
  %3004 = vmatprep.subr.mxu0 0.0
  %3005 = vmatpush1.msra.mxu0 0.0
  %3006 = vmatprep.subr.mxu0 0.0
  %3007 = vmatpush1.msra.mxu0 0.0
  %3008 = vmatprep.subr.mxu0 0.0
  %3009 = vmatpush1.msra.mxu0 0.0
  %3010 = vmatprep.subr.mxu0 0.0
  %3011 = vmatpush1.msra.mxu0 0.0
  %3012 = vmatprep.subr.mxu0 0.0
  %3013 = vmatpush1.msra.mxu0 0.0
  %3014 = vmatprep.subr.mxu0 0.0
  %3015 = vmatpush1.msra.mxu0 0.0
  %3016 = vmatprep.subr.mxu0 0.0
  %3017 = vmatpush1.msra.mxu0 0.0
  %3018 = vmatprep.subr.mxu0 0.0
  %3019 = vmatpush1.msra.mxu0 0.0
  %3020 = vmatprep.subr.mxu0 0.0
  %3021 = vmatpush1.msra.mxu0 0.0
  %3022 = vmatprep.mubr.f32.mxu0 0.0
  %3023 = vmatmul.mubr.f32.gmra.mrb[0].mxu0 %v2885
  %v3024 = vpop.f32.mrb[0].mxu0
  %v3025 = vadd.f32 %v2875, %v3024
  %v3026 = vpop.f32.mrb[0].mxu0
  %v3027 = vadd.f32 %v2879, %v3026
  %3028 = vdwg.mxu0
  %v3029 = vmax.f32 %v2954, 0.0
  %v3030 = vmax.f32 %v2956, 0.0
  %v3031 = vmax.f32 %v3025, 0.0
  %v3032 = vmax.f32 %v3027, 0.0
  %v3033 = vld [vmem:[%s9] sm:$0xff]
  %v3034 = vld [vmem:[%s9 + $0x8] sm:$0xff]
  %v3035 = vld [vmem:[%s9 + $0x10] sm:$0xff]
  %v3036 = vld [vmem:[%s9 + $0x18] sm:$0xff]
  %v3037 = vld [vmem:[%s9 + $0x20] sm:$0xff]
  %v3038 = vld [vmem:[%s9 + $0x28] sm:$0xff]
  %v3039 = vld [vmem:[%s9 + $0x30] sm:$0xff]
  %v3040 = vld [vmem:[%s9 + $0x38] sm:$0xff]
  %v3041 = vld [vmem:[%s9 + $0x40] sm:$0xff]
  %v3042 = vld [vmem:[%s9 + $0x48] sm:$0xff]
  %v3043 = vld [vmem:[%s9 + $0x50] sm:$0xff]
  %v3044 = vld [vmem:[%s9 + $0x58] sm:$0xff]
  %v3045 = vld [vmem:[%s9 + $0x60] sm:$0xff]
  %v3046 = vld [vmem:[%s9 + $0x68] sm:$0xff]
  %v3047 = vld [vmem:[%s9 + $0x70] sm:$0xff]
  %v3048 = vld [vmem:[%s9 + $0x78] sm:$0xff]
  %v3049 = vld [vmem:[%s9 + $0x80] sm:$0xff]
  %v3050 = vld [vmem:[%s9 + $0x88] sm:$0xff]
  %v3051 = vld [vmem:[%s9 + $0x90] sm:$0xff]
  %v3052 = vld [vmem:[%s9 + $0x98] sm:$0xff]
  %v3053 = vld [vmem:[%s9 + $0xa0] sm:$0xff]
  %v3054 = vld [vmem:[%s9 + $0xa8] sm:$0xff]
  %v3055 = vld [vmem:[%s9 + $0xb0] sm:$0xff]
  %v3056 = vld [vmem:[%s9 + $0xb8] sm:$0xff]
  %v3057 = vld [vmem:[%s9 + $0xc0] sm:$0xff]
  %v3058 = vld [vmem:[%s9 + $0xc8] sm:$0xff]
  %v3059 = vld [vmem:[%s9 + $0xd0] sm:$0xff]
  %v3060 = vld [vmem:[%s9 + $0xd8] sm:$0xff]
  %v3061 = vld [vmem:[%s9 + $0xe0] sm:$0xff]
  %v3062 = vld [vmem:[%s9 + $0xe8] sm:$0xff]
  %v3063 = vld [vmem:[%s9 + $0xf0] sm:$0xff]
  %v3064 = vld [vmem:[%s9 + $0xf8] sm:$0xff]
  %v3065 = vld [vmem:[%s9 + $0x100] sm:$0xff]
  %v3066 = vld [vmem:[%s9 + $0x108] sm:$0xff]
  %v3067 = vld [vmem:[%s9 + $0x110] sm:$0xff]
  %v3068 = vld [vmem:[%s9 + $0x118] sm:$0xff]
  %v3069 = vld [vmem:[%s9 + $0x120] sm:$0xff]
  %v3070 = vld [vmem:[%s9 + $0x128] sm:$0xff]
  %v3071 = vld [vmem:[%s9 + $0x130] sm:$0xff]
  %v3072 = vld [vmem:[%s9 + $0x138] sm:$0xff]
  %v3073 = vld [vmem:[%s9 + $0x140] sm:$0xff]
  %v3074 = vld [vmem:[%s9 + $0x148] sm:$0xff]
  %v3075 = vld [vmem:[%s9 + $0x150] sm:$0xff]
  %v3076 = vld [vmem:[%s9 + $0x158] sm:$0xff]
  %v3077 = vld [vmem:[%s9 + $0x160] sm:$0xff]
  %v3078 = vld [vmem:[%s9 + $0x168] sm:$0xff]
  %v3079 = vld [vmem:[%s9 + $0x170] sm:$0xff]
  %v3080 = vld [vmem:[%s9 + $0x178] sm:$0xff]
  %v3081 = vld [vmem:[%s9 + $0x180] sm:$0xff]
  %v3082 = vld [vmem:[%s9 + $0x188] sm:$0xff]
  %v3083 = vld [vmem:[%s9 + $0x190] sm:$0xff]
  %v3084 = vld [vmem:[%s9 + $0x198] sm:$0xff]
  %v3085 = vld [vmem:[%s9 + $0x1a0] sm:$0xff]
  %v3086 = vld [vmem:[%s9 + $0x1a8] sm:$0xff]
  %v3087 = vld [vmem:[%s9 + $0x1b0] sm:$0xff]
  %v3088 = vld [vmem:[%s9 + $0x1b8] sm:$0xff]
  %v3089 = vld [vmem:[%s9 + $0x1c0] sm:$0xff]
  %v3090 = vld [vmem:[%s9 + $0x1c8] sm:$0xff]
  %v3091 = vld [vmem:[%s9 + $0x1d0] sm:$0xff]
  %v3092 = vld [vmem:[%s9 + $0x1d8] sm:$0xff]
  %v3093 = vld [vmem:[%s9 + $0x1e0] sm:$0xff]
  %v3094 = vld [vmem:[%s9 + $0x1e8] sm:$0xff]
  %v3095 = vld [vmem:[%s9 + $0x1f0] sm:$0xff]
  %v3096 = vld [vmem:[%s9 + $0x1f8] sm:$0xff]
  %v3097 = vld [vmem:[%s9 + $0x200] sm:$0xff]
  %v3098 = vld [vmem:[%s9 + $0x208] sm:$0xff]
  %v3099 = vld [vmem:[%s9 + $0x210] sm:$0xff]
  %v3100 = vld [vmem:[%s9 + $0x218] sm:$0xff]
  %v3101 = vld [vmem:[%s9 + $0x220] sm:$0xff]
  %v3102 = vld [vmem:[%s9 + $0x228] sm:$0xff]
  %v3103 = vld [vmem:[%s9 + $0x230] sm:$0xff]
  %v3104 = vld [vmem:[%s9 + $0x238] sm:$0xff]
  %v3105 = vld [vmem:[%s9 + $0x240] sm:$0xff]
  %v3106 = vld [vmem:[%s9 + $0x248] sm:$0xff]
  %v3107 = vld [vmem:[%s9 + $0x250] sm:$0xff]
  %v3108 = vld [vmem:[%s9 + $0x258] sm:$0xff]
  %v3109 = vld [vmem:[%s9 + $0x260] sm:$0xff]
  %v3110 = vld [vmem:[%s9 + $0x268] sm:$0xff]
  %v3111 = vld [vmem:[%s9 + $0x270] sm:$0xff]
  %v3112 = vld [vmem:[%s9 + $0x278] sm:$0xff]
  %v3113 = vld [vmem:[%s9 + $0x280] sm:$0xff]
  %v3114 = vld [vmem:[%s9 + $0x288] sm:$0xff]
  %v3115 = vld [vmem:[%s9 + $0x290] sm:$0xff]
  %v3116 = vld [vmem:[%s9 + $0x298] sm:$0xff]
  %v3117 = vld [vmem:[%s9 + $0x2a0] sm:$0xff]
  %v3118 = vld [vmem:[%s9 + $0x2a8] sm:$0xff]
  %v3119 = vld [vmem:[%s9 + $0x2b0] sm:$0xff]
  %v3120 = vld [vmem:[%s9 + $0x2b8] sm:$0xff]
  %v3121 = vld [vmem:[%s9 + $0x2c0] sm:$0xff]
  %v3122 = vld [vmem:[%s9 + $0x2c8] sm:$0xff]
  %v3123 = vld [vmem:[%s9 + $0x2d0] sm:$0xff]
  %v3124 = vld [vmem:[%s9 + $0x2d8] sm:$0xff]
  %v3125 = vld [vmem:[%s9 + $0x2e0] sm:$0xff]
  %v3126 = vld [vmem:[%s9 + $0x2e8] sm:$0xff]
  %v3127 = vld [vmem:[%s9 + $0x2f0] sm:$0xff]
  %v3128 = vld [vmem:[%s9 + $0x2f8] sm:$0xff]
  %v3129 = vld [vmem:[%s9 + $0x300] sm:$0xff]
  %v3130 = vld [vmem:[%s9 + $0x308] sm:$0xff]
  %v3131 = vld [vmem:[%s9 + $0x310] sm:$0xff]
  %v3132 = vld [vmem:[%s9 + $0x318] sm:$0xff]
  %v3133 = vld [vmem:[%s9 + $0x320] sm:$0xff]
  %v3134 = vld [vmem:[%s9 + $0x328] sm:$0xff]
  %v3135 = vld [vmem:[%s9 + $0x330] sm:$0xff]
  %v3136 = vld [vmem:[%s9 + $0x338] sm:$0xff]
  %v3137 = vld [vmem:[%s9 + $0x340] sm:$0xff]
  %v3138 = vld [vmem:[%s9 + $0x348] sm:$0xff]
  %v3139 = vld [vmem:[%s9 + $0x350] sm:$0xff]
  %v3140 = vld [vmem:[%s9 + $0x358] sm:$0xff]
  %v3141 = vld [vmem:[%s9 + $0x360] sm:$0xff]
  %v3142 = vld [vmem:[%s9 + $0x368] sm:$0xff]
  %v3143 = vld [vmem:[%s9 + $0x370] sm:$0xff]
  %v3144 = vld [vmem:[%s9 + $0x378] sm:$0xff]
  %v3145 = vld [vmem:[%s9 + $0x380] sm:$0xff]
  %v3146 = vld [vmem:[%s9 + $0x388] sm:$0xff]
  %v3147 = vld [vmem:[%s9 + $0x390] sm:$0xff]
  %v3148 = vld [vmem:[%s9 + $0x398] sm:$0xff]
  %v3149 = vld [vmem:[%s9 + $0x3a0] sm:$0xff]
  %v3150 = vld [vmem:[%s9 + $0x3a8] sm:$0xff]
  %v3151 = vld [vmem:[%s9 + $0x3b0] sm:$0xff]
  %v3152 = vld [vmem:[%s9 + $0x3b8] sm:$0xff]
  %v3153 = vld [vmem:[%s9 + $0x3c0] sm:$0xff]
  %v3154 = vld [vmem:[%s9 + $0x3c8] sm:$0xff]
  %v3155 = vld [vmem:[%s9 + $0x3d0] sm:$0xff]
  %v3156 = vld [vmem:[%s9 + $0x3d8] sm:$0xff]
  %v3157 = vld [vmem:[%s9 + $0x3e0] sm:$0xff]
  %v3158 = vld [vmem:[%s9 + $0x3e8] sm:$0xff]
  %v3159 = vld [vmem:[%s9 + $0x3f0] sm:$0xff]
  %v3160 = vld [vmem:[%s9 + $0x3f8] sm:$0xff]
  %v3161 = vld [vmem:[%s10] sm:$0x3]
  %v3163 = vlaneseq
  %v3164 = vshrl.u32 %v3163, 7
  %v3165 = vsub.s32 0, %v3164
  %v3166 = vrot.slane %v3161, %v3165
  %v3167 = vlaneseq
  %v3168 = vshrl.u32 %v3167, 7
  %v3169 = vsub.s32 1, %v3168
  %v3170 = vrot.slane %v3161, %v3169
  %3173 = vmatprep.subr.mxu0 %v3034
  %3174 = vmatpush1.msra.mxu0 %v3033
  %3175 = vmatprep.subr.mxu0 %v3036
  %3176 = vmatpush1.msra.mxu0 %v3035
  %3177 = vmatprep.subr.mxu0 %v3038
  %3178 = vmatpush1.msra.mxu0 %v3037
  %3179 = vmatprep.subr.mxu0 %v3040
  %3180 = vmatpush1.msra.mxu0 %v3039
  %3181 = vmatprep.subr.mxu0 %v3042
  %3182 = vmatpush1.msra.mxu0 %v3041
  %3183 = vmatprep.subr.mxu0 %v3044
  %3184 = vmatpush1.msra.mxu0 %v3043
  %3185 = vmatprep.subr.mxu0 %v3046
  %3186 = vmatpush1.msra.mxu0 %v3045
  %3187 = vmatprep.subr.mxu0 %v3048
  %3188 = vmatpush1.msra.mxu0 %v3047
  %3189 = vmatprep.subr.mxu0 %v3050
  %3190 = vmatpush1.msra.mxu0 %v3049
  %3191 = vmatprep.subr.mxu0 %v3052
  %3192 = vmatpush1.msra.mxu0 %v3051
  %3193 = vmatprep.subr.mxu0 %v3054
  %3194 = vmatpush1.msra.mxu0 %v3053
  %3195 = vmatprep.subr.mxu0 %v3056
  %3196 = vmatpush1.msra.mxu0 %v3055
  %3197 = vmatprep.subr.mxu0 %v3058
  %3198 = vmatpush1.msra.mxu0 %v3057
  %3199 = vmatprep.subr.mxu0 %v3060
  %3200 = vmatpush1.msra.mxu0 %v3059
  %3201 = vmatprep.subr.mxu0 %v3062
  %3202 = vmatpush1.msra.mxu0 %v3061
  %3203 = vmatprep.subr.mxu0 %v3064
  %3204 = vmatpush1.msra.mxu0 %v3063
  %3205 = vmatprep.subr.mxu0 %v3066
  %3206 = vmatpush1.msra.mxu0 %v3065
  %3207 = vmatprep.subr.mxu0 %v3068
  %3208 = vmatpush1.msra.mxu0 %v3067
  %3209 = vmatprep.subr.mxu0 %v3070
  %3210 = vmatpush1.msra.mxu0 %v3069
  %3211 = vmatprep.subr.mxu0 %v3072
  %3212 = vmatpush1.msra.mxu0 %v3071
  %3213 = vmatprep.subr.mxu0 %v3074
  %3214 = vmatpush1.msra.mxu0 %v3073
  %3215 = vmatprep.subr.mxu0 %v3076
  %3216 = vmatpush1.msra.mxu0 %v3075
  %3217 = vmatprep.subr.mxu0 %v3078
  %3218 = vmatpush1.msra.mxu0 %v3077
  %3219 = vmatprep.subr.mxu0 %v3080
  %3220 = vmatpush1.msra.mxu0 %v3079
  %3221 = vmatprep.subr.mxu0 %v3082
  %3222 = vmatpush1.msra.mxu0 %v3081
  %3223 = vmatprep.subr.mxu0 %v3084
  %3224 = vmatpush1.msra.mxu0 %v3083
  %3225 = vmatprep.subr.mxu0 %v3086
  %3226 = vmatpush1.msra.mxu0 %v3085
  %3227 = vmatprep.subr.mxu0 %v3088
  %3228 = vmatpush1.msra.mxu0 %v3087
  %3229 = vmatprep.subr.mxu0 %v3090
  %3230 = vmatpush1.msra.mxu0 %v3089
  %3231 = vmatprep.subr.mxu0 %v3092
  %3232 = vmatpush1.msra.mxu0 %v3091
  %3233 = vmatprep.subr.mxu0 %v3094
  %3234 = vmatpush1.msra.mxu0 %v3093
  %3235 = vmatprep.subr.mxu0 %v3096
  %3236 = vmatpush1.msra.mxu0 %v3095
  %3237 = vmatprep.mubr.f32.mxu0 %v3030
  %3238 = vmatmul.mubr.f32.gmra.mrb[0].mxu0 %v3029
  %v3239 = vpop.f32.mrb[0].mxu0
  %v3240 = vadd.f32 %v3166, %v3239
  %v3241 = vpop.f32.mrb[0].mxu0
  %v3242 = vadd.f32 %v3170, %v3241
  %3243 = vdwg.mxu0
  %3244 = vmatprep.subr.mxu0 %v3098
  %3245 = vmatpush1.msra.mxu0 %v3097
  %3246 = vmatprep.subr.mxu0 %v3100
  %3247 = vmatpush1.msra.mxu0 %v3099
  %3248 = vmatprep.subr.mxu0 %v3102
  %3249 = vmatpush1.msra.mxu0 %v3101
  %3250 = vmatprep.subr.mxu0 %v3104
  %3251 = vmatpush1.msra.mxu0 %v3103
  %3252 = vmatprep.subr.mxu0 %v3106
  %3253 = vmatpush1.msra.mxu0 %v3105
  %3254 = vmatprep.subr.mxu0 %v3108
  %3255 = vmatpush1.msra.mxu0 %v3107
  %3256 = vmatprep.subr.mxu0 %v3110
  %3257 = vmatpush1.msra.mxu0 %v3109
  %3258 = vmatprep.subr.mxu0 %v3112
  %3259 = vmatpush1.msra.mxu0 %v3111
  %3260 = vmatprep.subr.mxu0 %v3114
  %3261 = vmatpush1.msra.mxu0 %v3113
  %3262 = vmatprep.subr.mxu0 %v3116
  %3263 = vmatpush1.msra.mxu0 %v3115
  %3264 = vmatprep.subr.mxu0 %v3118
  %3265 = vmatpush1.msra.mxu0 %v3117
  %3266 = vmatprep.subr.mxu0 %v3120
  %3267 = vmatpush1.msra.mxu0 %v3119
  %3268 = vmatprep.subr.mxu0 %v3122
  %3269 = vmatpush1.msra.mxu0 %v3121
  %3270 = vmatprep.subr.mxu0 %v3124
  %3271 = vmatpush1.msra.mxu0 %v3123
  %3272 = vmatprep.subr.mxu0 %v3126
  %3273 = vmatpush1.msra.mxu0 %v3125
  %3274 = vmatprep.subr.mxu0 %v3128
  %3275 = vmatpush1.msra.mxu0 %v3127
  %3276 = vmatprep.subr.mxu0 %v3130
  %3277 = vmatpush1.msra.mxu0 %v3129
  %3278 = vmatprep.subr.mxu0 %v3132
  %3279 = vmatpush1.msra.mxu0 %v3131
  %3280 = vmatprep.subr.mxu0 %v3134
  %3281 = vmatpush1.msra.mxu0 %v3133
  %3282 = vmatprep.subr.mxu0 %v3136
  %3283 = vmatpush1.msra.mxu0 %v3135
  %3284 = vmatprep.subr.mxu0 %v3138
  %3285 = vmatpush1.msra.mxu0 %v3137
  %3286 = vmatprep.subr.mxu0 %v3140
  %3287 = vmatpush1.msra.mxu0 %v3139
  %3288 = vmatprep.subr.mxu0 %v3142
  %3289 = vmatpush1.msra.mxu0 %v3141
  %3290 = vmatprep.subr.mxu0 %v3144
  %3291 = vmatpush1.msra.mxu0 %v3143
  %3292 = vmatprep.subr.mxu0 %v3146
  %3293 = vmatpush1.msra.mxu0 %v3145
  %3294 = vmatprep.subr.mxu0 %v3148
  %3295 = vmatpush1.msra.mxu0 %v3147
  %3296 = vmatprep.subr.mxu0 %v3150
  %3297 = vmatpush1.msra.mxu0 %v3149
  %3298 = vmatprep.subr.mxu0 %v3152
  %3299 = vmatpush1.msra.mxu0 %v3151
  %3300 = vmatprep.subr.mxu0 %v3154
  %3301 = vmatpush1.msra.mxu0 %v3153
  %3302 = vmatprep.subr.mxu0 %v3156
  %3303 = vmatpush1.msra.mxu0 %v3155
  %3304 = vmatprep.subr.mxu0 %v3158
  %3305 = vmatpush1.msra.mxu0 %v3157
  %3306 = vmatprep.subr.mxu0 %v3160
  %3307 = vmatpush1.msra.mxu0 %v3159
  %3308 = vmatprep.mubr.f32.mxu0 %v3032
  %3309 = vmatmul.mubr.f32.gmra.mrb[0].mxu0 %v3031
  %v3310 = vpop.f32.mrb[0].mxu0
  %v3311 = vadd.f32 %v3240, %v3310
  %v3312 = vpop.f32.mrb[0].mxu0
  %v3313 = vadd.f32 %v3242, %v3312
  %3314 = vdwg.mxu0
  %v3315 = vmax.f32 %v3311, 0.0
  %v3316 = vmax.f32 %v3313, 0.0
  %v3317 = vld [vmem:[%s11] sm:$0xff]
  %v3318 = vld [vmem:[%s11 + $0x8] sm:$0xff]
  %v3319 = vld [vmem:[%s11 + $0x10] sm:$0xff]
  %v3320 = vld [vmem:[%s11 + $0x18] sm:$0xff]
  %v3321 = vld [vmem:[%s11 + $0x20] sm:$0xff]
  %v3322 = vld [vmem:[%s11 + $0x28] sm:$0xff]
  %v3323 = vld [vmem:[%s11 + $0x30] sm:$0xff]
  %v3324 = vld [vmem:[%s11 + $0x38] sm:$0xff]
  %v3325 = vld [vmem:[%s11 + $0x40] sm:$0xff]
  %v3326 = vld [vmem:[%s11 + $0x48] sm:$0xff]
  %v3327 = vld [vmem:[%s11 + $0x50] sm:$0xff]
  %v3328 = vld [vmem:[%s11 + $0x58] sm:$0xff]
  %v3329 = vld [vmem:[%s11 + $0x60] sm:$0xff]
  %v3330 = vld [vmem:[%s11 + $0x68] sm:$0xff]
  %v3331 = vld [vmem:[%s11 + $0x70] sm:$0xff]
  %v3332 = vld [vmem:[%s11 + $0x78] sm:$0xff]
  %v3333 = vld [vmem:[%s12] sm:$0x1]
  %v3335 = vlaneseq
  %v3336 = vshrl.u32 %v3335, 7
  %v3337 = vsub.s32 0, %v3336
  %v3338 = vrot.slane %v3333, %v3337
  %3340 = vmatprep.subr.mxu0 0.0
  %3341 = vmatpush1.msra.mxu0 %v3317
  %3342 = vmatprep.subr.mxu0 0.0
  %3343 = vmatpush1.msra.mxu0 %v3318
  %3344 = vmatprep.subr.mxu0 0.0
  %3345 = vmatpush1.msra.mxu0 %v3319
  %3346 = vmatprep.subr.mxu0 0.0
  %3347 = vmatpush1.msra.mxu0 %v3320
  %3348 = vmatprep.subr.mxu0 0.0
  %3349 = vmatpush1.msra.mxu0 %v3321
  %3350 = vmatprep.subr.mxu0 0.0
  %3351 = vmatpush1.msra.mxu0 %v3322
  %3352 = vmatprep.subr.mxu0 0.0
  %3353 = vmatpush1.msra.mxu0 %v3323
  %3354 = vmatprep.subr.mxu0 0.0
  %3355 = vmatpush1.msra.mxu0 %v3324
  %3356 = vmatprep.subr.mxu0 0.0
  %3357 = vmatpush1.msra.mxu0 %v3325
  %3358 = vmatprep.subr.mxu0 0.0
  %3359 = vmatpush1.msra.mxu0 %v3326
  %3360 = vmatprep.subr.mxu0 0.0
  %3361 = vmatpush1.msra.mxu0 %v3327
  %3362 = vmatprep.subr.mxu0 0.0
  %3363 = vmatpush1.msra.mxu0 %v3328
  %3364 = vmatprep.subr.mxu0 0.0
  %3365 = vmatpush1.msra.mxu0 %v3329
  %3366 = vmatprep.subr.mxu0 0.0
  %3367 = vmatpush1.msra.mxu0 %v3330
  %3368 = vmatprep.subr.mxu0 0.0
  %3369 = vmatpush1.msra.mxu0 %v3331
  %3370 = vmatprep.subr.mxu0 0.0
  %3371 = vmatpush1.msra.mxu0 %v3332
  %3372 = vmatprep.subr.mxu0 0.0
  %3373 = vmatpush1.msra.mxu0 0.0
  %3374 = vmatprep.subr.mxu0 0.0
  %3375 = vmatpush1.msra.mxu0 0.0
  %3376 = vmatprep.subr.mxu0 0.0
  %3377 = vmatpush1.msra.mxu0 0.0
  %3378 = vmatprep.subr.mxu0 0.0
  %3379 = vmatpush1.msra.mxu0 0.0
  %3380 = vmatprep.subr.mxu0 0.0
  %3381 = vmatpush1.msra.mxu0 0.0
  %3382 = vmatprep.subr.mxu0 0.0
  %3383 = vmatpush1.msra.mxu0 0.0
  %3384 = vmatprep.subr.mxu0 0.0
  %3385 = vmatpush1.msra.mxu0 0.0
  %3386 = vmatprep.subr.mxu0 0.0
  %3387 = vmatpush1.msra.mxu0 0.0
  %3388 = vmatprep.subr.mxu0 0.0
  %3389 = vmatpush1.msra.mxu0 0.0
  %3390 = vmatprep.subr.mxu0 0.0
  %3391 = vmatpush1.msra.mxu0 0.0
  %3392 = vmatprep.subr.mxu0 0.0
  %3393 = vmatpush1.msra.mxu0 0.0
  %3394 = vmatprep.subr.mxu0 0.0
  %3395 = vmatpush1.msra.mxu0 0.0
  %3396 = vmatprep.subr.mxu0 0.0
  %3397 = vmatpush1.msra.mxu0 0.0
  %3398 = vmatprep.subr.mxu0 0.0
  %3399 = vmatpush1.msra.mxu0 0.0
  %3400 = vmatprep.subr.mxu0 0.0
  %3401 = vmatpush1.msra.mxu0 0.0
  %3402 = vmatprep.subr.mxu0 0.0
  %3403 = vmatpush1.msra.mxu0 0.0
  %3404 = vmatprep.mubr.f32.mxu0 0.0
  %3405 = vmatmul.mubr.f32.gmra.mrb[0].mxu0 %v3315
  %v3406 = vpop.f32.mrb[0].mxu0
  %v3407 = vadd.f32 %v3338, %v3406
  %v3408 = vpop.f32.mrb[0].mxu0
  %3409 = vdwg.mxu0
  %v3410 = vmax.f32 %v3407, 0.0
  %v3411 = vld [vmem:[%s13] sm:$0xff]
  %v3412 = vld [vmem:[%s13 + $0x8] sm:$0xff]
  %v3413 = vld [vmem:[%s13 + $0x10] sm:$0xff]
  %v3414 = vld [vmem:[%s13 + $0x18] sm:$0xff]
  %v3415 = vld [vmem:[%s13 + $0x20] sm:$0xff]
  %v3416 = vld [vmem:[%s13 + $0x28] sm:$0xff]
  %v3417 = vld [vmem:[%s13 + $0x30] sm:$0xff]
  %v3418 = vld [vmem:[%s13 + $0x38] sm:$0xff]
  %v3419 = vld [vmem:[%s13 + $0x40] sm:$0xff]
  %v3420 = vld [vmem:[%s13 + $0x48] sm:$0xff]
  %v3421 = vld [vmem:[%s13 + $0x50] sm:$0xff]
  %v3422 = vld [vmem:[%s13 + $0x58] sm:$0xff]
  %v3423 = vld [vmem:[%s13 + $0x60] sm:$0xff]
  %v3424 = vld [vmem:[%s13 + $0x68] sm:$0xff]
  %v3425 = vld [vmem:[%s13 + $0x70] sm:$0xff]
  %v3426 = vld [vmem:[%s13 + $0x78] sm:$0xff]
  %v3427 = vld [vmem:[%s14] sm:$0xff]
  %v3428 = vld [vmem:[%s14 + $0x8] sm:$0xff]
  %v3429 = vld [vmem:[%s14 + $0x10] sm:$0xff]
  %v3430 = vld [vmem:[%s14 + $0x18] sm:$0xff]
  %v3431 = vld [vmem:[%s14 + $0x20] sm:$0xff]
  %v3432 = vld [vmem:[%s14 + $0x28] sm:$0xff]
  %v3433 = vld [vmem:[%s14 + $0x30] sm:$0xff]
  %v3434 = vld [vmem:[%s14 + $0x38] sm:$0xff]
  %v3435 = vld [vmem:[%s14 + $0x40] sm:$0xff]
  %v3436 = vld [vmem:[%s14 + $0x48] sm:$0xff]
  %v3437 = vld [vmem:[%s14 + $0x50] sm:$0xff]
  %v3438 = vld [vmem:[%s14 + $0x58] sm:$0xff]
  %v3439 = vld [vmem:[%s14 + $0x60] sm:$0xff]
  %v3440 = vld [vmem:[%s14 + $0x68] sm:$0xff]
  %v3441 = vld [vmem:[%s14 + $0x70] sm:$0xff]
  %v3442 = vld [vmem:[%s14 + $0x78] sm:$0xff]
  %3443 = vmatprep.subr.mxu0 0.0
  %3444 = vmatpush1.msra.mxu0 %v3427
  %3445 = vmatprep.subr.mxu0 0.0
  %3446 = vmatpush1.msra.mxu0 %v3428
  %3447 = vmatprep.subr.mxu0 0.0
  %3448 = vmatpush1.msra.mxu0 %v3429
  %3449 = vmatprep.subr.mxu0 0.0
  %3450 = vmatpush1.msra.mxu0 %v3430
  %3451 = vmatprep.subr.mxu0 0.0
  %3452 = vmatpush1.msra.mxu0 %v3431
  %3453 = vmatprep.subr.mxu0 0.0
  %3454 = vmatpush1.msra.mxu0 %v3432
  %3455 = vmatprep.subr.mxu0 0.0
  %3456 = vmatpush1.msra.mxu0 %v3433
  %3457 = vmatprep.subr.mxu0 0.0
  %3458 = vmatpush1.msra.mxu0 %v3434
  %3459 = vmatprep.subr.mxu0 0.0
  %3460 = vmatpush1.msra.mxu0 %v3435
  %3461 = vmatprep.subr.mxu0 0.0
  %3462 = vmatpush1.msra.mxu0 %v3436
  %3463 = vmatprep.subr.mxu0 0.0
  %3464 = vmatpush1.msra.mxu0 %v3437
  %3465 = vmatprep.subr.mxu0 0.0
  %3466 = vmatpush1.msra.mxu0 %v3438
  %3467 = vmatprep.subr.mxu0 0.0
  %3468 = vmatpush1.msra.mxu0 %v3439
  %3469 = vmatprep.subr.mxu0 0.0
  %3470 = vmatpush1.msra.mxu0 %v3440
  %3471 = vmatprep.subr.mxu0 0.0
  %3472 = vmatpush1.msra.mxu0 %v3441
  %3473 = vmatprep.subr.mxu0 0.0
  %3474 = vmatpush1.msra.mxu0 %v3442
  %3475 = vmatprep.subr.mxu0 0.0
  %3476 = vmatpush1.msra.mxu0 0.0
  %3477 = vmatprep.subr.mxu0 0.0
  %3478 = vmatpush1.msra.mxu0 0.0
  %3479 = vmatprep.subr.mxu0 0.0
  %3480 = vmatpush1.msra.mxu0 0.0
  %3481 = vmatprep.subr.mxu0 0.0
  %3482 = vmatpush1.msra.mxu0 0.0
  %3483 = vmatprep.subr.mxu0 0.0
  %3484 = vmatpush1.msra.mxu0 0.0
  %3485 = vmatprep.subr.mxu0 0.0
  %3486 = vmatpush1.msra.mxu0 0.0
  %3487 = vmatprep.subr.mxu0 0.0
  %3488 = vmatpush1.msra.mxu0 0.0
  %3489 = vmatprep.subr.mxu0 0.0
  %3490 = vmatpush1.msra.mxu0 0.0
  %3491 = vmatprep.subr.mxu0 0.0
  %3492 = vmatpush1.msra.mxu0 0.0
  %3493 = vmatprep.subr.mxu0 0.0
  %3494 = vmatpush1.msra.mxu0 0.0
  %3495 = vmatprep.subr.mxu0 0.0
  %3496 = vmatpush1.msra.mxu0 0.0
  %3497 = vmatprep.subr.mxu0 0.0
  %3498 = vmatpush1.msra.mxu0 0.0
  %3499 = vmatprep.subr.mxu0 0.0
  %3500 = vmatpush1.msra.mxu0 0.0
  %3501 = vmatprep.subr.mxu0 0.0
  %3502 = vmatpush1.msra.mxu0 0.0
  %3503 = vmatprep.subr.mxu0 0.0
  %3504 = vmatpush1.msra.mxu0 0.0
  %3505 = vmatprep.subr.mxu0 0.0
  %3506 = vmatpush1.msra.mxu0 0.0
  %3507 = vmatprep.mubr.f32.mxu0 0.0
  %3508 = vmatmul.mubr.f32.gmra.mrb[0].mxu0 %v3316
  %v3509 = vpop.f32.mrb[0].mxu0
  %v3510 = vadd.f32 0.0, %v3509
  %v3511 = vpop.f32.mrb[0].mxu0
  %3512 = vdwg.mxu0
  %3513 = vmatprep.subr.mxu0 0.0
  %3514 = vmatpush1.msra.mxu0 %v3411
  %3515 = vmatprep.subr.mxu0 0.0
  %3516 = vmatpush1.msra.mxu0 %v3412
  %3517 = vmatprep.subr.mxu0 0.0
  %3518 = vmatpush1.msra.mxu0 %v3413
  %3519 = vmatprep.subr.mxu0 0.0
  %3520 = vmatpush1.msra.mxu0 %v3414
  %3521 = vmatprep.subr.mxu0 0.0
  %3522 = vmatpush1.msra.mxu0 %v3415
  %3523 = vmatprep.subr.mxu0 0.0
  %3524 = vmatpush1.msra.mxu0 %v3416
  %3525 = vmatprep.subr.mxu0 0.0
  %3526 = vmatpush1.msra.mxu0 %v3417
  %3527 = vmatprep.subr.mxu0 0.0
  %3528 = vmatpush1.msra.mxu0 %v3418
  %3529 = vmatprep.subr.mxu0 0.0
  %3530 = vmatpush1.msra.mxu0 %v3419
  %3531 = vmatprep.subr.mxu0 0.0
  %3532 = vmatpush1.msra.mxu0 %v3420
  %3533 = vmatprep.subr.mxu0 0.0
  %3534 = vmatpush1.msra.mxu0 %v3421
  %3535 = vmatprep.subr.mxu0 0.0
  %3536 = vmatpush1.msra.mxu0 %v3422
  %3537 = vmatprep.subr.mxu0 0.0
  %3538 = vmatpush1.msra.mxu0 %v3423
  %3539 = vmatprep.subr.mxu0 0.0
  %3540 = vmatpush1.msra.mxu0 %v3424
  %3541 = vmatprep.subr.mxu0 0.0
  %3542 = vmatpush1.msra.mxu0 %v3425
  %3543 = vmatprep.subr.mxu0 0.0
  %3544 = vmatpush1.msra.mxu0 %v3426
  %3545 = vmatprep.subr.mxu0 0.0
  %3546 = vmatpush1.msra.mxu0 0.0
  %3547 = vmatprep.subr.mxu0 0.0
  %3548 = vmatpush1.msra.mxu0 0.0
  %3549 = vmatprep.subr.mxu0 0.0
  %3550 = vmatpush1.msra.mxu0 0.0
  %3551 = vmatprep.subr.mxu0 0.0
  %3552 = vmatpush1.msra.mxu0 0.0
  %3553 = vmatprep.subr.mxu0 0.0
  %3554 = vmatpush1.msra.mxu0 0.0
  %3555 = vmatprep.subr.mxu0 0.0
  %3556 = vmatpush1.msra.mxu0 0.0
  %3557 = vmatprep.subr.mxu0 0.0
  %3558 = vmatpush1.msra.mxu0 0.0
  %3559 = vmatprep.subr.mxu0 0.0
  %3560 = vmatpush1.msra.mxu0 0.0
  %3561 = vmatprep.subr.mxu0 0.0
  %3562 = vmatpush1.msra.mxu0 0.0
  %3563 = vmatprep.subr.mxu0 0.0
  %3564 = vmatpush1.msra.mxu0 0.0
  %3565 = vmatprep.subr.mxu0 0.0
  %3566 = vmatpush1.msra.mxu0 0.0
  %3567 = vmatprep.subr.mxu0 0.0
  %3568 = vmatpush1.msra.mxu0 0.0
  %3569 = vmatprep.subr.mxu0 0.0
  %3570 = vmatpush1.msra.mxu0 0.0
  %3571 = vmatprep.subr.mxu0 0.0
  %3572 = vmatpush1.msra.mxu0 0.0
  %3573 = vmatprep.subr.mxu0 0.0
  %3574 = vmatpush1.msra.mxu0 0.0
  %3575 = vmatprep.subr.mxu0 0.0
  %3576 = vmatpush1.msra.mxu0 0.0
  %3577 = vmatprep.mubr.f32.mxu0 0.0
  %3578 = vmatmul.mubr.f32.gmra.mrb[0].mxu0 %v3410
  %v3579 = vpop.f32.mrb[0].mxu0
  %v3580 = vadd.f32 %v3510, %v3579
  %v3581 = vpop.f32.mrb[0].mxu0
  %3582 = vdwg.mxu0
  %v3583 = vld [vmem:[%s15] sm:$0x1]
  %v3585 = vlaneseq
  %v3586 = vshrl.u32 %v3585, 7
  %v3587 = vsub.s32 0, %v3586
  %v3588 = vrot.slane %v3583, %v3587
  %v3590 = vadd.f32 %v3580, %v3588
  %vm3591 = vcmask 123904
  %3592 = vst.msk [vmem:[%s16] sm:$0x3] %vm3591, %v3590
  // Predicated region
  $region66: #{cnn_with_rl_forward.1} parent=0 // pred_check
    _
  $region67: #{cnn_with_rl_forward.1} parent=0 // pred_check_branch
    %3594 = sbr.rel (0) target = $region69
  $region68: #{cnn_with_rl_forward.1} parent=0 // pred_region
    _
  $region69: #{cnn_with_rl_forward.1} parent=0 // pred_fallthru
    _
  // Predicated region
  $region70: #{cnn_with_rl_forward.1} parent=0 // pred_check
    _
  $region71: #{cnn_with_rl_forward.1} parent=0 // pred_check_branch
    %3596 = sbr.rel (0) target = $region73
  $region72: #{cnn_with_rl_forward.1} parent=0 // pred_region
    _
  $region73: #{cnn_with_rl_forward.1} parent=0 // pred_fallthru
    _

</llo_original>
